<compile_context>
chip_gen: v5e
topology: v5e:2x2
jax: 0.10.0
libtpu: 0.0.40
codegen_flags: <defaults>
</compile_context>

<pallas_src>
import functools

import numpy as np

import jax
import jax.numpy as jnp
from jax.experimental import pallas as pl
from jax.experimental.pallas import tpu as pltpu

LANE = 128     # channel dims padded to a multiple of this (lane-dense)
SUBLANE = 8    # flattened plane row counts padded to a multiple of this


def _round_up(x, m):
    return (x + m - 1) // m * m


# ------------------------------ Pallas kernel --------------------------------

def _conv3x3_acc(acc_ref, get_plane, w_ref, *, stride, wp, mtot, mxu_dtype):
    """acc[i] = sum_t plane_{p(t)}[i + shift(t)] @ w[t]  (flattened-plane conv).

    get_plane(p) returns the f32 flattened (Mtot, Cin_p) phase plane p.
    The per-tap spatial offset is a single static sublane rotation of the whole
    operand (pltpu.roll, np.roll convention), so no per-tap relayout copies.
    Interior output rows are exact; border/pad rows hold garbage that is either
    masked (conv1) or cropped by the wrapper (conv2).
    """
    for t in range(9):                       # unrolled: 9 MXU pushes per plane
        di, dj = divmod(t, 3)
        p = (di % stride) * stride + (dj % stride)
        u0, v0 = di // stride, dj // stride
        shift = (u0 - 1) * wp + (v0 - 1)     # acc[i] needs plane[i + shift]
        xt = get_plane(p)
        if shift != 0:
            xt = pltpu.roll(xt, (-shift) % mtot, axis=0)
        contrib = jnp.dot(xt.astype(mxu_dtype), w_ref[t],
                          preferred_element_type=jnp.float32)
        if t == 0:
            acc_ref[...] = contrib
        else:
            acc_ref[...] += contrib


def _basic_block_kernel(*refs, stride, wp, m1, b_tile, projection, mxu_dtype):
    """Fused conv1+BN+ReLU -> conv2+BN -> shortcut -> add -> ReLU (one batch tile)."""
    if projection:
        (ph_ref, w1_ref, s1_ref, b1_ref, w2_ref, s2_ref, b2_ref, mask_ref,
         ws_ref, ss_ref, bs_ref, o_ref, acc_ref, y1_ref) = refs
    else:
        (ph_ref, w1_ref, s1_ref, b1_ref, w2_ref, s2_ref, b2_ref, mask_ref,
         o_ref, acc_ref, y1_ref) = refs

    cin_p = ph_ref.shape[-1]
    cout_p = w1_ref.shape[-1]
    mtot = b_tile * m1

    plane_cache = {}

    def get_plane(p):
        # (b_tile, m1, cin_p) -> (mtot, cin_p) is a pure view (m1%8==0, cin_p%128==0);
        # cast to f32 once so all rolls operate on 32-bit data.
        if p not in plane_cache:
            plane_cache[p] = ph_ref[p].reshape(mtot, cin_p).astype(jnp.float32)
        return plane_cache[p]

    # ---- conv1 (stride folded via phase decomposition) + BN + ReLU ----
    _conv3x3_acc(acc_ref, get_plane, w1_ref,
                 stride=stride, wp=wp, mtot=mtot, mxu_dtype=mxu_dtype)
    y1 = jnp.maximum(acc_ref[...] * s1_ref[...] + b1_ref[...], 0.0)
    # Zero the padded-plane border so y1_ref is directly the zero-padded
    # conv2 input plane (stays VMEM-resident; no HBM round trip).
    y1_ref[...] = y1 * mask_ref[...]

    # ---- conv2 (stride 1 over the VMEM-resident y1 plane) + BN ----
    y1v = y1_ref[...]
    _conv3x3_acc(acc_ref, lambda p: y1v, w2_ref,
                 stride=1, wp=wp, mtot=mtot, mxu_dtype=mxu_dtype)
    y2 = acc_ref[...] * s2_ref[...] + b2_ref[...]

    # ---- shortcut fused in the epilogue ----
    if projection:
        # 1x1/stride conv + BN; its input x[s*u, s*v] is phase (1%s, 1%s) of the
        # already-resident input planes (no extra HBM stream).
        if stride == 1:
            sp, sshift = 0, 0
        else:
            sp, sshift = stride * stride - 1, -(wp + 1)
        xs = get_plane(sp)
        if sshift != 0:
            xs = pltpu.roll(xs, (-sshift) % mtot, axis=0)
        sc = jnp.dot(xs.astype(mxu_dtype), ws_ref[...],
                     preferred_element_type=jnp.float32)
        sc = sc * ss_ref[...] + bs_ref[...]
    else:
        sc = get_plane(0)                    # identity: padded x plane is already aligned

    out = jnp.maximum(y2 + sc, 0.0)
    # Flat lane-dense store; (Ho, Wo) crop happens in XLA outside the kernel.
    o_ref[...] = out.reshape(b_tile, m1, cout_p).astype(o_ref.dtype)


# ------------------------------ JAX-side prep ---------------------------------

def _make_planes(x, stride):
    """Zero-padded, phase-decomposed, flattened conv-input planes.

    Returns (planes, ho, wo, wp, m1) with planes of shape (stride^2, N, m1, C):
      planes[a*stride+b, n, u*wp + v, :] == x_zero_padded[n, stride*u + a, stride*v + b, :]
    for u <= ho, v <= wo, zeros elsewhere (wp = wo+2, m1 = round_up((ho+2)*wp, 8)).
    Total size ~= one copy of the padded input (no 9x im2col blow-up).
    """
    N, H, W, C = x.shape
    ho = (H - 1) // stride + 1
    wo = (W - 1) // stride + 1
    hp, wp = ho + 2, wo + 2
    m1 = _round_up(hp * wp, SUBLANE)
    if stride == 1:
        xp = jnp.pad(x, ((0, 0), (1, 1), (1, 1), (0, 0)))          # (N, hp, wp, C)
        planes = xp.reshape(N, hp * wp, C)[None]                    # (1, N, hp*wp, C)
    else:
        extra_h = max(0, stride * ho + stride - (H + 2))            # odd-H/W safety pad
        extra_w = max(0, stride * wo + stride - (W + 2))
        xp = jnp.pad(x, ((0, 0), (1, 1 + extra_h), (1, 1 + extra_w), (0, 0)))
        ps = []
        for a in range(stride):
            for b in range(stride):
                ph = xp[:, a:a + stride * ho + 1:stride,
                        b:b + stride * wo + 1:stride, :]            # (N, ho+1, wo+1, C)
                ph = jnp.pad(ph, ((0, 0), (0, 1), (0, 1), (0, 0)))  # (N, hp, wp, C)
                ps.append(ph.reshape(N, hp * wp, C))
        planes = jnp.stack(ps, axis=0)                              # (s^2, N, hp*wp, C)
    if m1 > hp * wp:
        planes = jnp.pad(planes, ((0, 0), (0, 0), (0, m1 - hp * wp), (0, 0)))
    return planes, ho, wo, wp, m1


def _w_taps(w_oihw, cin_p, cout_p, dtype):
    """(Cout, Cin, 3, 3) -> (9, Cin_p, Cout_p), tap order t = di*3 + dj."""
    cout, cin, kh, kw = w_oihw.shape
    w = jnp.transpose(w_oihw, (2, 3, 1, 0)).reshape(kh * kw, cin, cout)
    w = jnp.pad(w, ((0, 0), (0, cin_p - cin), (0, cout_p - cout)))
    return w.astype(dtype)


def _bn_fold(gamma, beta, mean, var, cout_p, eps=1e-5):
    scale = gamma / jnp.sqrt(var + eps)
    bias = beta - mean * scale
    pad = (0, cout_p - gamma.shape[0])
    return (jnp.pad(scale, pad)[None, :].astype(jnp.float32),
            jnp.pad(bias, pad)[None, :].astype(jnp.float32))


def _pick_b_tile(n, s2, m1, cin_p, cout_p, in_bytes, budget=8 * 1024 * 1024):
    """Largest divisor of N whose per-step VMEM estimate fits the budget."""
    per_img = 2 * s2 * m1 * cin_p * in_bytes      # pipelined input block (x2 buffers)
    per_img += s2 * m1 * cin_p * 4                # in-kernel f32 plane cache
    per_img += 2 * m1 * cout_p * 4                # pipelined output block (x2 buffers)
    per_img += 2 * m1 * cout_p * 4                # acc + y1 scratch (f32)
    per_img += 2 * m1 * cout_p * 4                # roll / contrib temporaries headroom
    bt = 1
    for cand in range(1, n + 1):
        if n % cand == 0 and cand * per_img <= budget:
            bt = cand
    return bt


def basic_block_forward(x_nchw, params, stride, compute_dtype=jnp.float32,
                        out_dtype=jnp.float32):
    """Pallas implementation of BasicBlock.forward (eval-mode BatchNorm)."""
    # TODO(synk): in a full network, keep activations NHWC end-to-end and hoist
    # the NCHW<->NHWC transposes and BN folding out of the per-block call.
    x = jnp.transpose(x_nchw, (0, 2, 3, 1)).astype(jnp.float32)     # NHWC
    N, H, W, cin = x.shape
    cout = params["w1"].shape[0]
    cin_p = _round_up(cin, LANE)
    cout_p = _round_up(cout, LANE)

    # Lane-dense channel padding (zero channels; sliced off at the end).
    xc = jnp.pad(x, ((0, 0), (0, 0), (0, 0), (0, cin_p - cin)))

    planes, ho, wo, wp, m1 = _make_planes(xc, stride)
    planes = planes.astype(compute_dtype)
    s2n = stride * stride
    hp = ho + 2

    w1 = _w_taps(params["w1"], cin_p, cout_p, compute_dtype)
    s1, b1 = _bn_fold(params["bn1_g"], params["bn1_b"],
                      params["bn1_m"], params["bn1_v"], cout_p)
    w2 = _w_taps(params["w2"], cout_p, cout_p, compute_dtype)
    s2c, b2c = _bn_fold(params["bn2_g"], params["bn2_b"],
                        params["bn2_m"], params["bn2_v"], cout_p)

    projection = (stride != 1) or (cin != cout)

    in_bytes = jnp.dtype(compute_dtype).itemsize
    b_tile = _pick_b_tile(N, s2n, m1, cin_p, cout_p, in_bytes)
    mtot = b_tile * m1

    # Interior mask of the (hp, wp) padded plane (host-side numpy -> constant).
    idx = np.arange(m1)
    row, col = idx // wp, idx % wp
    mask1 = ((row >= 1) & (row <= ho) & (col >= 1) & (col <= wo)).astype(np.float32)
    mask = jnp.asarray(np.tile(mask1, b_tile)[:, None])             # (mtot, 1)

    in_specs = [
        # per-step activation block (pipelined over the batch grid)
        pl.BlockSpec((s2n, b_tile, m1, cin_p), lambda i: (0, i, 0, 0)),
        # weights / folded-BN constants: constant index_map -> VMEM-resident
        pl.BlockSpec((9, cin_p, cout_p), lambda i: (0, 0, 0)),
        pl.BlockSpec((1, cout_p), lambda i: (0, 0)),
        pl.BlockSpec((1, cout_p), lambda i: (0, 0)),
        pl.BlockSpec((9, cout_p, cout_p), lambda i: (0, 0, 0)),
        pl.BlockSpec((1, cout_p), lambda i: (0, 0)),
        pl.BlockSpec((1, cout_p), lambda i: (0, 0)),
        pl.BlockSpec((mtot, 1), lambda i: (0, 0)),
    ]
    args = [planes, w1, s1, b1, w2, s2c, b2c, mask]
    if projection:
        ws = jnp.pad(params["ws"][:, :, 0, 0].T,
                     ((0, cin_p - cin), (0, cout_p - cout))).astype(compute_dtype)
        ss, bs = _bn_fold(params["bns_g"], params["bns_b"],
                          params["bns_m"], params["bns_v"], cout_p)
        in_specs += [
            pl.BlockSpec((cin_p, cout_p), lambda i: (0, 0)),
            pl.BlockSpec((1, cout_p), lambda i: (0, 0)),
            pl.BlockSpec((1, cout_p), lambda i: (0, 0)),
        ]
        args += [ws, ss, bs]

    kernel = functools.partial(
        _basic_block_kernel, stride=stride, wp=wp, m1=m1, b_tile=b_tile,
        projection=projection, mxu_dtype=compute_dtype)

    out_flat = pl.pallas_call(
        kernel,
        out_shape=jax.ShapeDtypeStruct((N, m1, cout_p), out_dtype),
        grid=(N // b_tile,),
        in_specs=in_specs,
        out_specs=pl.BlockSpec((b_tile, m1, cout_p), lambda i: (i, 0, 0)),
        scratch_shapes=[
            pltpu.VMEM((mtot, cout_p), jnp.float32),   # shared conv accumulator
            pltpu.VMEM((mtot, cout_p), jnp.float32),   # VMEM-resident padded y1 plane
        ],
        compiler_params=pltpu.CompilerParams(
            dimension_semantics=("parallel",),
            vmem_limit_bytes=32 * 1024 * 1024),
    )(*args)

    # Crop the padded plane / channel padding and go back to NCHW (pure XLA).
    out = out_flat[:, :hp * wp, :cout].reshape(N, hp, wp, cout)[:, 1:ho + 1, 1:wo + 1, :]
    return jnp.transpose(out, (0, 3, 1, 2)).astype(jnp.float32)


# ---------------------------- reference (plain JAX) ---------------------------

def _ref_forward(x, params, stride, eps=1e-5):
    def conv(x, w, s, pad):
        return jax.lax.conv_general_dilated(
            x, w, (s, s), [(pad, pad), (pad, pad)],
            dimension_numbers=("NCHW", "OIHW", "NCHW"))

    def bn(x, g, b, m, v):
        g, b, m, v = (t[None, :, None, None] for t in (g, b, m, v))
        return (x - m) / jnp.sqrt(v + eps) * g + b

    y = jax.nn.relu(bn(conv(x, params["w1"], stride, 1),
                       params["bn1_g"], params["bn1_b"], params["bn1_m"], params["bn1_v"]))
    y = bn(conv(y, params["w2"], 1, 1),
           params["bn2_g"], params["bn2_b"], params["bn2_m"], params["bn2_v"])
    cin, cout = x.shape[1], params["w1"].shape[0]
    if stride != 1 or cin != cout:
        sc = bn(conv(x, params["ws"], stride, 0),
                params["bns_g"], params["bns_b"], params["bns_m"], params["bns_v"])
    else:
        sc = x
    return jax.nn.relu(y + sc)


# --------------------------------- params -------------------------------------

def _make_params(key, cin, cout, stride):
    ks = jax.random.split(key, 16)
    p = {
        "w1": 0.1 * jax.random.normal(ks[0], (cout, cin, 3, 3), jnp.float32),
        "bn1_g": 1.0 + 0.1 * jax.random.normal(ks[1], (cout,), jnp.float32),
        "bn1_b": 0.1 * jax.random.normal(ks[2], (cout,), jnp.float32),
        "bn1_m": 0.1 * jax.random.normal(ks[3], (cout,), jnp.float32),
        "bn1_v": jax.random.uniform(ks[4], (cout,), jnp.float32, 0.5, 1.5),
        "w2": 0.1 * jax.random.normal(ks[5], (cout, cout, 3, 3), jnp.float32),
        "bn2_g": 1.0 + 0.1 * jax.random.normal(ks[6], (cout,), jnp.float32),
        "bn2_b": 0.1 * jax.random.normal(ks[7], (cout,), jnp.float32),
        "bn2_m": 0.1 * jax.random.normal(ks[8], (cout,), jnp.float32),
        "bn2_v": jax.random.uniform(ks[9], (cout,), jnp.float32, 0.5, 1.5),
    }
    if stride != 1 or cin != cout:
        p.update({
            "ws": 0.1 * jax.random.normal(ks[10], (cout, cin, 1, 1), jnp.float32),
            "bns_g": 1.0 + 0.1 * jax.random.normal(ks[11], (cout,), jnp.float32),
            "bns_b": 0.1 * jax.random.normal(ks[12], (cout,), jnp.float32),
            "bns_m": 0.1 * jax.random.normal(ks[13], (cout,), jnp.float32),
            "bns_v": jax.random.uniform(ks[14], (cout,), jnp.float32, 0.5, 1.5),
        })
    return p


# ----------------------------------- main --------------------------------------

if __name__ == "__main__":
    key = jax.random.PRNGKey(0)
    kx1, kp1, kx2, kp2 = jax.random.split(key, 4)

    fwd = jax.jit(basic_block_forward,
                  static_argnames=("stride", "compute_dtype", "out_dtype"))

    # Case 1: projection shortcut (stride=2, 4 -> 8 channels): x (2, 4, 16, 16)
    x1 = jax.random.normal(kx1, (2, 4, 16, 16), jnp.float32)
    params1 = _make_params(kp1, cin=4, cout=8, stride=2)
    out1 = jax.block_until_ready(fwd(x1, params1, stride=2))
    ref1 = jax.block_until_ready(_ref_forward(x1, params1, 2))
    assert out1.shape == (2, 8, 8, 8), out1.shape
    assert jnp.allclose(out1, ref1, atol=1e-4, rtol=1e-4), float(jnp.abs(out1 - ref1).max())

    # Case 2: identity shortcut (stride=1, same channels): x (2, 8, 16, 16)
    x2 = jax.random.normal(kx2, (2, 8, 16, 16), jnp.float32)
    params2 = _make_params(kp2, cin=8, cout=8, stride=1)
    out2 = jax.block_until_ready(fwd(x2, params2, stride=1))
    ref2 = jax.block_until_ready(_ref_forward(x2, params2, 1))
    assert out2.shape == (2, 8, 16, 16), out2.shape
    assert jnp.allclose(out2, ref2, atol=1e-4, rtol=1e-4), float(jnp.abs(out2 - ref2).max())

    # Case 3: bf16 compute path (halves activation/weight HBM streams, native MXU
    # bf16 rate on v5e/v6e/v7x); f32 accumulation/epilogues; bf16-level tolerance.
    out3 = jax.block_until_ready(fwd(x2, params2, stride=1, compute_dtype=jnp.bfloat16))
    assert out3.shape == (2, 8, 16, 16), out3.shape
    assert jnp.allclose(out3, ref2, atol=1e-1, rtol=1e-1), float(jnp.abs(out3 - ref2).max())

    print("KERNEL_OK")
</pallas_src>

<mosaic_0001>
module attributes {stable_mosaic.version = 11 : i64} {
  func.func @_basic_block_kernel(%arg0: i32, %arg1: memref<4x2x104x128xf32, #tpu.memory_space<vmem>>, %arg2: memref<9x128x128xf32, #tpu.memory_space<vmem>>, %arg3: memref<1x128xf32, #tpu.memory_space<vmem>>, %arg4: memref<1x128xf32, #tpu.memory_space<vmem>>, %arg5: memref<9x128x128xf32, #tpu.memory_space<vmem>>, %arg6: memref<1x128xf32, #tpu.memory_space<vmem>>, %arg7: memref<1x128xf32, #tpu.memory_space<vmem>>, %arg8: memref<208x1xf32, #tpu.memory_space<vmem>>, %arg9: memref<128x128xf32, #tpu.memory_space<vmem>>, %arg10: memref<1x128xf32, #tpu.memory_space<vmem>>, %arg11: memref<1x128xf32, #tpu.memory_space<vmem>>, %arg12: memref<2x104x128xf32, #tpu.memory_space<vmem>>, %arg13: memref<208x128xf32, #tpu.memory_space<vmem>>, %arg14: memref<208x128xf32, #tpu.memory_space<vmem>>) attributes {dimension_semantics = [#tpu.dimension_semantics<parallel>], iteration_bounds = array<i64: 1>, scalar_prefetch = 0 : i64, scratch_operands = 2 : i64, tpu.core_type = #tpu.core_type<tc>, window_params = [{transform_indices = @transform_0, window_bounds = array<i64: 4, 2, 104, 128>}, {pipeline_mode = #tpu.pipeline_mode<synchronous>, transform_indices = @transform_1, window_bounds = array<i64: 9, 128, 128>}, {pipeline_mode = #tpu.pipeline_mode<synchronous>, transform_indices = @transform_2, window_bounds = array<i64: 1, 128>}, {pipeline_mode = #tpu.pipeline_mode<synchronous>, transform_indices = @transform_3, window_bounds = array<i64: 1, 128>}, {pipeline_mode = #tpu.pipeline_mode<synchronous>, transform_indices = @transform_4, window_bounds = array<i64: 9, 128, 128>}, {pipeline_mode = #tpu.pipeline_mode<synchronous>, transform_indices = @transform_5, window_bounds = array<i64: 1, 128>}, {pipeline_mode = #tpu.pipeline_mode<synchronous>, transform_indices = @transform_6, window_bounds = array<i64: 1, 128>}, {pipeline_mode = #tpu.pipeline_mode<synchronous>, transform_indices = @transform_7, window_bounds = array<i64: 208, 1>}, {pipeline_mode = #tpu.pipeline_mode<synchronous>, transform_indices = @transform_8, window_bounds = array<i64: 128, 128>}, {pipeline_mode = #tpu.pipeline_mode<synchronous>, transform_indices = @transform_9, window_bounds = array<i64: 1, 128>}, {pipeline_mode = #tpu.pipeline_mode<synchronous>, transform_indices = @transform_10, window_bounds = array<i64: 1, 128>}, {transform_indices = @transform_11, window_bounds = array<i64: 2, 104, 128>}]} {
    %c0 = arith.constant 0 : index
    %c0_0 = arith.constant 0 : index
    %c0_1 = arith.constant 0 : index
    %c0_2 = arith.constant 0 : index
    %0 = vector.load %arg1[%c0, %c0_0, %c0_1, %c0_2] : memref<4x2x104x128xf32, #tpu.memory_space<vmem>>, vector<1x2x104x128xf32>
    %1 = vector.shape_cast %0 : vector<1x2x104x128xf32> to vector<2x104x128xf32>
    %2 = vector.shape_cast %1 : vector<2x104x128xf32> to vector<208x128xf32>
    %c11_i32 = arith.constant 11 : i32
    %3 = tpu.dynamic_rotate %2 by %c11_i32 dim 0 : vector<208x128xf32>, i32 -> vector<208x128xf32>
    %c0_3 = arith.constant 0 : index
    %c0_4 = arith.constant 0 : index
    %c0_5 = arith.constant 0 : index
    %4 = vector.load %arg2[%c0_3, %c0_4, %c0_5] : memref<9x128x128xf32, #tpu.memory_space<vmem>>, vector<1x128x128xf32>
    %5 = vector.shape_cast %4 : vector<1x128x128xf32> to vector<128x128xf32>
    %cst = arith.constant dense<0.000000e+00> : vector<208x128xf32>
    %6 = tpu.matmul %3, %5, %cst {dimension_numbers = #tpu.dot_dimension_numbers<[1], [0], [0], [1], [0, 0, 1, 1], [], []>} : vector<208x128xf32>, vector<128x128xf32>, vector<208x128xf32> -> vector<208x128xf32>
    %c0_6 = arith.constant 0 : index
    %c0_7 = arith.constant 0 : index
    %7 = vector.load %arg13[%c0_6, %c0_7] : memref<208x128xf32, #tpu.memory_space<vmem>>, vector<208x128xf32>
    tpu.vector_store %arg13[%c0_6, %c0_7], %6 {strides = array<i32>} : memref<208x128xf32, #tpu.memory_space<vmem>>, vector<208x128xf32>,
    %c1 = arith.constant 1 : index
    %c0_8 = arith.constant 0 : index
    %c0_9 = arith.constant 0 : index
    %c0_10 = arith.constant 0 : index
    %8 = vector.load %arg1[%c1, %c0_8, %c0_9, %c0_10] : memref<4x2x104x128xf32, #tpu.memory_space<vmem>>, vector<1x2x104x128xf32>
    %9 = vector.shape_cast %8 : vector<1x2x104x128xf32> to vector<2x104x128xf32>
    %10 = vector.shape_cast %9 : vector<2x104x128xf32> to vector<208x128xf32>
    %c11_i32_11 = arith.constant 11 : i32
    %11 = tpu.dynamic_rotate %10 by %c11_i32_11 dim 0 : vector<208x128xf32>, i32 -> vector<208x128xf32>
    %c1_12 = arith.constant 1 : index
    %c0_13 = arith.constant 0 : index
    %c0_14 = arith.constant 0 : index
    %12 = vector.load %arg2[%c1_12, %c0_13, %c0_14] : memref<9x128x128xf32, #tpu.memory_space<vmem>>, vector<1x128x128xf32>
    %13 = vector.shape_cast %12 : vector<1x128x128xf32> to vector<128x128xf32>
    %cst_15 = arith.constant dense<0.000000e+00> : vector<208x128xf32>
    %14 = tpu.matmul %11, %13, %cst_15 {dimension_numbers = #tpu.dot_dimension_numbers<[1], [0], [0], [1], [0, 0, 1, 1], [], []>} : vector<208x128xf32>, vector<128x128xf32>, vector<208x128xf32> -> vector<208x128xf32>
    %c0_16 = arith.constant 0 : index
    %c0_17 = arith.constant 0 : index
    %15 = vector.load %arg13[%c0_16, %c0_17] : memref<208x128xf32, #tpu.memory_space<vmem>>, vector<208x128xf32>
    %16 = arith.addf %15, %14 : vector<208x128xf32>
    %c0_18 = arith.constant 0 : index
    %c0_19 = arith.constant 0 : index
    %17 = vector.load %arg13[%c0_18, %c0_19] : memref<208x128xf32, #tpu.memory_space<vmem>>, vector<208x128xf32>
    tpu.vector_store %arg13[%c0_18, %c0_19], %16 {strides = array<i32>} : memref<208x128xf32, #tpu.memory_space<vmem>>, vector<208x128xf32>,
    %c10_i32 = arith.constant 10 : i32
    %18 = tpu.dynamic_rotate %2 by %c10_i32 dim 0 : vector<208x128xf32>, i32 -> vector<208x128xf32>
    %c2 = arith.constant 2 : index
    %c0_20 = arith.constant 0 : index
    %c0_21 = arith.constant 0 : index
    %19 = vector.load %arg2[%c2, %c0_20, %c0_21] : memref<9x128x128xf32, #tpu.memory_space<vmem>>, vector<1x128x128xf32>
    %20 = vector.shape_cast %19 : vector<1x128x128xf32> to vector<128x128xf32>
    %cst_22 = arith.constant dense<0.000000e+00> : vector<208x128xf32>
    %21 = tpu.matmul %18, %20, %cst_22 {dimension_numbers = #tpu.dot_dimension_numbers<[1], [0], [0], [1], [0, 0, 1, 1], [], []>} : vector<208x128xf32>, vector<128x128xf32>, vector<208x128xf32> -> vector<208x128xf32>
    %c0_23 = arith.constant 0 : index
    %c0_24 = arith.constant 0 : index
    %22 = vector.load %arg13[%c0_23, %c0_24] : memref<208x128xf32, #tpu.memory_space<vmem>>, vector<208x128xf32>
    %23 = arith.addf %22, %21 : vector<208x128xf32>
    %c0_25 = arith.constant 0 : index
    %c0_26 = arith.constant 0 : index
    %24 = vector.load %arg13[%c0_25, %c0_26] : memref<208x128xf32, #tpu.memory_space<vmem>>, vector<208x128xf32>
    tpu.vector_store %arg13[%c0_25, %c0_26], %23 {strides = array<i32>} : memref<208x128xf32, #tpu.memory_space<vmem>>, vector<208x128xf32>,
    %c2_27 = arith.constant 2 : index
    %c0_28 = arith.constant 0 : index
    %c0_29 = arith.constant 0 : index
    %c0_30 = arith.constant 0 : index
    %25 = vector.load %arg1[%c2_27, %c0_28, %c0_29, %c0_30] : memref<4x2x104x128xf32, #tpu.memory_space<vmem>>, vector<1x2x104x128xf32>
    %26 = vector.shape_cast %25 : vector<1x2x104x128xf32> to vector<2x104x128xf32>
    %27 = vector.shape_cast %26 : vector<2x104x128xf32> to vector<208x128xf32>
    %c11_i32_31 = arith.constant 11 : i32
    %28 = tpu.dynamic_rotate %27 by %c11_i32_31 dim 0 : vector<208x128xf32>, i32 -> vector<208x128xf32>
    %c3 = arith.constant 3 : index
    %c0_32 = arith.constant 0 : index
    %c0_33 = arith.constant 0 : index
    %29 = vector.load %arg2[%c3, %c0_32, %c0_33] : memref<9x128x128xf32, #tpu.memory_space<vmem>>, vector<1x128x128xf32>
    %30 = vector.shape_cast %29 : vector<1x128x128xf32> to vector<128x128xf32>
    %cst_34 = arith.constant dense<0.000000e+00> : vector<208x128xf32>
    %31 = tpu.matmul %28, %30, %cst_34 {dimension_numbers = #tpu.dot_dimension_numbers<[1], [0], [0], [1], [0, 0, 1, 1], [], []>} : vector<208x128xf32>, vector<128x128xf32>, vector<208x128xf32> -> vector<208x128xf32>
    %c0_35 = arith.constant 0 : index
    %c0_36 = arith.constant 0 : index
    %32 = vector.load %arg13[%c0_35, %c0_36] : memref<208x128xf32, #tpu.memory_space<vmem>>, vector<208x128xf32>
    %33 = arith.addf %32, %31 : vector<208x128xf32>
    %c0_37 = arith.constant 0 : index
    %c0_38 = arith.constant 0 : index
    %34 = vector.load %arg13[%c0_37, %c0_38] : memref<208x128xf32, #tpu.memory_space<vmem>>, vector<208x128xf32>
    tpu.vector_store %arg13[%c0_37, %c0_38], %33 {strides = array<i32>} : memref<208x128xf32, #tpu.memory_space<vmem>>, vector<208x128xf32>,
    %c3_39 = arith.constant 3 : index
    %c0_40 = arith.constant 0 : index
    %c0_41 = arith.constant 0 : index
    %c0_42 = arith.constant 0 : index
    %35 = vector.load %arg1[%c3_39, %c0_40, %c0_41, %c0_42] : memref<4x2x104x128xf32, #tpu.memory_space<vmem>>, vector<1x2x104x128xf32>
    %36 = vector.shape_cast %35 : vector<1x2x104x128xf32> to vector<2x104x128xf32>
    %37 = vector.shape_cast %36 : vector<2x104x128xf32> to vector<208x128xf32>
    %c11_i32_43 = arith.constant 11 : i32
    %38 = tpu.dynamic_rotate %37 by %c11_i32_43 dim 0 : vector<208x128xf32>, i32 -> vector<208x128xf32>
    %c4 = arith.constant 4 : index
    %c0_44 = arith.constant 0 : index
    %c0_45 = arith.constant 0 : index
    %39 = vector.load %arg2[%c4, %c0_44, %c0_45] : memref<9x128x128xf32, #tpu.memory_space<vmem>>, vector<1x128x128xf32>
    %40 = vector.shape_cast %39 : vector<1x128x128xf32> to vector<128x128xf32>
    %cst_46 = arith.constant dense<0.000000e+00> : vector<208x128xf32>
    %41 = tpu.matmul %38, %40, %cst_46 {dimension_numbers = #tpu.dot_dimension_numbers<[1], [0], [0], [1], [0, 0, 1, 1], [], []>} : vector<208x128xf32>, vector<128x128xf32>, vector<208x128xf32> -> vector<208x128xf32>
    %c0_47 = arith.constant 0 : index
    %c0_48 = arith.constant 0 : index
    %42 = vector.load %arg13[%c0_47, %c0_48] : memref<208x128xf32, #tpu.memory_space<vmem>>, vector<208x128xf32>
    %43 = arith.addf %42, %41 : vector<208x128xf32>
    %c0_49 = arith.constant 0 : index
    %c0_50 = arith.constant 0 : index
    %44 = vector.load %arg13[%c0_49, %c0_50] : memref<208x128xf32, #tpu.memory_space<vmem>>, vector<208x128xf32>
    tpu.vector_store %arg13[%c0_49, %c0_50], %43 {strides = array<i32>} : memref<208x128xf32, #tpu.memory_space<vmem>>, vector<208x128xf32>,
    %c10_i32_51 = arith.constant 10 : i32
    %45 = tpu.dynamic_rotate %27 by %c10_i32_51 dim 0 : vector<208x128xf32>, i32 -> vector<208x128xf32>
    %c5 = arith.constant 5 : index
    %c0_52 = arith.constant 0 : index
    %c0_53 = arith.constant 0 : index
    %46 = vector.load %arg2[%c5, %c0_52, %c0_53] : memref<9x128x128xf32, #tpu.memory_space<vmem>>, vector<1x128x128xf32>
    %47 = vector.shape_cast %46 : vector<1x128x128xf32> to vector<128x128xf32>
    %cst_54 = arith.constant dense<0.000000e+00> : vector<208x128xf32>
    %48 = tpu.matmul %45, %47, %cst_54 {dimension_numbers = #tpu.dot_dimension_numbers<[1], [0], [0], [1], [0, 0, 1, 1], [], []>} : vector<208x128xf32>, vector<128x128xf32>, vector<208x128xf32> -> vector<208x128xf32>
    %c0_55 = arith.constant 0 : index
    %c0_56 = arith.constant 0 : index
    %49 = vector.load %arg13[%c0_55, %c0_56] : memref<208x128xf32, #tpu.memory_space<vmem>>, vector<208x128xf32>
    %50 = arith.addf %49, %48 : vector<208x128xf32>
    %c0_57 = arith.constant 0 : index
    %c0_58 = arith.constant 0 : index
    %51 = vector.load %arg13[%c0_57, %c0_58] : memref<208x128xf32, #tpu.memory_space<vmem>>, vector<208x128xf32>
    tpu.vector_store %arg13[%c0_57, %c0_58], %50 {strides = array<i32>} : memref<208x128xf32, #tpu.memory_space<vmem>>, vector<208x128xf32>,
    %c1_i32 = arith.constant 1 : i32
    %52 = tpu.dynamic_rotate %2 by %c1_i32 dim 0 : vector<208x128xf32>, i32 -> vector<208x128xf32>
    %c6 = arith.constant 6 : index
    %c0_59 = arith.constant 0 : index
    %c0_60 = arith.constant 0 : index
    %53 = vector.load %arg2[%c6, %c0_59, %c0_60] : memref<9x128x128xf32, #tpu.memory_space<vmem>>, vector<1x128x128xf32>
    %54 = vector.shape_cast %53 : vector<1x128x128xf32> to vector<128x128xf32>
    %cst_61 = arith.constant dense<0.000000e+00> : vector<208x128xf32>
    %55 = tpu.matmul %52, %54, %cst_61 {dimension_numbers = #tpu.dot_dimension_numbers<[1], [0], [0], [1], [0, 0, 1, 1], [], []>} : vector<208x128xf32>, vector<128x128xf32>, vector<208x128xf32> -> vector<208x128xf32>
    %c0_62 = arith.constant 0 : index
    %c0_63 = arith.constant 0 : index
    %56 = vector.load %arg13[%c0_62, %c0_63] : memref<208x128xf32, #tpu.memory_space<vmem>>, vector<208x128xf32>
    %57 = arith.addf %56, %55 : vector<208x128xf32>
    %c0_64 = arith.constant 0 : index
    %c0_65 = arith.constant 0 : index
    %58 = vector.load %arg13[%c0_64, %c0_65] : memref<208x128xf32, #tpu.memory_space<vmem>>, vector<208x128xf32>
    tpu.vector_store %arg13[%c0_64, %c0_65], %57 {strides = array<i32>} : memref<208x128xf32, #tpu.memory_space<vmem>>, vector<208x128xf32>,
    %c1_i32_66 = arith.constant 1 : i32
    %59 = tpu.dynamic_rotate %10 by %c1_i32_66 dim 0 : vector<208x128xf32>, i32 -> vector<208x128xf32>
    %c7 = arith.constant 7 : index
    %c0_67 = arith.constant 0 : index
    %c0_68 = arith.constant 0 : index
    %60 = vector.load %arg2[%c7, %c0_67, %c0_68] : memref<9x128x128xf32, #tpu.memory_space<vmem>>, vector<1x128x128xf32>
    %61 = vector.shape_cast %60 : vector<1x128x128xf32> to vector<128x128xf32>
    %cst_69 = arith.constant dense<0.000000e+00> : vector<208x128xf32>
    %62 = tpu.matmul %59, %61, %cst_69 {dimension_numbers = #tpu.dot_dimension_numbers<[1], [0], [0], [1], [0, 0, 1, 1], [], []>} : vector<208x128xf32>, vector<128x128xf32>, vector<208x128xf32> -> vector<208x128xf32>
    %c0_70 = arith.constant 0 : index
    %c0_71 = arith.constant 0 : index
    %63 = vector.load %arg13[%c0_70, %c0_71] : memref<208x128xf32, #tpu.memory_space<vmem>>, vector<208x128xf32>
    %64 = arith.addf %63, %62 : vector<208x128xf32>
    %c0_72 = arith.constant 0 : index
    %c0_73 = arith.constant 0 : index
    %65 = vector.load %arg13[%c0_72, %c0_73] : memref<208x128xf32, #tpu.memory_space<vmem>>, vector<208x128xf32>
    tpu.vector_store %arg13[%c0_72, %c0_73], %64 {strides = array<i32>} : memref<208x128xf32, #tpu.memory_space<vmem>>, vector<208x128xf32>,
    %c8 = arith.constant 8 : index
    %c0_74 = arith.constant 0 : index
    %c0_75 = arith.constant 0 : index
    %66 = vector.load %arg2[%c8, %c0_74, %c0_75] : memref<9x128x128xf32, #tpu.memory_space<vmem>>, vector<1x128x128xf32>
    %67 = vector.shape_cast %66 : vector<1x128x128xf32> to vector<128x128xf32>
    %cst_76 = arith.constant dense<0.000000e+00> : vector<208x128xf32>
    %68 = tpu.matmul %2, %67, %cst_76 {dimension_numbers = #tpu.dot_dimension_numbers<[1], [0], [0], [1], [0, 0, 1, 1], [], []>} : vector<208x128xf32>, vector<128x128xf32>, vector<208x128xf32> -> vector<208x128xf32>
    %c0_77 = arith.constant 0 : index
    %c0_78 = arith.constant 0 : index
    %69 = vector.load %arg13[%c0_77, %c0_78] : memref<208x128xf32, #tpu.memory_space<vmem>>, vector<208x128xf32>
    %70 = arith.addf %69, %68 : vector<208x128xf32>
    %c0_79 = arith.constant 0 : index
    %c0_80 = arith.constant 0 : index
    %71 = vector.load %arg13[%c0_79, %c0_80] : memref<208x128xf32, #tpu.memory_space<vmem>>, vector<208x128xf32>
    tpu.vector_store %arg13[%c0_79, %c0_80], %70 {strides = array<i32>} : memref<208x128xf32, #tpu.memory_space<vmem>>, vector<208x128xf32>,
    %c0_81 = arith.constant 0 : index
    %c0_82 = arith.constant 0 : index
    %72 = vector.load %arg13[%c0_81, %c0_82] : memref<208x128xf32, #tpu.memory_space<vmem>>, vector<208x128xf32>
    %c0_83 = arith.constant 0 : index
    %c0_84 = arith.constant 0 : index
    %73 = vector.load %arg3[%c0_83, %c0_84] : memref<1x128xf32, #tpu.memory_space<vmem>>, vector<1x128xf32>
    %74 = vector.broadcast %73 : vector<1x128xf32> to vector<208x128xf32>
    %75 = arith.mulf %72, %74 : vector<208x128xf32>
    %c0_85 = arith.constant 0 : index
    %c0_86 = arith.constant 0 : index
    %76 = vector.load %arg4[%c0_85, %c0_86] : memref<1x128xf32, #tpu.memory_space<vmem>>, vector<1x128xf32>
    %77 = vector.broadcast %76 : vector<1x128xf32> to vector<208x128xf32>
    %78 = arith.addf %75, %77 : vector<208x128xf32>
    %cst_87 = arith.constant 0.000000e+00 : f32
    %79 = vector.broadcast %cst_87 : f32 to vector<208x128xf32>
    %80 = arith.maximumf %78, %79 : vector<208x128xf32>
    %c0_88 = arith.constant 0 : index
    %c0_89 = arith.constant 0 : index
    %81 = vector.load %arg8[%c0_88, %c0_89] : memref<208x1xf32, #tpu.memory_space<vmem>>, vector<208x1xf32>
    %82 = vector.broadcast %81 : vector<208x1xf32> to vector<208x128xf32>
    %83 = arith.mulf %80, %82 : vector<208x128xf32>
    %c0_90 = arith.constant 0 : index
    %c0_91 = arith.constant 0 : index
    %84 = vector.load %arg14[%c0_90, %c0_91] : memref<208x128xf32, #tpu.memory_space<vmem>>, vector<208x128xf32>
    tpu.vector_store %arg14[%c0_90, %c0_91], %83 {strides = array<i32>} : memref<208x128xf32, #tpu.memory_space<vmem>>, vector<208x128xf32>,
    %c0_92 = arith.constant 0 : index
    %c0_93 = arith.constant 0 : index
    %85 = vector.load %arg14[%c0_92, %c0_93] : memref<208x128xf32, #tpu.memory_space<vmem>>, vector<208x128xf32>
    %c11_i32_94 = arith.constant 11 : i32
    %86 = tpu.dynamic_rotate %85 by %c11_i32_94 dim 0 : vector<208x128xf32>, i32 -> vector<208x128xf32>
    %c0_95 = arith.constant 0 : index
    %c0_96 = arith.constant 0 : index
    %c0_97 = arith.constant 0 : index
    %87 = vector.load %arg5[%c0_95, %c0_96, %c0_97] : memref<9x128x128xf32, #tpu.memory_space<vmem>>, vector<1x128x128xf32>
    %88 = vector.shape_cast %87 : vector<1x128x128xf32> to vector<128x128xf32>
    %cst_98 = arith.constant dense<0.000000e+00> : vector<208x128xf32>
    %89 = tpu.matmul %86, %88, %cst_98 {dimension_numbers = #tpu.dot_dimension_numbers<[1], [0], [0], [1], [0, 0, 1, 1], [], []>} : vector<208x128xf32>, vector<128x128xf32>, vector<208x128xf32> -> vector<208x128xf32>
    %c0_99 = arith.constant 0 : index
    %c0_100 = arith.constant 0 : index
    %90 = vector.load %arg13[%c0_99, %c0_100] : memref<208x128xf32, #tpu.memory_space<vmem>>, vector<208x128xf32>
    tpu.vector_store %arg13[%c0_99, %c0_100], %89 {strides = array<i32>} : memref<208x128xf32, #tpu.memory_space<vmem>>, vector<208x128xf32>,
    %c10_i32_101 = arith.constant 10 : i32
    %91 = tpu.dynamic_rotate %85 by %c10_i32_101 dim 0 : vector<208x128xf32>, i32 -> vector<208x128xf32>
    %c1_102 = arith.constant 1 : index
    %c0_103 = arith.constant 0 : index
    %c0_104 = arith.constant 0 : index
    %92 = vector.load %arg5[%c1_102, %c0_103, %c0_104] : memref<9x128x128xf32, #tpu.memory_space<vmem>>, vector<1x128x128xf32>
    %93 = vector.shape_cast %92 : vector<1x128x128xf32> to vector<128x128xf32>
    %cst_105 = arith.constant dense<0.000000e+00> : vector<208x128xf32>
    %94 = tpu.matmul %91, %93, %cst_105 {dimension_numbers = #tpu.dot_dimension_numbers<[1], [0], [0], [1], [0, 0, 1, 1], [], []>} : vector<208x128xf32>, vector<128x128xf32>, vector<208x128xf32> -> vector<208x128xf32>
    %c0_106 = arith.constant 0 : index
    %c0_107 = arith.constant 0 : index
    %95 = vector.load %arg13[%c0_106, %c0_107] : memref<208x128xf32, #tpu.memory_space<vmem>>, vector<208x128xf32>
    %96 = arith.addf %95, %94 : vector<208x128xf32>
    %c0_108 = arith.constant 0 : index
    %c0_109 = arith.constant 0 : index
    %97 = vector.load %arg13[%c0_108, %c0_109] : memref<208x128xf32, #tpu.memory_space<vmem>>, vector<208x128xf32>
    tpu.vector_store %arg13[%c0_108, %c0_109], %96 {strides = array<i32>} : memref<208x128xf32, #tpu.memory_space<vmem>>, vector<208x128xf32>,
    %c9_i32 = arith.constant 9 : i32
    %98 = tpu.dynamic_rotate %85 by %c9_i32 dim 0 : vector<208x128xf32>, i32 -> vector<208x128xf32>
    %c2_110 = arith.constant 2 : index
    %c0_111 = arith.constant 0 : index
    %c0_112 = arith.constant 0 : index
    %99 = vector.load %arg5[%c2_110, %c0_111, %c0_112] : memref<9x128x128xf32, #tpu.memory_space<vmem>>, vector<1x128x128xf32>
    %100 = vector.shape_cast %99 : vector<1x128x128xf32> to vector<128x128xf32>
    %cst_113 = arith.constant dense<0.000000e+00> : vector<208x128xf32>
    %101 = tpu.matmul %98, %100, %cst_113 {dimension_numbers = #tpu.dot_dimension_numbers<[1], [0], [0], [1], [0, 0, 1, 1], [], []>} : vector<208x128xf32>, vector<128x128xf32>, vector<208x128xf32> -> vector<208x128xf32>
    %c0_114 = arith.constant 0 : index
    %c0_115 = arith.constant 0 : index
    %102 = vector.load %arg13[%c0_114, %c0_115] : memref<208x128xf32, #tpu.memory_space<vmem>>, vector<208x128xf32>
    %103 = arith.addf %102, %101 : vector<208x128xf32>
    %c0_116 = arith.constant 0 : index
    %c0_117 = arith.constant 0 : index
    %104 = vector.load %arg13[%c0_116, %c0_117] : memref<208x128xf32, #tpu.memory_space<vmem>>, vector<208x128xf32>
    tpu.vector_store %arg13[%c0_116, %c0_117], %103 {strides = array<i32>} : memref<208x128xf32, #tpu.memory_space<vmem>>, vector<208x128xf32>,
    %c1_i32_118 = arith.constant 1 : i32
    %105 = tpu.dynamic_rotate %85 by %c1_i32_118 dim 0 : vector<208x128xf32>, i32 -> vector<208x128xf32>
    %c3_119 = arith.constant 3 : index
    %c0_120 = arith.constant 0 : index
    %c0_121 = arith.constant 0 : index
    %106 = vector.load %arg5[%c3_119, %c0_120, %c0_121] : memref<9x128x128xf32, #tpu.memory_space<vmem>>, vector<1x128x128xf32>
    %107 = vector.shape_cast %106 : vector<1x128x128xf32> to vector<128x128xf32>
    %cst_122 = arith.constant dense<0.000000e+00> : vector<208x128xf32>
    %108 = tpu.matmul %105, %107, %cst_122 {dimension_numbers = #tpu.dot_dimension_numbers<[1], [0], [0], [1], [0, 0, 1, 1], [], []>} : vector<208x128xf32>, vector<128x128xf32>, vector<208x128xf32> -> vector<208x128xf32>
    %c0_123 = arith.constant 0 : index
    %c0_124 = arith.constant 0 : index
    %109 = vector.load %arg13[%c0_123, %c0_124] : memref<208x128xf32, #tpu.memory_space<vmem>>, vector<208x128xf32>
    %110 = arith.addf %109, %108 : vector<208x128xf32>
    %c0_125 = arith.constant 0 : index
    %c0_126 = arith.constant 0 : index
    %111 = vector.load %arg13[%c0_125, %c0_126] : memref<208x128xf32, #tpu.memory_space<vmem>>, vector<208x128xf32>
    tpu.vector_store %arg13[%c0_125, %c0_126], %110 {strides = array<i32>} : memref<208x128xf32, #tpu.memory_space<vmem>>, vector<208x128xf32>,
    %c4_127 = arith.constant 4 : index
    %c0_128 = arith.constant 0 : index
    %c0_129 = arith.constant 0 : index
    %112 = vector.load %arg5[%c4_127, %c0_128, %c0_129] : memref<9x128x128xf32, #tpu.memory_space<vmem>>, vector<1x128x128xf32>
    %113 = vector.shape_cast %112 : vector<1x128x128xf32> to vector<128x128xf32>
    %cst_130 = arith.constant dense<0.000000e+00> : vector<208x128xf32>
    %114 = tpu.matmul %85, %113, %cst_130 {dimension_numbers = #tpu.dot_dimension_numbers<[1], [0], [0], [1], [0, 0, 1, 1], [], []>} : vector<208x128xf32>, vector<128x128xf32>, vector<208x128xf32> -> vector<208x128xf32>
    %c0_131 = arith.constant 0 : index
    %c0_132 = arith.constant 0 : index
    %115 = vector.load %arg13[%c0_131, %c0_132] : memref<208x128xf32, #tpu.memory_space<vmem>>, vector<208x128xf32>
    %116 = arith.addf %115, %114 : vector<208x128xf32>
    %c0_133 = arith.constant 0 : index
    %c0_134 = arith.constant 0 : index
    %117 = vector.load %arg13[%c0_133, %c0_134] : memref<208x128xf32, #tpu.memory_space<vmem>>, vector<208x128xf32>
    tpu.vector_store %arg13[%c0_133, %c0_134], %116 {strides = array<i32>} : memref<208x128xf32, #tpu.memory_space<vmem>>, vector<208x128xf32>,
    %c207_i32 = arith.constant 207 : i32
    %118 = tpu.dynamic_rotate %85 by %c207_i32 dim 0 : vector<208x128xf32>, i32 -> vector<208x128xf32>
    %c5_135 = arith.constant 5 : index
    %c0_136 = arith.constant 0 : index
    %c0_137 = arith.constant 0 : index
    %119 = vector.load %arg5[%c5_135, %c0_136, %c0_137] : memref<9x128x128xf32, #tpu.memory_space<vmem>>, vector<1x128x128xf32>
    %120 = vector.shape_cast %119 : vector<1x128x128xf32> to vector<128x128xf32>
    %cst_138 = arith.constant dense<0.000000e+00> : vector<208x128xf32>
    %121 = tpu.matmul %118, %120, %cst_138 {dimension_numbers = #tpu.dot_dimension_numbers<[1], [0], [0], [1], [0, 0, 1, 1], [], []>} : vector<208x128xf32>, vector<128x128xf32>, vector<208x128xf32> -> vector<208x128xf32>
    %c0_139 = arith.constant 0 : index
    %c0_140 = arith.constant 0 : index
    %122 = vector.load %arg13[%c0_139, %c0_140] : memref<208x128xf32, #tpu.memory_space<vmem>>, vector<208x128xf32>
    %123 = arith.addf %122, %121 : vector<208x128xf32>
    %c0_141 = arith.constant 0 : index
    %c0_142 = arith.constant 0 : index
    %124 = vector.load %arg13[%c0_141, %c0_142] : memref<208x128xf32, #tpu.memory_space<vmem>>, vector<208x128xf32>
    tpu.vector_store %arg13[%c0_141, %c0_142], %123 {strides = array<i32>} : memref<208x128xf32, #tpu.memory_space<vmem>>, vector<208x128xf32>,
    %c199_i32 = arith.constant 199 : i32
    %125 = tpu.dynamic_rotate %85 by %c199_i32 dim 0 : vector<208x128xf32>, i32 -> vector<208x128xf32>
    %c6_143 = arith.constant 6 : index
    %c0_144 = arith.constant 0 : index
    %c0_145 = arith.constant 0 : index
    %126 = vector.load %arg5[%c6_143, %c0_144, %c0_145] : memref<9x128x128xf32, #tpu.memory_space<vmem>>, vector<1x128x128xf32>
    %127 = vector.shape_cast %126 : vector<1x128x128xf32> to vector<128x128xf32>
    %cst_146 = arith.constant dense<0.000000e+00> : vector<208x128xf32>
    %128 = tpu.matmul %125, %127, %cst_146 {dimension_numbers = #tpu.dot_dimension_numbers<[1], [0], [0], [1], [0, 0, 1, 1], [], []>} : vector<208x128xf32>, vector<128x128xf32>, vector<208x128xf32> -> vector<208x128xf32>
    %c0_147 = arith.constant 0 : index
    %c0_148 = arith.constant 0 : index
    %129 = vector.load %arg13[%c0_147, %c0_148] : memref<208x128xf32, #tpu.memory_space<vmem>>, vector<208x128xf32>
    %130 = arith.addf %129, %128 : vector<208x128xf32>
    %c0_149 = arith.constant 0 : index
    %c0_150 = arith.constant 0 : index
    %131 = vector.load %arg13[%c0_149, %c0_150] : memref<208x128xf32, #tpu.memory_space<vmem>>, vector<208x128xf32>
    tpu.vector_store %arg13[%c0_149, %c0_150], %130 {strides = array<i32>} : memref<208x128xf32, #tpu.memory_space<vmem>>, vector<208x128xf32>,
    %c198_i32 = arith.constant 198 : i32
    %132 = tpu.dynamic_rotate %85 by %c198_i32 dim 0 : vector<208x128xf32>, i32 -> vector<208x128xf32>
    %c7_151 = arith.constant 7 : index
    %c0_152 = arith.constant 0 : index
    %c0_153 = arith.constant 0 : index
    %133 = vector.load %arg5[%c7_151, %c0_152, %c0_153] : memref<9x128x128xf32, #tpu.memory_space<vmem>>, vector<1x128x128xf32>
    %134 = vector.shape_cast %133 : vector<1x128x128xf32> to vector<128x128xf32>
    %cst_154 = arith.constant dense<0.000000e+00> : vector<208x128xf32>
    %135 = tpu.matmul %132, %134, %cst_154 {dimension_numbers = #tpu.dot_dimension_numbers<[1], [0], [0], [1], [0, 0, 1, 1], [], []>} : vector<208x128xf32>, vector<128x128xf32>, vector<208x128xf32> -> vector<208x128xf32>
    %c0_155 = arith.constant 0 : index
    %c0_156 = arith.constant 0 : index
    %136 = vector.load %arg13[%c0_155, %c0_156] : memref<208x128xf32, #tpu.memory_space<vmem>>, vector<208x128xf32>
    %137 = arith.addf %136, %135 : vector<208x128xf32>
    %c0_157 = arith.constant 0 : index
    %c0_158 = arith.constant 0 : index
    %138 = vector.load %arg13[%c0_157, %c0_158] : memref<208x128xf32, #tpu.memory_space<vmem>>, vector<208x128xf32>
    tpu.vector_store %arg13[%c0_157, %c0_158], %137 {strides = array<i32>} : memref<208x128xf32, #tpu.memory_space<vmem>>, vector<208x128xf32>,
    %c197_i32 = arith.constant 197 : i32
    %139 = tpu.dynamic_rotate %85 by %c197_i32 dim 0 : vector<208x128xf32>, i32 -> vector<208x128xf32>
    %c8_159 = arith.constant 8 : index
    %c0_160 = arith.constant 0 : index
    %c0_161 = arith.constant 0 : index
    %140 = vector.load %arg5[%c8_159, %c0_160, %c0_161] : memref<9x128x128xf32, #tpu.memory_space<vmem>>, vector<1x128x128xf32>
    %141 = vector.shape_cast %140 : vector<1x128x128xf32> to vector<128x128xf32>
    %cst_162 = arith.constant dense<0.000000e+00> : vector<208x128xf32>
    %142 = tpu.matmul %139, %141, %cst_162 {dimension_numbers = #tpu.dot_dimension_numbers<[1], [0], [0], [1], [0, 0, 1, 1], [], []>} : vector<208x128xf32>, vector<128x128xf32>, vector<208x128xf32> -> vector<208x128xf32>
    %c0_163 = arith.constant 0 : index
    %c0_164 = arith.constant 0 : index
    %143 = vector.load %arg13[%c0_163, %c0_164] : memref<208x128xf32, #tpu.memory_space<vmem>>, vector<208x128xf32>
    %144 = arith.addf %143, %142 : vector<208x128xf32>
    %c0_165 = arith.constant 0 : index
    %c0_166 = arith.constant 0 : index
    %145 = vector.load %arg13[%c0_165, %c0_166] : memref<208x128xf32, #tpu.memory_space<vmem>>, vector<208x128xf32>
    tpu.vector_store %arg13[%c0_165, %c0_166], %144 {strides = array<i32>} : memref<208x128xf32, #tpu.memory_space<vmem>>, vector<208x128xf32>,
    %c0_167 = arith.constant 0 : index
    %c0_168 = arith.constant 0 : index
    %146 = vector.load %arg13[%c0_167, %c0_168] : memref<208x128xf32, #tpu.memory_space<vmem>>, vector<208x128xf32>
    %c0_169 = arith.constant 0 : index
    %c0_170 = arith.constant 0 : index
    %147 = vector.load %arg6[%c0_169, %c0_170] : memref<1x128xf32, #tpu.memory_space<vmem>>, vector<1x128xf32>
    %148 = vector.broadcast %147 : vector<1x128xf32> to vector<208x128xf32>
    %149 = arith.mulf %146, %148 : vector<208x128xf32>
    %c0_171 = arith.constant 0 : index
    %c0_172 = arith.constant 0 : index
    %150 = vector.load %arg7[%c0_171, %c0_172] : memref<1x128xf32, #tpu.memory_space<vmem>>, vector<1x128xf32>
    %151 = vector.broadcast %150 : vector<1x128xf32> to vector<208x128xf32>
    %152 = arith.addf %149, %151 : vector<208x128xf32>
    %c11_i32_173 = arith.constant 11 : i32
    %153 = tpu.dynamic_rotate %37 by %c11_i32_173 dim 0 : vector<208x128xf32>, i32 -> vector<208x128xf32>
    %c0_174 = arith.constant 0 : index
    %c0_175 = arith.constant 0 : index
    %154 = vector.load %arg9[%c0_174, %c0_175] : memref<128x128xf32, #tpu.memory_space<vmem>>, vector<128x128xf32>
    %cst_176 = arith.constant dense<0.000000e+00> : vector<208x128xf32>
    %155 = tpu.matmul %153, %154, %cst_176 {dimension_numbers = #tpu.dot_dimension_numbers<[1], [0], [0], [1], [0, 0, 1, 1], [], []>} : vector<208x128xf32>, vector<128x128xf32>, vector<208x128xf32> -> vector<208x128xf32>
    %c0_177 = arith.constant 0 : index
    %c0_178 = arith.constant 0 : index
    %156 = vector.load %arg10[%c0_177, %c0_178] : memref<1x128xf32, #tpu.memory_space<vmem>>, vector<1x128xf32>
    %157 = vector.broadcast %156 : vector<1x128xf32> to vector<208x128xf32>
    %158 = arith.mulf %155, %157 : vector<208x128xf32>
    %c0_179 = arith.constant 0 : index
    %c0_180 = arith.constant 0 : index
    %159 = vector.load %arg11[%c0_179, %c0_180] : memref<1x128xf32, #tpu.memory_space<vmem>>, vector<1x128xf32>
    %160 = vector.broadcast %159 : vector<1x128xf32> to vector<208x128xf32>
    %161 = arith.addf %158, %160 : vector<208x128xf32>
    %162 = arith.addf %152, %161 : vector<208x128xf32>
    %cst_181 = arith.constant 0.000000e+00 : f32
    %163 = vector.broadcast %cst_181 : f32 to vector<208x128xf32>
    %164 = arith.maximumf %162, %163 : vector<208x128xf32>
    %165 = vector.shape_cast %164 : vector<208x128xf32> to vector<2x104x128xf32>
    %c0_182 = arith.constant 0 : index
    %c0_183 = arith.constant 0 : index
    %c0_184 = arith.constant 0 : index
    %166 = vector.load %arg12[%c0_182, %c0_183, %c0_184] : memref<2x104x128xf32, #tpu.memory_space<vmem>>, vector<2x104x128xf32>
    tpu.vector_store %arg12[%c0_182, %c0_183, %c0_184], %165 {strides = array<i32>} : memref<2x104x128xf32, #tpu.memory_space<vmem>>, vector<2x104x128xf32>,
    return
  }
  func.func @transform_0(%arg0: i32) -> (i32, i32, i32, i32) {
    %c0_i32 = arith.constant 0 : i32
    %c0_i32_0 = arith.constant 0 : i32
    %c0_i32_1 = arith.constant 0 : i32
    %c0_i32_2 = arith.constant 0 : i32
    return %c0_i32, %arg0, %c0_i32_0, %c0_i32_1 : i32, i32, i32, i32
  }
  func.func @transform_1(%arg0: i32) -> (i32, i32, i32) {
    %c0_i32 = arith.constant 0 : i32
    %c0_i32_0 = arith.constant 0 : i32
    %c0_i32_1 = arith.constant 0 : i32
    %c0_i32_2 = arith.constant 0 : i32
    return %c0_i32, %c0_i32_0, %c0_i32_1 : i32, i32, i32
  }
  func.func @transform_2(%arg0: i32) -> (i32, i32) {
    %c0_i32 = arith.constant 0 : i32
    %c0_i32_0 = arith.constant 0 : i32
    %c0_i32_1 = arith.constant 0 : i32
    return %c0_i32, %c0_i32_0 : i32, i32
  }
  func.func @transform_3(%arg0: i32) -> (i32, i32) {
    %c0_i32 = arith.constant 0 : i32
    %c0_i32_0 = arith.constant 0 : i32
    %c0_i32_1 = arith.constant 0 : i32
    return %c0_i32, %c0_i32_0 : i32, i32
  }
  func.func @transform_4(%arg0: i32) -> (i32, i32, i32) {
    %c0_i32 = arith.constant 0 : i32
    %c0_i32_0 = arith.constant 0 : i32
    %c0_i32_1 = arith.constant 0 : i32
    %c0_i32_2 = arith.constant 0 : i32
    return %c0_i32, %c0_i32_0, %c0_i32_1 : i32, i32, i32
  }
  func.func @transform_5(%arg0: i32) -> (i32, i32) {
    %c0_i32 = arith.constant 0 : i32
    %c0_i32_0 = arith.constant 0 : i32
    %c0_i32_1 = arith.constant 0 : i32
    return %c0_i32, %c0_i32_0 : i32, i32
  }
  func.func @transform_6(%arg0: i32) -> (i32, i32) {
    %c0_i32 = arith.constant 0 : i32
    %c0_i32_0 = arith.constant 0 : i32
    %c0_i32_1 = arith.constant 0 : i32
    return %c0_i32, %c0_i32_0 : i32, i32
  }
  func.func @transform_7(%arg0: i32) -> (i32, i32) {
    %c0_i32 = arith.constant 0 : i32
    %c0_i32_0 = arith.constant 0 : i32
    %c0_i32_1 = arith.constant 0 : i32
    return %c0_i32, %c0_i32_0 : i32, i32
  }
  func.func @transform_8(%arg0: i32) -> (i32, i32) {
    %c0_i32 = arith.constant 0 : i32
    %c0_i32_0 = arith.constant 0 : i32
    %c0_i32_1 = arith.constant 0 : i32
    return %c0_i32, %c0_i32_0 : i32, i32
  }
  func.func @transform_9(%arg0: i32) -> (i32, i32) {
    %c0_i32 = arith.constant 0 : i32
    %c0_i32_0 = arith.constant 0 : i32
    %c0_i32_1 = arith.constant 0 : i32
    return %c0_i32, %c0_i32_0 : i32, i32
  }
  func.func @transform_10(%arg0: i32) -> (i32, i32) {
    %c0_i32 = arith.constant 0 : i32
    %c0_i32_0 = arith.constant 0 : i32
    %c0_i32_1 = arith.constant 0 : i32
    return %c0_i32, %c0_i32_0 : i32, i32
  }
  func.func @transform_11(%arg0: i32) -> (i32, i32, i32) {
    %c0_i32 = arith.constant 0 : i32
    %c0_i32_0 = arith.constant 0 : i32
    %c0_i32_1 = arith.constant 0 : i32
    return %arg0, %c0_i32, %c0_i32_0 : i32, i32, i32
  }
}

</mosaic_0001>

<llo_original>
// kernel: basic_block_forward.1
$region0: #{basic_block_forward.1}
  #allocation0 [shape = 'u32[]', space=smem, size = 0x4, offset = 0x4, fixed_abs, tag = 'smem constant byte address 0x4 - core index']
  #allocation1 [shape = 'u32[72,128]{1,0:T(1,128)}', space=vmem, size = 0x9000, scoped, tag = 'internal scratch']
  #allocation2 [shape = 'f32[208,128]{1,0:T(8,128)}', space=vmem, size = 0x1a000, scoped, tag = 'scratch operand']
  #allocation3 [shape = 'f32[208,128]{1,0:T(8,128)}', space=vmem, size = 0x1a000, scoped, tag = 'scratch operand']
  %s0 = inlined_call_operand.vmem [shape: f32[4,2,104,128], index: 0, kind: input, shape index: {}]
  %s1 = inlined_call_operand.vmem [shape: f32[9,128,128], index: 1, kind: input, shape index: {}]
  %s2 = inlined_call_operand.vmem [shape: f32[1,128], index: 2, kind: input, shape index: {}]
  %s3 = inlined_call_operand.vmem [shape: f32[1,128], index: 3, kind: input, shape index: {}]
  %s4 = inlined_call_operand.vmem [shape: f32[9,128,128], index: 4, kind: input, shape index: {}]
  %s5 = inlined_call_operand.vmem [shape: f32[1,128], index: 5, kind: input, shape index: {}]
  %s6 = inlined_call_operand.vmem [shape: f32[1,128], index: 6, kind: input, shape index: {}]
  %s7 = inlined_call_operand.vmem [shape: f32[208,1], index: 7, kind: input, shape index: {}]
  %s8 = inlined_call_operand.vmem [shape: f32[128,128], index: 8, kind: input, shape index: {}]
  %s9 = inlined_call_operand.vmem [shape: f32[1,128], index: 9, kind: input, shape index: {}]
  %s10 = inlined_call_operand.vmem [shape: f32[1,128], index: 10, kind: input, shape index: {}]
  %s11 = inlined_call_operand.vmem [shape: f32[2,104,128], index: 11, kind: output, shape index: {}]
  %s12 = sld [smem:[#allocation0]]
  $region54: #{basic_block_forward.1} parent=0
    _
  %s14 = ssub.s32 1, %s12
  %s15 = scalar_select 0, %s14, %s12
  // Predicated region
  $region2: #{basic_block_forward.1} parent=0 // pred_check
    _
  $region3: #{basic_block_forward.1} parent=0 // pred_check_branch
    %17 = sbr.rel (0) target = $region5
  $region4: #{basic_block_forward.1} parent=0 // pred_region
    _
  $region5: #{basic_block_forward.1} parent=0 // pred_fallthru
    _
  // Predicated region
  $region6: #{basic_block_forward.1} parent=0 // pred_check
    _
  $region7: #{basic_block_forward.1} parent=0 // pred_check_branch
    %19 = sbr.rel (0) target = $region9
  $region8: #{basic_block_forward.1} parent=0 // pred_region
    _
  $region9: #{basic_block_forward.1} parent=0 // pred_fallthru
    _
  // Predicated region
  $region10: #{basic_block_forward.1} parent=0 // pred_check
    _
  $region11: #{basic_block_forward.1} parent=0 // pred_check_branch
    %21 = sbr.rel (0) target = $region13
  $region12: #{basic_block_forward.1} parent=0 // pred_region
    _
  $region13: #{basic_block_forward.1} parent=0 // pred_fallthru
    _
  // Predicated region
  $region14: #{basic_block_forward.1} parent=0 // pred_check
    _
  $region15: #{basic_block_forward.1} parent=0 // pred_check_branch
    %23 = sbr.rel (0) target = $region17
  $region16: #{basic_block_forward.1} parent=0 // pred_region
    _
  $region17: #{basic_block_forward.1} parent=0 // pred_fallthru
    _
  // Predicated region
  $region18: #{basic_block_forward.1} parent=0 // pred_check
    _
  $region19: #{basic_block_forward.1} parent=0 // pred_check_branch
    %25 = sbr.rel (0) target = $region21
  $region20: #{basic_block_forward.1} parent=0 // pred_region
    _
  $region21: #{basic_block_forward.1} parent=0 // pred_fallthru
    _
  // Predicated region
  $region22: #{basic_block_forward.1} parent=0 // pred_check
    _
  $region23: #{basic_block_forward.1} parent=0 // pred_check_branch
    %27 = sbr.rel (0) target = $region25
  $region24: #{basic_block_forward.1} parent=0 // pred_region
    _
  $region25: #{basic_block_forward.1} parent=0 // pred_fallthru
    _
  // Predicated region
  $region26: #{basic_block_forward.1} parent=0 // pred_check
    _
  $region27: #{basic_block_forward.1} parent=0 // pred_check_branch
    %29 = sbr.rel (0) target = $region29
  $region28: #{basic_block_forward.1} parent=0 // pred_region
    _
  $region29: #{basic_block_forward.1} parent=0 // pred_fallthru
    _
  // Predicated region
  $region30: #{basic_block_forward.1} parent=0 // pred_check
    _
  $region31: #{basic_block_forward.1} parent=0 // pred_check_branch
    %31 = sbr.rel (0) target = $region33
  $region32: #{basic_block_forward.1} parent=0 // pred_region
    _
  $region33: #{basic_block_forward.1} parent=0 // pred_fallthru
    _
  // Predicated region
  $region34: #{basic_block_forward.1} parent=0 // pred_check
    _
  $region35: #{basic_block_forward.1} parent=0 // pred_check_branch
    %33 = sbr.rel (0) target = $region37
  $region36: #{basic_block_forward.1} parent=0 // pred_region
    _
  $region37: #{basic_block_forward.1} parent=0 // pred_fallthru
    _
  // Predicated region
  $region38: #{basic_block_forward.1} parent=0 // pred_check
    _
  $region39: #{basic_block_forward.1} parent=0 // pred_check_branch
    %35 = sbr.rel (0) target = $region41
  $region40: #{basic_block_forward.1} parent=0 // pred_region
    _
  $region41: #{basic_block_forward.1} parent=0 // pred_fallthru
    _
  // Predicated region
  $region42: #{basic_block_forward.1} parent=0 // pred_check
    _
  $region43: #{basic_block_forward.1} parent=0 // pred_check_branch
    %37 = sbr.rel (0) target = $region45
  $region44: #{basic_block_forward.1} parent=0 // pred_region
    _
  $region45: #{basic_block_forward.1} parent=0 // pred_fallthru
    _
  %v38 = vld [vmem:[%s0] sm:$0xff]
  %v39 = vld [vmem:[%s0 + $0x8] sm:$0xff]
  %v40 = vld [vmem:[%s0 + $0x10] sm:$0xff]
  %v41 = vld [vmem:[%s0 + $0x18] sm:$0xff]
  %v42 = vld [vmem:[%s0 + $0x20] sm:$0xff]
  %v43 = vld [vmem:[%s0 + $0x28] sm:$0xff]
  %v44 = vld [vmem:[%s0 + $0x30] sm:$0xff]
  %v45 = vld [vmem:[%s0 + $0x38] sm:$0xff]
  %v46 = vld [vmem:[%s0 + $0x40] sm:$0xff]
  %v47 = vld [vmem:[%s0 + $0x48] sm:$0xff]
  %v48 = vld [vmem:[%s0 + $0x50] sm:$0xff]
  %v49 = vld [vmem:[%s0 + $0x58] sm:$0xff]
  %v50 = vld [vmem:[%s0 + $0x60] sm:$0xff]
  %v51 = vld [vmem:[%s0 + $0x68] sm:$0xff]
  %v52 = vld [vmem:[%s0 + $0x70] sm:$0xff]
  %v53 = vld [vmem:[%s0 + $0x78] sm:$0xff]
  %v54 = vld [vmem:[%s0 + $0x80] sm:$0xff]
  %v55 = vld [vmem:[%s0 + $0x88] sm:$0xff]
  %v56 = vld [vmem:[%s0 + $0x90] sm:$0xff]
  %v57 = vld [vmem:[%s0 + $0x98] sm:$0xff]
  %v58 = vld [vmem:[%s0 + $0xa0] sm:$0xff]
  %v59 = vld [vmem:[%s0 + $0xa8] sm:$0xff]
  %v60 = vld [vmem:[%s0 + $0xb0] sm:$0xff]
  %v61 = vld [vmem:[%s0 + $0xb8] sm:$0xff]
  %v62 = vld [vmem:[%s0 + $0xc0] sm:$0xff]
  %v63 = vld [vmem:[%s0 + $0xc8] sm:$0xff]
  %v64 = vrot.slane %v38, 5
  %v65 = vrot.slane %v39, 5
  %v66 = vrot.slane %v40, 5
  %v67 = vrot.slane %v41, 5
  %v68 = vrot.slane %v42, 5
  %v69 = vrot.slane %v43, 5
  %v70 = vrot.slane %v44, 5
  %v71 = vrot.slane %v45, 5
  %v72 = vrot.slane %v46, 5
  %v73 = vrot.slane %v47, 5
  %v74 = vrot.slane %v48, 5
  %v75 = vrot.slane %v49, 5
  %v76 = vrot.slane %v50, 5
  %v77 = vrot.slane %v51, 5
  %v78 = vrot.slane %v52, 5
  %v79 = vrot.slane %v53, 5
  %v80 = vrot.slane %v54, 5
  %v81 = vrot.slane %v55, 5
  %v82 = vrot.slane %v56, 5
  %v83 = vrot.slane %v57, 5
  %v84 = vrot.slane %v58, 5
  %v85 = vrot.slane %v59, 5
  %v86 = vrot.slane %v60, 5
  %v87 = vrot.slane %v61, 5
  %v88 = vrot.slane %v62, 5
  %v89 = vrot.slane %v63, 5
  %v90 = vlaneseq
  %v91 = vshrl.u32 %v90, 7
  %vm92 = vcmp.lt.s32.totalorder %v91, 3
  %v93 = vsel %vm92, %v88, %v89
  %v94 = vsel %vm92, %v87, %v88
  %v95 = vsel %vm92, %v86, %v87
  %v96 = vsel %vm92, %v85, %v86
  %v97 = vsel %vm92, %v84, %v85
  %v98 = vsel %vm92, %v83, %v84
  %v99 = vsel %vm92, %v82, %v83
  %v100 = vsel %vm92, %v81, %v82
  %v101 = vsel %vm92, %v80, %v81
  %v102 = vsel %vm92, %v79, %v80
  %v103 = vsel %vm92, %v78, %v79
  %v104 = vsel %vm92, %v77, %v78
  %v105 = vsel %vm92, %v76, %v77
  %v106 = vsel %vm92, %v75, %v76
  %v107 = vsel %vm92, %v74, %v75
  %v108 = vsel %vm92, %v73, %v74
  %v109 = vsel %vm92, %v72, %v73
  %v110 = vsel %vm92, %v71, %v72
  %v111 = vsel %vm92, %v70, %v71
  %v112 = vsel %vm92, %v69, %v70
  %v113 = vsel %vm92, %v68, %v69
  %v114 = vsel %vm92, %v67, %v68
  %v115 = vsel %vm92, %v66, %v67
  %v116 = vsel %vm92, %v65, %v66
  %v117 = vsel %vm92, %v64, %v65
  %v118 = vsel %vm92, %v89, %v64
  %v119 = vld [vmem:[%s1] sm:$0xff]
  %v120 = vld [vmem:[%s1 + $0x8] sm:$0xff]
  %v121 = vld [vmem:[%s1 + $0x10] sm:$0xff]
  %v122 = vld [vmem:[%s1 + $0x18] sm:$0xff]
  %v123 = vld [vmem:[%s1 + $0x20] sm:$0xff]
  %v124 = vld [vmem:[%s1 + $0x28] sm:$0xff]
  %v125 = vld [vmem:[%s1 + $0x30] sm:$0xff]
  %v126 = vld [vmem:[%s1 + $0x38] sm:$0xff]
  %v127 = vld [vmem:[%s1 + $0x40] sm:$0xff]
  %v128 = vld [vmem:[%s1 + $0x48] sm:$0xff]
  %v129 = vld [vmem:[%s1 + $0x50] sm:$0xff]
  %v130 = vld [vmem:[%s1 + $0x58] sm:$0xff]
  %v131 = vld [vmem:[%s1 + $0x60] sm:$0xff]
  %v132 = vld [vmem:[%s1 + $0x68] sm:$0xff]
  %v133 = vld [vmem:[%s1 + $0x70] sm:$0xff]
  %v134 = vld [vmem:[%s1 + $0x78] sm:$0xff]
  %135 = vmatpush.msra.mxu0 %v134
  %136 = vmatpush.msra.mxu0 %v133
  %137 = vmatpush.msra.mxu0 %v132
  %138 = vmatpush.msra.mxu0 %v131
  %139 = vmatpush.msra.mxu0 %v130
  %140 = vmatpush.msra.mxu0 %v129
  %141 = vmatpush.msra.mxu0 %v128
  %142 = vmatpush.msra.mxu0 %v127
  %143 = vmatpush.msra.mxu0 %v126
  %144 = vmatpush.msra.mxu0 %v125
  %145 = vmatpush.msra.mxu0 %v124
  %146 = vmatpush.msra.mxu0 %v123
  %147 = vmatpush.msra.mxu0 %v122
  %148 = vmatpush.msra.mxu0 %v121
  %149 = vmatpush.msra.mxu0 %v120
  %150 = vmatpush.msra.mxu0 %v119
  %151 = vmatmul.f32.gmra.mxu0 %v93
  %v152 = vpop.f32.mrf.mxu0
  %v153 = vadd.f32 0.0, %v152
  %154 = vmatmul.f32.gmra.mxu0 %v118
  %v155 = vpop.f32.mrf.mxu0
  %v156 = vadd.f32 0.0, %v155
  %157 = vmatmul.f32.gmra.mxu0 %v117
  %v158 = vpop.f32.mrf.mxu0
  %v159 = vadd.f32 0.0, %v158
  %160 = vmatmul.f32.gmra.mxu0 %v116
  %v161 = vpop.f32.mrf.mxu0
  %v162 = vadd.f32 0.0, %v161
  %163 = vmatmul.f32.gmra.mxu0 %v115
  %v164 = vpop.f32.mrf.mxu0
  %v165 = vadd.f32 0.0, %v164
  %166 = vmatmul.f32.gmra.mxu0 %v114
  %v167 = vpop.f32.mrf.mxu0
  %v168 = vadd.f32 0.0, %v167
  %169 = vmatmul.f32.gmra.mxu0 %v113
  %v170 = vpop.f32.mrf.mxu0
  %v171 = vadd.f32 0.0, %v170
  %172 = vmatmul.f32.gmra.mxu0 %v112
  %v173 = vpop.f32.mrf.mxu0
  %v174 = vadd.f32 0.0, %v173
  %175 = vmatmul.f32.gmra.mxu0 %v111
  %v176 = vpop.f32.mrf.mxu0
  %v177 = vadd.f32 0.0, %v176
  %178 = vmatmul.f32.gmra.mxu0 %v110
  %v179 = vpop.f32.mrf.mxu0
  %v180 = vadd.f32 0.0, %v179
  %181 = vmatmul.f32.gmra.mxu0 %v109
  %v182 = vpop.f32.mrf.mxu0
  %v183 = vadd.f32 0.0, %v182
  %184 = vmatmul.f32.gmra.mxu0 %v108
  %v185 = vpop.f32.mrf.mxu0
  %v186 = vadd.f32 0.0, %v185
  %187 = vmatmul.f32.gmra.mxu0 %v107
  %v188 = vpop.f32.mrf.mxu0
  %v189 = vadd.f32 0.0, %v188
  %190 = vmatmul.f32.gmra.mxu0 %v106
  %v191 = vpop.f32.mrf.mxu0
  %v192 = vadd.f32 0.0, %v191
  %193 = vmatmul.f32.gmra.mxu0 %v105
  %v194 = vpop.f32.mrf.mxu0
  %v195 = vadd.f32 0.0, %v194
  %196 = vmatmul.f32.gmra.mxu0 %v104
  %v197 = vpop.f32.mrf.mxu0
  %v198 = vadd.f32 0.0, %v197
  %199 = vmatmul.f32.gmra.mxu0 %v103
  %v200 = vpop.f32.mrf.mxu0
  %v201 = vadd.f32 0.0, %v200
  %202 = vmatmul.f32.gmra.mxu0 %v102
  %v203 = vpop.f32.mrf.mxu0
  %v204 = vadd.f32 0.0, %v203
  %205 = vmatmul.f32.gmra.mxu0 %v101
  %v206 = vpop.f32.mrf.mxu0
  %v207 = vadd.f32 0.0, %v206
  %208 = vmatmul.f32.gmra.mxu0 %v100
  %v209 = vpop.f32.mrf.mxu0
  %v210 = vadd.f32 0.0, %v209
  %211 = vmatmul.f32.gmra.mxu0 %v99
  %v212 = vpop.f32.mrf.mxu0
  %v213 = vadd.f32 0.0, %v212
  %214 = vmatmul.f32.gmra.mxu0 %v98
  %v215 = vpop.f32.mrf.mxu0
  %v216 = vadd.f32 0.0, %v215
  %217 = vmatmul.f32.gmra.mxu0 %v97
  %v218 = vpop.f32.mrf.mxu0
  %v219 = vadd.f32 0.0, %v218
  %220 = vmatmul.f32.gmra.mxu0 %v96
  %v221 = vpop.f32.mrf.mxu0
  %v222 = vadd.f32 0.0, %v221
  %223 = vmatmul.f32.gmra.mxu0 %v95
  %v224 = vpop.f32.mrf.mxu0
  %v225 = vadd.f32 0.0, %v224
  %226 = vmatmul.f32.gmra.mxu0 %v94
  %v227 = vpop.f32.mrf.mxu0
  %v228 = vadd.f32 0.0, %v227
  %229 = vdwg.mxu0
  %230 = vst [vmem:[#allocation2] sm:$0xff] %v153
  %231 = vst [vmem:[#allocation2 + $0x8] sm:$0xff] %v156
  %232 = vst [vmem:[#allocation2 + $0x10] sm:$0xff] %v159
  %233 = vst [vmem:[#allocation2 + $0x18] sm:$0xff] %v162
  %234 = vst [vmem:[#allocation2 + $0x20] sm:$0xff] %v165
  %235 = vst [vmem:[#allocation2 + $0x28] sm:$0xff] %v168
  %236 = vst [vmem:[#allocation2 + $0x30] sm:$0xff] %v171
  %237 = vst [vmem:[#allocation2 + $0x38] sm:$0xff] %v174
  %238 = vst [vmem:[#allocation2 + $0x40] sm:$0xff] %v177
  %239 = vst [vmem:[#allocation2 + $0x48] sm:$0xff] %v180
  %240 = vst [vmem:[#allocation2 + $0x50] sm:$0xff] %v183
  %241 = vst [vmem:[#allocation2 + $0x58] sm:$0xff] %v186
  %242 = vst [vmem:[#allocation2 + $0x60] sm:$0xff] %v189
  %243 = vst [vmem:[#allocation2 + $0x68] sm:$0xff] %v192
  %244 = vst [vmem:[#allocation2 + $0x70] sm:$0xff] %v195
  %245 = vst [vmem:[#allocation2 + $0x78] sm:$0xff] %v198
  %246 = vst [vmem:[#allocation2 + $0x80] sm:$0xff] %v201
  %247 = vst [vmem:[#allocation2 + $0x88] sm:$0xff] %v204
  %248 = vst [vmem:[#allocation2 + $0x90] sm:$0xff] %v207
  %249 = vst [vmem:[#allocation2 + $0x98] sm:$0xff] %v210
  %250 = vst [vmem:[#allocation2 + $0xa0] sm:$0xff] %v213
  %251 = vst [vmem:[#allocation2 + $0xa8] sm:$0xff] %v216
  %252 = vst [vmem:[#allocation2 + $0xb0] sm:$0xff] %v219
  %253 = vst [vmem:[#allocation2 + $0xb8] sm:$0xff] %v222
  %254 = vst [vmem:[#allocation2 + $0xc0] sm:$0xff] %v225
  %255 = vst [vmem:[#allocation2 + $0xc8] sm:$0xff] %v228
  %s256 = scalar_lea.vmem %s0, 208
  %v257 = vld [vmem:[%s256] sm:$0xff]
  %v258 = vld [vmem:[%s256 + $0x8] sm:$0xff]
  %v259 = vld [vmem:[%s256 + $0x10] sm:$0xff]
  %v260 = vld [vmem:[%s256 + $0x18] sm:$0xff]
  %v261 = vld [vmem:[%s256 + $0x20] sm:$0xff]
  %v262 = vld [vmem:[%s256 + $0x28] sm:$0xff]
  %v263 = vld [vmem:[%s256 + $0x30] sm:$0xff]
  %v264 = vld [vmem:[%s256 + $0x38] sm:$0xff]
  %v265 = vld [vmem:[%s256 + $0x40] sm:$0xff]
  %v266 = vld [vmem:[%s256 + $0x48] sm:$0xff]
  %v267 = vld [vmem:[%s256 + $0x50] sm:$0xff]
  %v268 = vld [vmem:[%s256 + $0x58] sm:$0xff]
  %v269 = vld [vmem:[%s256 + $0x60] sm:$0xff]
  %v270 = vld [vmem:[%s256 + $0x68] sm:$0xff]
  %v271 = vld [vmem:[%s256 + $0x70] sm:$0xff]
  %v272 = vld [vmem:[%s256 + $0x78] sm:$0xff]
  %v273 = vld [vmem:[%s256 + $0x80] sm:$0xff]
  %v274 = vld [vmem:[%s256 + $0x88] sm:$0xff]
  %v275 = vld [vmem:[%s256 + $0x90] sm:$0xff]
  %v276 = vld [vmem:[%s256 + $0x98] sm:$0xff]
  %v277 = vld [vmem:[%s256 + $0xa0] sm:$0xff]
  %v278 = vld [vmem:[%s256 + $0xa8] sm:$0xff]
  %v279 = vld [vmem:[%s256 + $0xb0] sm:$0xff]
  %v280 = vld [vmem:[%s256 + $0xb8] sm:$0xff]
  %v281 = vld [vmem:[%s256 + $0xc0] sm:$0xff]
  %v282 = vld [vmem:[%s256 + $0xc8] sm:$0xff]
  %v283 = vrot.slane %v257, 5
  %v284 = vrot.slane %v258, 5
  %v285 = vrot.slane %v259, 5
  %v286 = vrot.slane %v260, 5
  %v287 = vrot.slane %v261, 5
  %v288 = vrot.slane %v262, 5
  %v289 = vrot.slane %v263, 5
  %v290 = vrot.slane %v264, 5
  %v291 = vrot.slane %v265, 5
  %v292 = vrot.slane %v266, 5
  %v293 = vrot.slane %v267, 5
  %v294 = vrot.slane %v268, 5
  %v295 = vrot.slane %v269, 5
  %v296 = vrot.slane %v270, 5
  %v297 = vrot.slane %v271, 5
  %v298 = vrot.slane %v272, 5
  %v299 = vrot.slane %v273, 5
  %v300 = vrot.slane %v274, 5
  %v301 = vrot.slane %v275, 5
  %v302 = vrot.slane %v276, 5
  %v303 = vrot.slane %v277, 5
  %v304 = vrot.slane %v278, 5
  %v305 = vrot.slane %v279, 5
  %v306 = vrot.slane %v280, 5
  %v307 = vrot.slane %v281, 5
  %v308 = vrot.slane %v282, 5
  %v309 = vsel %vm92, %v307, %v308
  %v310 = vsel %vm92, %v306, %v307
  %v311 = vsel %vm92, %v305, %v306
  %v312 = vsel %vm92, %v304, %v305
  %v313 = vsel %vm92, %v303, %v304
  %v314 = vsel %vm92, %v302, %v303
  %v315 = vsel %vm92, %v301, %v302
  %v316 = vsel %vm92, %v300, %v301
  %v317 = vsel %vm92, %v299, %v300
  %v318 = vsel %vm92, %v298, %v299
  %v319 = vsel %vm92, %v297, %v298
  %v320 = vsel %vm92, %v296, %v297
  %v321 = vsel %vm92, %v295, %v296
  %v322 = vsel %vm92, %v294, %v295
  %v323 = vsel %vm92, %v293, %v294
  %v324 = vsel %vm92, %v292, %v293
  %v325 = vsel %vm92, %v291, %v292
  %v326 = vsel %vm92, %v290, %v291
  %v327 = vsel %vm92, %v289, %v290
  %v328 = vsel %vm92, %v288, %v289
  %v329 = vsel %vm92, %v287, %v288
  %v330 = vsel %vm92, %v286, %v287
  %v331 = vsel %vm92, %v285, %v286
  %v332 = vsel %vm92, %v284, %v285
  %v333 = vsel %vm92, %v283, %v284
  %v334 = vsel %vm92, %v308, %v283
  %s335 = scalar_lea.vmem %s1, 128
  %v336 = vld [vmem:[%s335] sm:$0xff]
  %v337 = vld [vmem:[%s335 + $0x8] sm:$0xff]
  %v338 = vld [vmem:[%s335 + $0x10] sm:$0xff]
  %v339 = vld [vmem:[%s335 + $0x18] sm:$0xff]
  %v340 = vld [vmem:[%s335 + $0x20] sm:$0xff]
  %v341 = vld [vmem:[%s335 + $0x28] sm:$0xff]
  %v342 = vld [vmem:[%s335 + $0x30] sm:$0xff]
  %v343 = vld [vmem:[%s335 + $0x38] sm:$0xff]
  %v344 = vld [vmem:[%s335 + $0x40] sm:$0xff]
  %v345 = vld [vmem:[%s335 + $0x48] sm:$0xff]
  %v346 = vld [vmem:[%s335 + $0x50] sm:$0xff]
  %v347 = vld [vmem:[%s335 + $0x58] sm:$0xff]
  %v348 = vld [vmem:[%s335 + $0x60] sm:$0xff]
  %v349 = vld [vmem:[%s335 + $0x68] sm:$0xff]
  %v350 = vld [vmem:[%s335 + $0x70] sm:$0xff]
  %v351 = vld [vmem:[%s335 + $0x78] sm:$0xff]
  %352 = vmatpush.msra.mxu0 %v351
  %353 = vmatpush.msra.mxu0 %v350
  %354 = vmatpush.msra.mxu0 %v349
  %355 = vmatpush.msra.mxu0 %v348
  %356 = vmatpush.msra.mxu0 %v347
  %357 = vmatpush.msra.mxu0 %v346
  %358 = vmatpush.msra.mxu0 %v345
  %359 = vmatpush.msra.mxu0 %v344
  %360 = vmatpush.msra.mxu0 %v343
  %361 = vmatpush.msra.mxu0 %v342
  %362 = vmatpush.msra.mxu0 %v341
  %363 = vmatpush.msra.mxu0 %v340
  %364 = vmatpush.msra.mxu0 %v339
  %365 = vmatpush.msra.mxu0 %v338
  %366 = vmatpush.msra.mxu0 %v337
  %367 = vmatpush.msra.mxu0 %v336
  %368 = vmatmul.f32.gmra.mxu0 %v309
  %v369 = vpop.f32.mrf.mxu0
  %v370 = vadd.f32 0.0, %v369
  %371 = vmatmul.f32.gmra.mxu0 %v334
  %v372 = vpop.f32.mrf.mxu0
  %v373 = vadd.f32 0.0, %v372
  %374 = vmatmul.f32.gmra.mxu0 %v333
  %v375 = vpop.f32.mrf.mxu0
  %v376 = vadd.f32 0.0, %v375
  %377 = vmatmul.f32.gmra.mxu0 %v332
  %v378 = vpop.f32.mrf.mxu0
  %v379 = vadd.f32 0.0, %v378
  %380 = vmatmul.f32.gmra.mxu0 %v331
  %v381 = vpop.f32.mrf.mxu0
  %v382 = vadd.f32 0.0, %v381
  %383 = vmatmul.f32.gmra.mxu0 %v330
  %v384 = vpop.f32.mrf.mxu0
  %v385 = vadd.f32 0.0, %v384
  %386 = vmatmul.f32.gmra.mxu0 %v329
  %v387 = vpop.f32.mrf.mxu0
  %v388 = vadd.f32 0.0, %v387
  %389 = vmatmul.f32.gmra.mxu0 %v328
  %v390 = vpop.f32.mrf.mxu0
  %v391 = vadd.f32 0.0, %v390
  %392 = vmatmul.f32.gmra.mxu0 %v327
  %v393 = vpop.f32.mrf.mxu0
  %v394 = vadd.f32 0.0, %v393
  %395 = vmatmul.f32.gmra.mxu0 %v326
  %v396 = vpop.f32.mrf.mxu0
  %v397 = vadd.f32 0.0, %v396
  %398 = vmatmul.f32.gmra.mxu0 %v325
  %v399 = vpop.f32.mrf.mxu0
  %v400 = vadd.f32 0.0, %v399
  %401 = vmatmul.f32.gmra.mxu0 %v324
  %v402 = vpop.f32.mrf.mxu0
  %v403 = vadd.f32 0.0, %v402
  %404 = vmatmul.f32.gmra.mxu0 %v323
  %v405 = vpop.f32.mrf.mxu0
  %v406 = vadd.f32 0.0, %v405
  %407 = vmatmul.f32.gmra.mxu0 %v322
  %v408 = vpop.f32.mrf.mxu0
  %v409 = vadd.f32 0.0, %v408
  %410 = vmatmul.f32.gmra.mxu0 %v321
  %v411 = vpop.f32.mrf.mxu0
  %v412 = vadd.f32 0.0, %v411
  %413 = vmatmul.f32.gmra.mxu0 %v320
  %v414 = vpop.f32.mrf.mxu0
  %v415 = vadd.f32 0.0, %v414
  %416 = vmatmul.f32.gmra.mxu0 %v319
  %v417 = vpop.f32.mrf.mxu0
  %v418 = vadd.f32 0.0, %v417
  %419 = vmatmul.f32.gmra.mxu0 %v318
  %v420 = vpop.f32.mrf.mxu0
  %v421 = vadd.f32 0.0, %v420
  %422 = vmatmul.f32.gmra.mxu0 %v317
  %v423 = vpop.f32.mrf.mxu0
  %v424 = vadd.f32 0.0, %v423
  %425 = vmatmul.f32.gmra.mxu0 %v316
  %v426 = vpop.f32.mrf.mxu0
  %v427 = vadd.f32 0.0, %v426
  %428 = vmatmul.f32.gmra.mxu0 %v315
  %v429 = vpop.f32.mrf.mxu0
  %v430 = vadd.f32 0.0, %v429
  %431 = vmatmul.f32.gmra.mxu0 %v314
  %v432 = vpop.f32.mrf.mxu0
  %v433 = vadd.f32 0.0, %v432
  %434 = vmatmul.f32.gmra.mxu0 %v313
  %v435 = vpop.f32.mrf.mxu0
  %v436 = vadd.f32 0.0, %v435
  %437 = vmatmul.f32.gmra.mxu0 %v312
  %v438 = vpop.f32.mrf.mxu0
  %v439 = vadd.f32 0.0, %v438
  %440 = vmatmul.f32.gmra.mxu0 %v311
  %v441 = vpop.f32.mrf.mxu0
  %v442 = vadd.f32 0.0, %v441
  %443 = vmatmul.f32.gmra.mxu0 %v310
  %v444 = vpop.f32.mrf.mxu0
  %v445 = vadd.f32 0.0, %v444
  %446 = vdwg.mxu0
  %v447 = vld [vmem:[#allocation2] sm:$0xff]
  %v448 = vld [vmem:[#allocation2 + $0x8] sm:$0xff]
  %v449 = vld [vmem:[#allocation2 + $0x10] sm:$0xff]
  %v450 = vld [vmem:[#allocation2 + $0x18] sm:$0xff]
  %v451 = vld [vmem:[#allocation2 + $0x20] sm:$0xff]
  %v452 = vld [vmem:[#allocation2 + $0x28] sm:$0xff]
  %v453 = vld [vmem:[#allocation2 + $0x30] sm:$0xff]
  %v454 = vld [vmem:[#allocation2 + $0x38] sm:$0xff]
  %v455 = vld [vmem:[#allocation2 + $0x40] sm:$0xff]
  %v456 = vld [vmem:[#allocation2 + $0x48] sm:$0xff]
  %v457 = vld [vmem:[#allocation2 + $0x50] sm:$0xff]
  %v458 = vld [vmem:[#allocation2 + $0x58] sm:$0xff]
  %v459 = vld [vmem:[#allocation2 + $0x60] sm:$0xff]
  %v460 = vld [vmem:[#allocation2 + $0x68] sm:$0xff]
  %v461 = vld [vmem:[#allocation2 + $0x70] sm:$0xff]
  %v462 = vld [vmem:[#allocation2 + $0x78] sm:$0xff]
  %v463 = vld [vmem:[#allocation2 + $0x80] sm:$0xff]
  %v464 = vld [vmem:[#allocation2 + $0x88] sm:$0xff]
  %v465 = vld [vmem:[#allocation2 + $0x90] sm:$0xff]
  %v466 = vld [vmem:[#allocation2 + $0x98] sm:$0xff]
  %v467 = vld [vmem:[#allocation2 + $0xa0] sm:$0xff]
  %v468 = vld [vmem:[#allocation2 + $0xa8] sm:$0xff]
  %v469 = vld [vmem:[#allocation2 + $0xb0] sm:$0xff]
  %v470 = vld [vmem:[#allocation2 + $0xb8] sm:$0xff]
  %v471 = vld [vmem:[#allocation2 + $0xc0] sm:$0xff]
  %v472 = vld [vmem:[#allocation2 + $0xc8] sm:$0xff]
  %v473 = vadd.f32 %v447, %v370
  %v474 = vadd.f32 %v448, %v373
  %v475 = vadd.f32 %v449, %v376
  %v476 = vadd.f32 %v450, %v379
  %v477 = vadd.f32 %v451, %v382
  %v478 = vadd.f32 %v452, %v385
  %v479 = vadd.f32 %v453, %v388
  %v480 = vadd.f32 %v454, %v391
  %v481 = vadd.f32 %v455, %v394
  %v482 = vadd.f32 %v456, %v397
  %v483 = vadd.f32 %v457, %v400
  %v484 = vadd.f32 %v458, %v403
  %v485 = vadd.f32 %v459, %v406
  %v486 = vadd.f32 %v460, %v409
  %v487 = vadd.f32 %v461, %v412
  %v488 = vadd.f32 %v462, %v415
  %v489 = vadd.f32 %v463, %v418
  %v490 = vadd.f32 %v464, %v421
  %v491 = vadd.f32 %v465, %v424
  %v492 = vadd.f32 %v466, %v427
  %v493 = vadd.f32 %v467, %v430
  %v494 = vadd.f32 %v468, %v433
  %v495 = vadd.f32 %v469, %v436
  %v496 = vadd.f32 %v470, %v439
  %v497 = vadd.f32 %v471, %v442
  %v498 = vadd.f32 %v472, %v445
  %499 = vst [vmem:[#allocation2] sm:$0xff] %v473
  %500 = vst [vmem:[#allocation2 + $0x8] sm:$0xff] %v474
  %501 = vst [vmem:[#allocation2 + $0x10] sm:$0xff] %v475
  %502 = vst [vmem:[#allocation2 + $0x18] sm:$0xff] %v476
  %503 = vst [vmem:[#allocation2 + $0x20] sm:$0xff] %v477
  %504 = vst [vmem:[#allocation2 + $0x28] sm:$0xff] %v478
  %505 = vst [vmem:[#allocation2 + $0x30] sm:$0xff] %v479
  %506 = vst [vmem:[#allocation2 + $0x38] sm:$0xff] %v480
  %507 = vst [vmem:[#allocation2 + $0x40] sm:$0xff] %v481
  %508 = vst [vmem:[#allocation2 + $0x48] sm:$0xff] %v482
  %509 = vst [vmem:[#allocation2 + $0x50] sm:$0xff] %v483
  %510 = vst [vmem:[#allocation2 + $0x58] sm:$0xff] %v484
  %511 = vst [vmem:[#allocation2 + $0x60] sm:$0xff] %v485
  %512 = vst [vmem:[#allocation2 + $0x68] sm:$0xff] %v486
  %513 = vst [vmem:[#allocation2 + $0x70] sm:$0xff] %v487
  %514 = vst [vmem:[#allocation2 + $0x78] sm:$0xff] %v488
  %515 = vst [vmem:[#allocation2 + $0x80] sm:$0xff] %v489
  %516 = vst [vmem:[#allocation2 + $0x88] sm:$0xff] %v490
  %517 = vst [vmem:[#allocation2 + $0x90] sm:$0xff] %v491
  %518 = vst [vmem:[#allocation2 + $0x98] sm:$0xff] %v492
  %519 = vst [vmem:[#allocation2 + $0xa0] sm:$0xff] %v493
  %520 = vst [vmem:[#allocation2 + $0xa8] sm:$0xff] %v494
  %521 = vst [vmem:[#allocation2 + $0xb0] sm:$0xff] %v495
  %522 = vst [vmem:[#allocation2 + $0xb8] sm:$0xff] %v496
  %523 = vst [vmem:[#allocation2 + $0xc0] sm:$0xff] %v497
  %524 = vst [vmem:[#allocation2 + $0xc8] sm:$0xff] %v498
  %v525 = vrot.slane %v38, 6
  %v526 = vrot.slane %v39, 6
  %v527 = vrot.slane %v40, 6
  %v528 = vrot.slane %v41, 6
  %v529 = vrot.slane %v42, 6
  %v530 = vrot.slane %v43, 6
  %v531 = vrot.slane %v44, 6
  %v532 = vrot.slane %v45, 6
  %v533 = vrot.slane %v46, 6
  %v534 = vrot.slane %v47, 6
  %v535 = vrot.slane %v48, 6
  %v536 = vrot.slane %v49, 6
  %v537 = vrot.slane %v50, 6
  %v538 = vrot.slane %v51, 6
  %v539 = vrot.slane %v52, 6
  %v540 = vrot.slane %v53, 6
  %v541 = vrot.slane %v54, 6
  %v542 = vrot.slane %v55, 6
  %v543 = vrot.slane %v56, 6
  %v544 = vrot.slane %v57, 6
  %v545 = vrot.slane %v58, 6
  %v546 = vrot.slane %v59, 6
  %v547 = vrot.slane %v60, 6
  %v548 = vrot.slane %v61, 6
  %v549 = vrot.slane %v62, 6
  %v550 = vrot.slane %v63, 6
  %vm551 = vcmp.lt.s32.totalorder %v91, 2
  %v552 = vsel %vm551, %v549, %v550
  %v553 = vsel %vm551, %v548, %v549
  %v554 = vsel %vm551, %v547, %v548
  %v555 = vsel %vm551, %v546, %v547
  %v556 = vsel %vm551, %v545, %v546
  %v557 = vsel %vm551, %v544, %v545
  %v558 = vsel %vm551, %v543, %v544
  %v559 = vsel %vm551, %v542, %v543
  %v560 = vsel %vm551, %v541, %v542
  %v561 = vsel %vm551, %v540, %v541
  %v562 = vsel %vm551, %v539, %v540
  %v563 = vsel %vm551, %v538, %v539
  %v564 = vsel %vm551, %v537, %v538
  %v565 = vsel %vm551, %v536, %v537
  %v566 = vsel %vm551, %v535, %v536
  %v567 = vsel %vm551, %v534, %v535
  %v568 = vsel %vm551, %v533, %v534
  %v569 = vsel %vm551, %v532, %v533
  %v570 = vsel %vm551, %v531, %v532
  %v571 = vsel %vm551, %v530, %v531
  %v572 = vsel %vm551, %v529, %v530
  %v573 = vsel %vm551, %v528, %v529
  %v574 = vsel %vm551, %v527, %v528
  %v575 = vsel %vm551, %v526, %v527
  %v576 = vsel %vm551, %v525, %v526
  %v577 = vsel %vm551, %v550, %v525
  %s578 = scalar_lea.vmem %s1, 256
  %v579 = vld [vmem:[%s578] sm:$0xff]
  %v580 = vld [vmem:[%s578 + $0x8] sm:$0xff]
  %v581 = vld [vmem:[%s578 + $0x10] sm:$0xff]
  %v582 = vld [vmem:[%s578 + $0x18] sm:$0xff]
  %v583 = vld [vmem:[%s578 + $0x20] sm:$0xff]
  %v584 = vld [vmem:[%s578 + $0x28] sm:$0xff]
  %v585 = vld [vmem:[%s578 + $0x30] sm:$0xff]
  %v586 = vld [vmem:[%s578 + $0x38] sm:$0xff]
  %v587 = vld [vmem:[%s578 + $0x40] sm:$0xff]
  %v588 = vld [vmem:[%s578 + $0x48] sm:$0xff]
  %v589 = vld [vmem:[%s578 + $0x50] sm:$0xff]
  %v590 = vld [vmem:[%s578 + $0x58] sm:$0xff]
  %v591 = vld [vmem:[%s578 + $0x60] sm:$0xff]
  %v592 = vld [vmem:[%s578 + $0x68] sm:$0xff]
  %v593 = vld [vmem:[%s578 + $0x70] sm:$0xff]
  %v594 = vld [vmem:[%s578 + $0x78] sm:$0xff]
  %595 = vmatpush.msra.mxu0 %v594
  %596 = vmatpush.msra.mxu0 %v593
  %597 = vmatpush.msra.mxu0 %v592
  %598 = vmatpush.msra.mxu0 %v591
  %599 = vmatpush.msra.mxu0 %v590
  %600 = vmatpush.msra.mxu0 %v589
  %601 = vmatpush.msra.mxu0 %v588
  %602 = vmatpush.msra.mxu0 %v587
  %603 = vmatpush.msra.mxu0 %v586
  %604 = vmatpush.msra.mxu0 %v585
  %605 = vmatpush.msra.mxu0 %v584
  %606 = vmatpush.msra.mxu0 %v583
  %607 = vmatpush.msra.mxu0 %v582
  %608 = vmatpush.msra.mxu0 %v581
  %609 = vmatpush.msra.mxu0 %v580
  %610 = vmatpush.msra.mxu0 %v579
  %611 = vmatmul.f32.gmra.mxu0 %v552
  %v612 = vpop.f32.mrf.mxu0
  %v613 = vadd.f32 0.0, %v612
  %614 = vmatmul.f32.gmra.mxu0 %v577
  %v615 = vpop.f32.mrf.mxu0
  %v616 = vadd.f32 0.0, %v615
  %617 = vmatmul.f32.gmra.mxu0 %v576
  %v618 = vpop.f32.mrf.mxu0
  %v619 = vadd.f32 0.0, %v618
  %620 = vmatmul.f32.gmra.mxu0 %v575
  %v621 = vpop.f32.mrf.mxu0
  %v622 = vadd.f32 0.0, %v621
  %623 = vmatmul.f32.gmra.mxu0 %v574
  %v624 = vpop.f32.mrf.mxu0
  %v625 = vadd.f32 0.0, %v624
  %626 = vmatmul.f32.gmra.mxu0 %v573
  %v627 = vpop.f32.mrf.mxu0
  %v628 = vadd.f32 0.0, %v627
  %629 = vmatmul.f32.gmra.mxu0 %v572
  %v630 = vpop.f32.mrf.mxu0
  %v631 = vadd.f32 0.0, %v630
  %632 = vmatmul.f32.gmra.mxu0 %v571
  %v633 = vpop.f32.mrf.mxu0
  %v634 = vadd.f32 0.0, %v633
  %635 = vmatmul.f32.gmra.mxu0 %v570
  %v636 = vpop.f32.mrf.mxu0
  %v637 = vadd.f32 0.0, %v636
  %638 = vmatmul.f32.gmra.mxu0 %v569
  %v639 = vpop.f32.mrf.mxu0
  %v640 = vadd.f32 0.0, %v639
  %641 = vmatmul.f32.gmra.mxu0 %v568
  %v642 = vpop.f32.mrf.mxu0
  %v643 = vadd.f32 0.0, %v642
  %644 = vmatmul.f32.gmra.mxu0 %v567
  %v645 = vpop.f32.mrf.mxu0
  %v646 = vadd.f32 0.0, %v645
  %647 = vmatmul.f32.gmra.mxu0 %v566
  %v648 = vpop.f32.mrf.mxu0
  %v649 = vadd.f32 0.0, %v648
  %650 = vmatmul.f32.gmra.mxu0 %v565
  %v651 = vpop.f32.mrf.mxu0
  %v652 = vadd.f32 0.0, %v651
  %653 = vmatmul.f32.gmra.mxu0 %v564
  %v654 = vpop.f32.mrf.mxu0
  %v655 = vadd.f32 0.0, %v654
  %656 = vmatmul.f32.gmra.mxu0 %v563
  %v657 = vpop.f32.mrf.mxu0
  %v658 = vadd.f32 0.0, %v657
  %659 = vmatmul.f32.gmra.mxu0 %v562
  %v660 = vpop.f32.mrf.mxu0
  %v661 = vadd.f32 0.0, %v660
  %662 = vmatmul.f32.gmra.mxu0 %v561
  %v663 = vpop.f32.mrf.mxu0
  %v664 = vadd.f32 0.0, %v663
  %665 = vmatmul.f32.gmra.mxu0 %v560
  %v666 = vpop.f32.mrf.mxu0
  %v667 = vadd.f32 0.0, %v666
  %668 = vmatmul.f32.gmra.mxu0 %v559
  %v669 = vpop.f32.mrf.mxu0
  %v670 = vadd.f32 0.0, %v669
  %671 = vmatmul.f32.gmra.mxu0 %v558
  %v672 = vpop.f32.mrf.mxu0
  %v673 = vadd.f32 0.0, %v672
  %674 = vmatmul.f32.gmra.mxu0 %v557
  %v675 = vpop.f32.mrf.mxu0
  %v676 = vadd.f32 0.0, %v675
  %677 = vmatmul.f32.gmra.mxu0 %v556
  %v678 = vpop.f32.mrf.mxu0
  %v679 = vadd.f32 0.0, %v678
  %680 = vmatmul.f32.gmra.mxu0 %v555
  %v681 = vpop.f32.mrf.mxu0
  %v682 = vadd.f32 0.0, %v681
  %683 = vmatmul.f32.gmra.mxu0 %v554
  %v684 = vpop.f32.mrf.mxu0
  %v685 = vadd.f32 0.0, %v684
  %686 = vmatmul.f32.gmra.mxu0 %v553
  %v687 = vpop.f32.mrf.mxu0
  %v688 = vadd.f32 0.0, %v687
  %689 = vdwg.mxu0
  %v690 = vld [vmem:[#allocation2] sm:$0xff]
  %v691 = vld [vmem:[#allocation2 + $0x8] sm:$0xff]
  %v692 = vld [vmem:[#allocation2 + $0x10] sm:$0xff]
  %v693 = vld [vmem:[#allocation2 + $0x18] sm:$0xff]
  %v694 = vld [vmem:[#allocation2 + $0x20] sm:$0xff]
  %v695 = vld [vmem:[#allocation2 + $0x28] sm:$0xff]
  %v696 = vld [vmem:[#allocation2 + $0x30] sm:$0xff]
  %v697 = vld [vmem:[#allocation2 + $0x38] sm:$0xff]
  %v698 = vld [vmem:[#allocation2 + $0x40] sm:$0xff]
  %v699 = vld [vmem:[#allocation2 + $0x48] sm:$0xff]
  %v700 = vld [vmem:[#allocation2 + $0x50] sm:$0xff]
  %v701 = vld [vmem:[#allocation2 + $0x58] sm:$0xff]
  %v702 = vld [vmem:[#allocation2 + $0x60] sm:$0xff]
  %v703 = vld [vmem:[#allocation2 + $0x68] sm:$0xff]
  %v704 = vld [vmem:[#allocation2 + $0x70] sm:$0xff]
  %v705 = vld [vmem:[#allocation2 + $0x78] sm:$0xff]
  %v706 = vld [vmem:[#allocation2 + $0x80] sm:$0xff]
  %v707 = vld [vmem:[#allocation2 + $0x88] sm:$0xff]
  %v708 = vld [vmem:[#allocation2 + $0x90] sm:$0xff]
  %v709 = vld [vmem:[#allocation2 + $0x98] sm:$0xff]
  %v710 = vld [vmem:[#allocation2 + $0xa0] sm:$0xff]
  %v711 = vld [vmem:[#allocation2 + $0xa8] sm:$0xff]
  %v712 = vld [vmem:[#allocation2 + $0xb0] sm:$0xff]
  %v713 = vld [vmem:[#allocation2 + $0xb8] sm:$0xff]
  %v714 = vld [vmem:[#allocation2 + $0xc0] sm:$0xff]
  %v715 = vld [vmem:[#allocation2 + $0xc8] sm:$0xff]
  %v716 = vadd.f32 %v690, %v613
  %v717 = vadd.f32 %v691, %v616
  %v718 = vadd.f32 %v692, %v619
  %v719 = vadd.f32 %v693, %v622
  %v720 = vadd.f32 %v694, %v625
  %v721 = vadd.f32 %v695, %v628
  %v722 = vadd.f32 %v696, %v631
  %v723 = vadd.f32 %v697, %v634
  %v724 = vadd.f32 %v698, %v637
  %v725 = vadd.f32 %v699, %v640
  %v726 = vadd.f32 %v700, %v643
  %v727 = vadd.f32 %v701, %v646
  %v728 = vadd.f32 %v702, %v649
  %v729 = vadd.f32 %v703, %v652
  %v730 = vadd.f32 %v704, %v655
  %v731 = vadd.f32 %v705, %v658
  %v732 = vadd.f32 %v706, %v661
  %v733 = vadd.f32 %v707, %v664
  %v734 = vadd.f32 %v708, %v667
  %v735 = vadd.f32 %v709, %v670
  %v736 = vadd.f32 %v710, %v673
  %v737 = vadd.f32 %v711, %v676
  %v738 = vadd.f32 %v712, %v679
  %v739 = vadd.f32 %v713, %v682
  %v740 = vadd.f32 %v714, %v685
  %v741 = vadd.f32 %v715, %v688
  %742 = vst [vmem:[#allocation2] sm:$0xff] %v716
  %743 = vst [vmem:[#allocation2 + $0x8] sm:$0xff] %v717
  %744 = vst [vmem:[#allocation2 + $0x10] sm:$0xff] %v718
  %745 = vst [vmem:[#allocation2 + $0x18] sm:$0xff] %v719
  %746 = vst [vmem:[#allocation2 + $0x20] sm:$0xff] %v720
  %747 = vst [vmem:[#allocation2 + $0x28] sm:$0xff] %v721
  %748 = vst [vmem:[#allocation2 + $0x30] sm:$0xff] %v722
  %749 = vst [vmem:[#allocation2 + $0x38] sm:$0xff] %v723
  %750 = vst [vmem:[#allocation2 + $0x40] sm:$0xff] %v724
  %751 = vst [vmem:[#allocation2 + $0x48] sm:$0xff] %v725
  %752 = vst [vmem:[#allocation2 + $0x50] sm:$0xff] %v726
  %753 = vst [vmem:[#allocation2 + $0x58] sm:$0xff] %v727
  %754 = vst [vmem:[#allocation2 + $0x60] sm:$0xff] %v728
  %755 = vst [vmem:[#allocation2 + $0x68] sm:$0xff] %v729
  %756 = vst [vmem:[#allocation2 + $0x70] sm:$0xff] %v730
  %757 = vst [vmem:[#allocation2 + $0x78] sm:$0xff] %v731
  %758 = vst [vmem:[#allocation2 + $0x80] sm:$0xff] %v732
  %759 = vst [vmem:[#allocation2 + $0x88] sm:$0xff] %v733
  %760 = vst [vmem:[#allocation2 + $0x90] sm:$0xff] %v734
  %761 = vst [vmem:[#allocation2 + $0x98] sm:$0xff] %v735
  %762 = vst [vmem:[#allocation2 + $0xa0] sm:$0xff] %v736
  %763 = vst [vmem:[#allocation2 + $0xa8] sm:$0xff] %v737
  %764 = vst [vmem:[#allocation2 + $0xb0] sm:$0xff] %v738
  %765 = vst [vmem:[#allocation2 + $0xb8] sm:$0xff] %v739
  %766 = vst [vmem:[#allocation2 + $0xc0] sm:$0xff] %v740
  %767 = vst [vmem:[#allocation2 + $0xc8] sm:$0xff] %v741
  %s768 = scalar_lea.vmem %s0, 416
  %v769 = vld [vmem:[%s768] sm:$0xff]
  %v770 = vld [vmem:[%s768 + $0x8] sm:$0xff]
  %v771 = vld [vmem:[%s768 + $0x10] sm:$0xff]
  %v772 = vld [vmem:[%s768 + $0x18] sm:$0xff]
  %v773 = vld [vmem:[%s768 + $0x20] sm:$0xff]
  %v774 = vld [vmem:[%s768 + $0x28] sm:$0xff]
  %v775 = vld [vmem:[%s768 + $0x30] sm:$0xff]
  %v776 = vld [vmem:[%s768 + $0x38] sm:$0xff]
  %v777 = vld [vmem:[%s768 + $0x40] sm:$0xff]
  %v778 = vld [vmem:[%s768 + $0x48] sm:$0xff]
  %v779 = vld [vmem:[%s768 + $0x50] sm:$0xff]
  %v780 = vld [vmem:[%s768 + $0x58] sm:$0xff]
  %v781 = vld [vmem:[%s768 + $0x60] sm:$0xff]
  %v782 = vld [vmem:[%s768 + $0x68] sm:$0xff]
  %v783 = vld [vmem:[%s768 + $0x70] sm:$0xff]
  %v784 = vld [vmem:[%s768 + $0x78] sm:$0xff]
  %v785 = vld [vmem:[%s768 + $0x80] sm:$0xff]
  %v786 = vld [vmem:[%s768 + $0x88] sm:$0xff]
  %v787 = vld [vmem:[%s768 + $0x90] sm:$0xff]
  %v788 = vld [vmem:[%s768 + $0x98] sm:$0xff]
  %v789 = vld [vmem:[%s768 + $0xa0] sm:$0xff]
  %v790 = vld [vmem:[%s768 + $0xa8] sm:$0xff]
  %v791 = vld [vmem:[%s768 + $0xb0] sm:$0xff]
  %v792 = vld [vmem:[%s768 + $0xb8] sm:$0xff]
  %v793 = vld [vmem:[%s768 + $0xc0] sm:$0xff]
  %v794 = vld [vmem:[%s768 + $0xc8] sm:$0xff]
  %v795 = vrot.slane %v769, 5
  %v796 = vrot.slane %v770, 5
  %v797 = vrot.slane %v771, 5
  %v798 = vrot.slane %v772, 5
  %v799 = vrot.slane %v773, 5
  %v800 = vrot.slane %v774, 5
  %v801 = vrot.slane %v775, 5
  %v802 = vrot.slane %v776, 5
  %v803 = vrot.slane %v777, 5
  %v804 = vrot.slane %v778, 5
  %v805 = vrot.slane %v779, 5
  %v806 = vrot.slane %v780, 5
  %v807 = vrot.slane %v781, 5
  %v808 = vrot.slane %v782, 5
  %v809 = vrot.slane %v783, 5
  %v810 = vrot.slane %v784, 5
  %v811 = vrot.slane %v785, 5
  %v812 = vrot.slane %v786, 5
  %v813 = vrot.slane %v787, 5
  %v814 = vrot.slane %v788, 5
  %v815 = vrot.slane %v789, 5
  %v816 = vrot.slane %v790, 5
  %v817 = vrot.slane %v791, 5
  %v818 = vrot.slane %v792, 5
  %v819 = vrot.slane %v793, 5
  %v820 = vrot.slane %v794, 5
  %v821 = vsel %vm92, %v819, %v820
  %v822 = vsel %vm92, %v818, %v819
  %v823 = vsel %vm92, %v817, %v818
  %v824 = vsel %vm92, %v816, %v817
  %v825 = vsel %vm92, %v815, %v816
  %v826 = vsel %vm92, %v814, %v815
  %v827 = vsel %vm92, %v813, %v814
  %v828 = vsel %vm92, %v812, %v813
  %v829 = vsel %vm92, %v811, %v812
  %v830 = vsel %vm92, %v810, %v811
  %v831 = vsel %vm92, %v809, %v810
  %v832 = vsel %vm92, %v808, %v809
  %v833 = vsel %vm92, %v807, %v808
  %v834 = vsel %vm92, %v806, %v807
  %v835 = vsel %vm92, %v805, %v806
  %v836 = vsel %vm92, %v804, %v805
  %v837 = vsel %vm92, %v803, %v804
  %v838 = vsel %vm92, %v802, %v803
  %v839 = vsel %vm92, %v801, %v802
  %v840 = vsel %vm92, %v800, %v801
  %v841 = vsel %vm92, %v799, %v800
  %v842 = vsel %vm92, %v798, %v799
  %v843 = vsel %vm92, %v797, %v798
  %v844 = vsel %vm92, %v796, %v797
  %v845 = vsel %vm92, %v795, %v796
  %v846 = vsel %vm92, %v820, %v795
  %s847 = scalar_lea.vmem %s1, 384
  %v848 = vld [vmem:[%s847] sm:$0xff]
  %v849 = vld [vmem:[%s847 + $0x8] sm:$0xff]
  %v850 = vld [vmem:[%s847 + $0x10] sm:$0xff]
  %v851 = vld [vmem:[%s847 + $0x18] sm:$0xff]
  %v852 = vld [vmem:[%s847 + $0x20] sm:$0xff]
  %v853 = vld [vmem:[%s847 + $0x28] sm:$0xff]
  %v854 = vld [vmem:[%s847 + $0x30] sm:$0xff]
  %v855 = vld [vmem:[%s847 + $0x38] sm:$0xff]
  %v856 = vld [vmem:[%s847 + $0x40] sm:$0xff]
  %v857 = vld [vmem:[%s847 + $0x48] sm:$0xff]
  %v858 = vld [vmem:[%s847 + $0x50] sm:$0xff]
  %v859 = vld [vmem:[%s847 + $0x58] sm:$0xff]
  %v860 = vld [vmem:[%s847 + $0x60] sm:$0xff]
  %v861 = vld [vmem:[%s847 + $0x68] sm:$0xff]
  %v862 = vld [vmem:[%s847 + $0x70] sm:$0xff]
  %v863 = vld [vmem:[%s847 + $0x78] sm:$0xff]
  %864 = vmatpush.msra.mxu0 %v863
  %865 = vmatpush.msra.mxu0 %v862
  %866 = vmatpush.msra.mxu0 %v861
  %867 = vmatpush.msra.mxu0 %v860
  %868 = vmatpush.msra.mxu0 %v859
  %869 = vmatpush.msra.mxu0 %v858
  %870 = vmatpush.msra.mxu0 %v857
  %871 = vmatpush.msra.mxu0 %v856
  %872 = vmatpush.msra.mxu0 %v855
  %873 = vmatpush.msra.mxu0 %v854
  %874 = vmatpush.msra.mxu0 %v853
  %875 = vmatpush.msra.mxu0 %v852
  %876 = vmatpush.msra.mxu0 %v851
  %877 = vmatpush.msra.mxu0 %v850
  %878 = vmatpush.msra.mxu0 %v849
  %879 = vmatpush.msra.mxu0 %v848
  %880 = vmatmul.f32.gmra.mxu0 %v821
  %v881 = vpop.f32.mrf.mxu0
  %v882 = vadd.f32 0.0, %v881
  %883 = vmatmul.f32.gmra.mxu0 %v846
  %v884 = vpop.f32.mrf.mxu0
  %v885 = vadd.f32 0.0, %v884
  %886 = vmatmul.f32.gmra.mxu0 %v845
  %v887 = vpop.f32.mrf.mxu0
  %v888 = vadd.f32 0.0, %v887
  %889 = vmatmul.f32.gmra.mxu0 %v844
  %v890 = vpop.f32.mrf.mxu0
  %v891 = vadd.f32 0.0, %v890
  %892 = vmatmul.f32.gmra.mxu0 %v843
  %v893 = vpop.f32.mrf.mxu0
  %v894 = vadd.f32 0.0, %v893
  %895 = vmatmul.f32.gmra.mxu0 %v842
  %v896 = vpop.f32.mrf.mxu0
  %v897 = vadd.f32 0.0, %v896
  %898 = vmatmul.f32.gmra.mxu0 %v841
  %v899 = vpop.f32.mrf.mxu0
  %v900 = vadd.f32 0.0, %v899
  %901 = vmatmul.f32.gmra.mxu0 %v840
  %v902 = vpop.f32.mrf.mxu0
  %v903 = vadd.f32 0.0, %v902
  %904 = vmatmul.f32.gmra.mxu0 %v839
  %v905 = vpop.f32.mrf.mxu0
  %v906 = vadd.f32 0.0, %v905
  %907 = vmatmul.f32.gmra.mxu0 %v838
  %v908 = vpop.f32.mrf.mxu0
  %v909 = vadd.f32 0.0, %v908
  %910 = vmatmul.f32.gmra.mxu0 %v837
  %v911 = vpop.f32.mrf.mxu0
  %v912 = vadd.f32 0.0, %v911
  %913 = vmatmul.f32.gmra.mxu0 %v836
  %v914 = vpop.f32.mrf.mxu0
  %v915 = vadd.f32 0.0, %v914
  %916 = vmatmul.f32.gmra.mxu0 %v835
  %v917 = vpop.f32.mrf.mxu0
  %v918 = vadd.f32 0.0, %v917
  %919 = vmatmul.f32.gmra.mxu0 %v834
  %v920 = vpop.f32.mrf.mxu0
  %v921 = vadd.f32 0.0, %v920
  %922 = vmatmul.f32.gmra.mxu0 %v833
  %v923 = vpop.f32.mrf.mxu0
  %v924 = vadd.f32 0.0, %v923
  %925 = vmatmul.f32.gmra.mxu0 %v832
  %v926 = vpop.f32.mrf.mxu0
  %v927 = vadd.f32 0.0, %v926
  %928 = vmatmul.f32.gmra.mxu0 %v831
  %v929 = vpop.f32.mrf.mxu0
  %v930 = vadd.f32 0.0, %v929
  %931 = vmatmul.f32.gmra.mxu0 %v830
  %v932 = vpop.f32.mrf.mxu0
  %v933 = vadd.f32 0.0, %v932
  %934 = vmatmul.f32.gmra.mxu0 %v829
  %v935 = vpop.f32.mrf.mxu0
  %v936 = vadd.f32 0.0, %v935
  %937 = vmatmul.f32.gmra.mxu0 %v828
  %v938 = vpop.f32.mrf.mxu0
  %v939 = vadd.f32 0.0, %v938
  %940 = vmatmul.f32.gmra.mxu0 %v827
  %v941 = vpop.f32.mrf.mxu0
  %v942 = vadd.f32 0.0, %v941
  %943 = vmatmul.f32.gmra.mxu0 %v826
  %v944 = vpop.f32.mrf.mxu0
  %v945 = vadd.f32 0.0, %v944
  %946 = vmatmul.f32.gmra.mxu0 %v825
  %v947 = vpop.f32.mrf.mxu0
  %v948 = vadd.f32 0.0, %v947
  %949 = vmatmul.f32.gmra.mxu0 %v824
  %v950 = vpop.f32.mrf.mxu0
  %v951 = vadd.f32 0.0, %v950
  %952 = vmatmul.f32.gmra.mxu0 %v823
  %v953 = vpop.f32.mrf.mxu0
  %v954 = vadd.f32 0.0, %v953
  %955 = vmatmul.f32.gmra.mxu0 %v822
  %v956 = vpop.f32.mrf.mxu0
  %v957 = vadd.f32 0.0, %v956
  %958 = vdwg.mxu0
  %v959 = vld [vmem:[#allocation2] sm:$0xff]
  %v960 = vld [vmem:[#allocation2 + $0x8] sm:$0xff]
  %v961 = vld [vmem:[#allocation2 + $0x10] sm:$0xff]
  %v962 = vld [vmem:[#allocation2 + $0x18] sm:$0xff]
  %v963 = vld [vmem:[#allocation2 + $0x20] sm:$0xff]
  %v964 = vld [vmem:[#allocation2 + $0x28] sm:$0xff]
  %v965 = vld [vmem:[#allocation2 + $0x30] sm:$0xff]
  %v966 = vld [vmem:[#allocation2 + $0x38] sm:$0xff]
  %v967 = vld [vmem:[#allocation2 + $0x40] sm:$0xff]
  %v968 = vld [vmem:[#allocation2 + $0x48] sm:$0xff]
  %v969 = vld [vmem:[#allocation2 + $0x50] sm:$0xff]
  %v970 = vld [vmem:[#allocation2 + $0x58] sm:$0xff]
  %v971 = vld [vmem:[#allocation2 + $0x60] sm:$0xff]
  %v972 = vld [vmem:[#allocation2 + $0x68] sm:$0xff]
  %v973 = vld [vmem:[#allocation2 + $0x70] sm:$0xff]
  %v974 = vld [vmem:[#allocation2 + $0x78] sm:$0xff]
  %v975 = vld [vmem:[#allocation2 + $0x80] sm:$0xff]
  %v976 = vld [vmem:[#allocation2 + $0x88] sm:$0xff]
  %v977 = vld [vmem:[#allocation2 + $0x90] sm:$0xff]
  %v978 = vld [vmem:[#allocation2 + $0x98] sm:$0xff]
  %v979 = vld [vmem:[#allocation2 + $0xa0] sm:$0xff]
  %v980 = vld [vmem:[#allocation2 + $0xa8] sm:$0xff]
  %v981 = vld [vmem:[#allocation2 + $0xb0] sm:$0xff]
  %v982 = vld [vmem:[#allocation2 + $0xb8] sm:$0xff]
  %v983 = vld [vmem:[#allocation2 + $0xc0] sm:$0xff]
  %v984 = vld [vmem:[#allocation2 + $0xc8] sm:$0xff]
  %v985 = vadd.f32 %v959, %v882
  %v986 = vadd.f32 %v960, %v885
  %v987 = vadd.f32 %v961, %v888
  %v988 = vadd.f32 %v962, %v891
  %v989 = vadd.f32 %v963, %v894
  %v990 = vadd.f32 %v964, %v897
  %v991 = vadd.f32 %v965, %v900
  %v992 = vadd.f32 %v966, %v903
  %v993 = vadd.f32 %v967, %v906
  %v994 = vadd.f32 %v968, %v909
  %v995 = vadd.f32 %v969, %v912
  %v996 = vadd.f32 %v970, %v915
  %v997 = vadd.f32 %v971, %v918
  %v998 = vadd.f32 %v972, %v921
  %v999 = vadd.f32 %v973, %v924
  %v1000 = vadd.f32 %v974, %v927
  %v1001 = vadd.f32 %v975, %v930
  %v1002 = vadd.f32 %v976, %v933
  %v1003 = vadd.f32 %v977, %v936
  %v1004 = vadd.f32 %v978, %v939
  %v1005 = vadd.f32 %v979, %v942
  %v1006 = vadd.f32 %v980, %v945
  %v1007 = vadd.f32 %v981, %v948
  %v1008 = vadd.f32 %v982, %v951
  %v1009 = vadd.f32 %v983, %v954
  %v1010 = vadd.f32 %v984, %v957
  %1011 = vst [vmem:[#allocation2] sm:$0xff] %v985
  %1012 = vst [vmem:[#allocation2 + $0x8] sm:$0xff] %v986
  %1013 = vst [vmem:[#allocation2 + $0x10] sm:$0xff] %v987
  %1014 = vst [vmem:[#allocation2 + $0x18] sm:$0xff] %v988
  %1015 = vst [vmem:[#allocation2 + $0x20] sm:$0xff] %v989
  %1016 = vst [vmem:[#allocation2 + $0x28] sm:$0xff] %v990
  %1017 = vst [vmem:[#allocation2 + $0x30] sm:$0xff] %v991
  %1018 = vst [vmem:[#allocation2 + $0x38] sm:$0xff] %v992
  %1019 = vst [vmem:[#allocation2 + $0x40] sm:$0xff] %v993
  %1020 = vst [vmem:[#allocation2 + $0x48] sm:$0xff] %v994
  %1021 = vst [vmem:[#allocation2 + $0x50] sm:$0xff] %v995
  %1022 = vst [vmem:[#allocation2 + $0x58] sm:$0xff] %v996
  %1023 = vst [vmem:[#allocation2 + $0x60] sm:$0xff] %v997
  %1024 = vst [vmem:[#allocation2 + $0x68] sm:$0xff] %v998
  %1025 = vst [vmem:[#allocation2 + $0x70] sm:$0xff] %v999
  %1026 = vst [vmem:[#allocation2 + $0x78] sm:$0xff] %v1000
  %1027 = vst [vmem:[#allocation2 + $0x80] sm:$0xff] %v1001
  %1028 = vst [vmem:[#allocation2 + $0x88] sm:$0xff] %v1002
  %1029 = vst [vmem:[#allocation2 + $0x90] sm:$0xff] %v1003
  %1030 = vst [vmem:[#allocation2 + $0x98] sm:$0xff] %v1004
  %1031 = vst [vmem:[#allocation2 + $0xa0] sm:$0xff] %v1005
  %1032 = vst [vmem:[#allocation2 + $0xa8] sm:$0xff] %v1006
  %1033 = vst [vmem:[#allocation2 + $0xb0] sm:$0xff] %v1007
  %1034 = vst [vmem:[#allocation2 + $0xb8] sm:$0xff] %v1008
  %1035 = vst [vmem:[#allocation2 + $0xc0] sm:$0xff] %v1009
  %1036 = vst [vmem:[#allocation2 + $0xc8] sm:$0xff] %v1010
  %s1037 = scalar_lea.vmem %s0, 624
  %v1038 = vld [vmem:[%s1037] sm:$0xff]
  %v1039 = vld [vmem:[%s1037 + $0x8] sm:$0xff]
  %v1040 = vld [vmem:[%s1037 + $0x10] sm:$0xff]
  %v1041 = vld [vmem:[%s1037 + $0x18] sm:$0xff]
  %v1042 = vld [vmem:[%s1037 + $0x20] sm:$0xff]
  %v1043 = vld [vmem:[%s1037 + $0x28] sm:$0xff]
  %v1044 = vld [vmem:[%s1037 + $0x30] sm:$0xff]
  %v1045 = vld [vmem:[%s1037 + $0x38] sm:$0xff]
  %v1046 = vld [vmem:[%s1037 + $0x40] sm:$0xff]
  %v1047 = vld [vmem:[%s1037 + $0x48] sm:$0xff]
  %v1048 = vld [vmem:[%s1037 + $0x50] sm:$0xff]
  %v1049 = vld [vmem:[%s1037 + $0x58] sm:$0xff]
  %v1050 = vld [vmem:[%s1037 + $0x60] sm:$0xff]
  %v1051 = vld [vmem:[%s1037 + $0x68] sm:$0xff]
  %v1052 = vld [vmem:[%s1037 + $0x70] sm:$0xff]
  %v1053 = vld [vmem:[%s1037 + $0x78] sm:$0xff]
  %v1054 = vld [vmem:[%s1037 + $0x80] sm:$0xff]
  %v1055 = vld [vmem:[%s1037 + $0x88] sm:$0xff]
  %v1056 = vld [vmem:[%s1037 + $0x90] sm:$0xff]
  %v1057 = vld [vmem:[%s1037 + $0x98] sm:$0xff]
  %v1058 = vld [vmem:[%s1037 + $0xa0] sm:$0xff]
  %v1059 = vld [vmem:[%s1037 + $0xa8] sm:$0xff]
  %v1060 = vld [vmem:[%s1037 + $0xb0] sm:$0xff]
  %v1061 = vld [vmem:[%s1037 + $0xb8] sm:$0xff]
  %v1062 = vld [vmem:[%s1037 + $0xc0] sm:$0xff]
  %v1063 = vld [vmem:[%s1037 + $0xc8] sm:$0xff]
  %v1064 = vrot.slane %v1038, 5
  %v1065 = vrot.slane %v1039, 5
  %v1066 = vrot.slane %v1040, 5
  %v1067 = vrot.slane %v1041, 5
  %v1068 = vrot.slane %v1042, 5
  %v1069 = vrot.slane %v1043, 5
  %v1070 = vrot.slane %v1044, 5
  %v1071 = vrot.slane %v1045, 5
  %v1072 = vrot.slane %v1046, 5
  %v1073 = vrot.slane %v1047, 5
  %v1074 = vrot.slane %v1048, 5
  %v1075 = vrot.slane %v1049, 5
  %v1076 = vrot.slane %v1050, 5
  %v1077 = vrot.slane %v1051, 5
  %v1078 = vrot.slane %v1052, 5
  %v1079 = vrot.slane %v1053, 5
  %v1080 = vrot.slane %v1054, 5
  %v1081 = vrot.slane %v1055, 5
  %v1082 = vrot.slane %v1056, 5
  %v1083 = vrot.slane %v1057, 5
  %v1084 = vrot.slane %v1058, 5
  %v1085 = vrot.slane %v1059, 5
  %v1086 = vrot.slane %v1060, 5
  %v1087 = vrot.slane %v1061, 5
  %v1088 = vrot.slane %v1062, 5
  %v1089 = vrot.slane %v1063, 5
  %v1090 = vsel %vm92, %v1088, %v1089
  %v1091 = vsel %vm92, %v1087, %v1088
  %v1092 = vsel %vm92, %v1086, %v1087
  %v1093 = vsel %vm92, %v1085, %v1086
  %v1094 = vsel %vm92, %v1084, %v1085
  %v1095 = vsel %vm92, %v1083, %v1084
  %v1096 = vsel %vm92, %v1082, %v1083
  %v1097 = vsel %vm92, %v1081, %v1082
  %v1098 = vsel %vm92, %v1080, %v1081
  %v1099 = vsel %vm92, %v1079, %v1080
  %v1100 = vsel %vm92, %v1078, %v1079
  %v1101 = vsel %vm92, %v1077, %v1078
  %v1102 = vsel %vm92, %v1076, %v1077
  %v1103 = vsel %vm92, %v1075, %v1076
  %v1104 = vsel %vm92, %v1074, %v1075
  %v1105 = vsel %vm92, %v1073, %v1074
  %v1106 = vsel %vm92, %v1072, %v1073
  %v1107 = vsel %vm92, %v1071, %v1072
  %v1108 = vsel %vm92, %v1070, %v1071
  %v1109 = vsel %vm92, %v1069, %v1070
  %v1110 = vsel %vm92, %v1068, %v1069
  %v1111 = vsel %vm92, %v1067, %v1068
  %v1112 = vsel %vm92, %v1066, %v1067
  %v1113 = vsel %vm92, %v1065, %v1066
  %v1114 = vsel %vm92, %v1064, %v1065
  %v1115 = vsel %vm92, %v1089, %v1064
  %s1116 = scalar_lea.vmem %s1, 512
  %v1117 = vld [vmem:[%s1116] sm:$0xff]
  %v1118 = vld [vmem:[%s1116 + $0x8] sm:$0xff]
  %v1119 = vld [vmem:[%s1116 + $0x10] sm:$0xff]
  %v1120 = vld [vmem:[%s1116 + $0x18] sm:$0xff]
  %v1121 = vld [vmem:[%s1116 + $0x20] sm:$0xff]
  %v1122 = vld [vmem:[%s1116 + $0x28] sm:$0xff]
  %v1123 = vld [vmem:[%s1116 + $0x30] sm:$0xff]
  %v1124 = vld [vmem:[%s1116 + $0x38] sm:$0xff]
  %v1125 = vld [vmem:[%s1116 + $0x40] sm:$0xff]
  %v1126 = vld [vmem:[%s1116 + $0x48] sm:$0xff]
  %v1127 = vld [vmem:[%s1116 + $0x50] sm:$0xff]
  %v1128 = vld [vmem:[%s1116 + $0x58] sm:$0xff]
  %v1129 = vld [vmem:[%s1116 + $0x60] sm:$0xff]
  %v1130 = vld [vmem:[%s1116 + $0x68] sm:$0xff]
  %v1131 = vld [vmem:[%s1116 + $0x70] sm:$0xff]
  %v1132 = vld [vmem:[%s1116 + $0x78] sm:$0xff]
  %1133 = vmatpush.msra.mxu0 %v1132
  %1134 = vmatpush.msra.mxu0 %v1131
  %1135 = vmatpush.msra.mxu0 %v1130
  %1136 = vmatpush.msra.mxu0 %v1129
  %1137 = vmatpush.msra.mxu0 %v1128
  %1138 = vmatpush.msra.mxu0 %v1127
  %1139 = vmatpush.msra.mxu0 %v1126
  %1140 = vmatpush.msra.mxu0 %v1125
  %1141 = vmatpush.msra.mxu0 %v1124
  %1142 = vmatpush.msra.mxu0 %v1123
  %1143 = vmatpush.msra.mxu0 %v1122
  %1144 = vmatpush.msra.mxu0 %v1121
  %1145 = vmatpush.msra.mxu0 %v1120
  %1146 = vmatpush.msra.mxu0 %v1119
  %1147 = vmatpush.msra.mxu0 %v1118
  %1148 = vmatpush.msra.mxu0 %v1117
  %1149 = vmatmul.f32.gmra.mxu0 %v1090
  %v1150 = vpop.f32.mrf.mxu0
  %v1151 = vadd.f32 0.0, %v1150
  %1152 = vmatmul.f32.gmra.mxu0 %v1115
  %v1153 = vpop.f32.mrf.mxu0
  %v1154 = vadd.f32 0.0, %v1153
  %1155 = vmatmul.f32.gmra.mxu0 %v1114
  %v1156 = vpop.f32.mrf.mxu0
  %v1157 = vadd.f32 0.0, %v1156
  %1158 = vmatmul.f32.gmra.mxu0 %v1113
  %v1159 = vpop.f32.mrf.mxu0
  %v1160 = vadd.f32 0.0, %v1159
  %1161 = vmatmul.f32.gmra.mxu0 %v1112
  %v1162 = vpop.f32.mrf.mxu0
  %v1163 = vadd.f32 0.0, %v1162
  %1164 = vmatmul.f32.gmra.mxu0 %v1111
  %v1165 = vpop.f32.mrf.mxu0
  %v1166 = vadd.f32 0.0, %v1165
  %1167 = vmatmul.f32.gmra.mxu0 %v1110
  %v1168 = vpop.f32.mrf.mxu0
  %v1169 = vadd.f32 0.0, %v1168
  %1170 = vmatmul.f32.gmra.mxu0 %v1109
  %v1171 = vpop.f32.mrf.mxu0
  %v1172 = vadd.f32 0.0, %v1171
  %1173 = vmatmul.f32.gmra.mxu0 %v1108
  %v1174 = vpop.f32.mrf.mxu0
  %v1175 = vadd.f32 0.0, %v1174
  %1176 = vmatmul.f32.gmra.mxu0 %v1107
  %v1177 = vpop.f32.mrf.mxu0
  %v1178 = vadd.f32 0.0, %v1177
  %1179 = vmatmul.f32.gmra.mxu0 %v1106
  %v1180 = vpop.f32.mrf.mxu0
  %v1181 = vadd.f32 0.0, %v1180
  %1182 = vmatmul.f32.gmra.mxu0 %v1105
  %v1183 = vpop.f32.mrf.mxu0
  %v1184 = vadd.f32 0.0, %v1183
  %1185 = vmatmul.f32.gmra.mxu0 %v1104
  %v1186 = vpop.f32.mrf.mxu0
  %v1187 = vadd.f32 0.0, %v1186
  %1188 = vmatmul.f32.gmra.mxu0 %v1103
  %v1189 = vpop.f32.mrf.mxu0
  %v1190 = vadd.f32 0.0, %v1189
  %1191 = vmatmul.f32.gmra.mxu0 %v1102
  %v1192 = vpop.f32.mrf.mxu0
  %v1193 = vadd.f32 0.0, %v1192
  %1194 = vmatmul.f32.gmra.mxu0 %v1101
  %v1195 = vpop.f32.mrf.mxu0
  %v1196 = vadd.f32 0.0, %v1195
  %1197 = vmatmul.f32.gmra.mxu0 %v1100
  %v1198 = vpop.f32.mrf.mxu0
  %v1199 = vadd.f32 0.0, %v1198
  %1200 = vmatmul.f32.gmra.mxu0 %v1099
  %v1201 = vpop.f32.mrf.mxu0
  %v1202 = vadd.f32 0.0, %v1201
  %1203 = vmatmul.f32.gmra.mxu0 %v1098
  %v1204 = vpop.f32.mrf.mxu0
  %v1205 = vadd.f32 0.0, %v1204
  %1206 = vmatmul.f32.gmra.mxu0 %v1097
  %v1207 = vpop.f32.mrf.mxu0
  %v1208 = vadd.f32 0.0, %v1207
  %1209 = vmatmul.f32.gmra.mxu0 %v1096
  %v1210 = vpop.f32.mrf.mxu0
  %v1211 = vadd.f32 0.0, %v1210
  %1212 = vmatmul.f32.gmra.mxu0 %v1095
  %v1213 = vpop.f32.mrf.mxu0
  %v1214 = vadd.f32 0.0, %v1213
  %1215 = vmatmul.f32.gmra.mxu0 %v1094
  %v1216 = vpop.f32.mrf.mxu0
  %v1217 = vadd.f32 0.0, %v1216
  %1218 = vmatmul.f32.gmra.mxu0 %v1093
  %v1219 = vpop.f32.mrf.mxu0
  %v1220 = vadd.f32 0.0, %v1219
  %1221 = vmatmul.f32.gmra.mxu0 %v1092
  %v1222 = vpop.f32.mrf.mxu0
  %v1223 = vadd.f32 0.0, %v1222
  %1224 = vmatmul.f32.gmra.mxu0 %v1091
  %v1225 = vpop.f32.mrf.mxu0
  %v1226 = vadd.f32 0.0, %v1225
  %1227 = vdwg.mxu0
  %v1228 = vld [vmem:[#allocation2] sm:$0xff]
  %v1229 = vld [vmem:[#allocation2 + $0x8] sm:$0xff]
  %v1230 = vld [vmem:[#allocation2 + $0x10] sm:$0xff]
  %v1231 = vld [vmem:[#allocation2 + $0x18] sm:$0xff]
  %v1232 = vld [vmem:[#allocation2 + $0x20] sm:$0xff]
  %v1233 = vld [vmem:[#allocation2 + $0x28] sm:$0xff]
  %v1234 = vld [vmem:[#allocation2 + $0x30] sm:$0xff]
  %v1235 = vld [vmem:[#allocation2 + $0x38] sm:$0xff]
  %v1236 = vld [vmem:[#allocation2 + $0x40] sm:$0xff]
  %v1237 = vld [vmem:[#allocation2 + $0x48] sm:$0xff]
  %v1238 = vld [vmem:[#allocation2 + $0x50] sm:$0xff]
  %v1239 = vld [vmem:[#allocation2 + $0x58] sm:$0xff]
  %v1240 = vld [vmem:[#allocation2 + $0x60] sm:$0xff]
  %v1241 = vld [vmem:[#allocation2 + $0x68] sm:$0xff]
  %v1242 = vld [vmem:[#allocation2 + $0x70] sm:$0xff]
  %v1243 = vld [vmem:[#allocation2 + $0x78] sm:$0xff]
  %v1244 = vld [vmem:[#allocation2 + $0x80] sm:$0xff]
  %v1245 = vld [vmem:[#allocation2 + $0x88] sm:$0xff]
  %v1246 = vld [vmem:[#allocation2 + $0x90] sm:$0xff]
  %v1247 = vld [vmem:[#allocation2 + $0x98] sm:$0xff]
  %v1248 = vld [vmem:[#allocation2 + $0xa0] sm:$0xff]
  %v1249 = vld [vmem:[#allocation2 + $0xa8] sm:$0xff]
  %v1250 = vld [vmem:[#allocation2 + $0xb0] sm:$0xff]
  %v1251 = vld [vmem:[#allocation2 + $0xb8] sm:$0xff]
  %v1252 = vld [vmem:[#allocation2 + $0xc0] sm:$0xff]
  %v1253 = vld [vmem:[#allocation2 + $0xc8] sm:$0xff]
  %v1254 = vadd.f32 %v1228, %v1151
  %v1255 = vadd.f32 %v1229, %v1154
  %v1256 = vadd.f32 %v1230, %v1157
  %v1257 = vadd.f32 %v1231, %v1160
  %v1258 = vadd.f32 %v1232, %v1163
  %v1259 = vadd.f32 %v1233, %v1166
  %v1260 = vadd.f32 %v1234, %v1169
  %v1261 = vadd.f32 %v1235, %v1172
  %v1262 = vadd.f32 %v1236, %v1175
  %v1263 = vadd.f32 %v1237, %v1178
  %v1264 = vadd.f32 %v1238, %v1181
  %v1265 = vadd.f32 %v1239, %v1184
  %v1266 = vadd.f32 %v1240, %v1187
  %v1267 = vadd.f32 %v1241, %v1190
  %v1268 = vadd.f32 %v1242, %v1193
  %v1269 = vadd.f32 %v1243, %v1196
  %v1270 = vadd.f32 %v1244, %v1199
  %v1271 = vadd.f32 %v1245, %v1202
  %v1272 = vadd.f32 %v1246, %v1205
  %v1273 = vadd.f32 %v1247, %v1208
  %v1274 = vadd.f32 %v1248, %v1211
  %v1275 = vadd.f32 %v1249, %v1214
  %v1276 = vadd.f32 %v1250, %v1217
  %v1277 = vadd.f32 %v1251, %v1220
  %v1278 = vadd.f32 %v1252, %v1223
  %v1279 = vadd.f32 %v1253, %v1226
  %1280 = vst [vmem:[#allocation2] sm:$0xff] %v1254
  %1281 = vst [vmem:[#allocation2 + $0x8] sm:$0xff] %v1255
  %1282 = vst [vmem:[#allocation2 + $0x10] sm:$0xff] %v1256
  %1283 = vst [vmem:[#allocation2 + $0x18] sm:$0xff] %v1257
  %1284 = vst [vmem:[#allocation2 + $0x20] sm:$0xff] %v1258
  %1285 = vst [vmem:[#allocation2 + $0x28] sm:$0xff] %v1259
  %1286 = vst [vmem:[#allocation2 + $0x30] sm:$0xff] %v1260
  %1287 = vst [vmem:[#allocation2 + $0x38] sm:$0xff] %v1261
  %1288 = vst [vmem:[#allocation2 + $0x40] sm:$0xff] %v1262
  %1289 = vst [vmem:[#allocation2 + $0x48] sm:$0xff] %v1263
  %1290 = vst [vmem:[#allocation2 + $0x50] sm:$0xff] %v1264
  %1291 = vst [vmem:[#allocation2 + $0x58] sm:$0xff] %v1265
  %1292 = vst [vmem:[#allocation2 + $0x60] sm:$0xff] %v1266
  %1293 = vst [vmem:[#allocation2 + $0x68] sm:$0xff] %v1267
  %1294 = vst [vmem:[#allocation2 + $0x70] sm:$0xff] %v1268
  %1295 = vst [vmem:[#allocation2 + $0x78] sm:$0xff] %v1269
  %1296 = vst [vmem:[#allocation2 + $0x80] sm:$0xff] %v1270
  %1297 = vst [vmem:[#allocation2 + $0x88] sm:$0xff] %v1271
  %1298 = vst [vmem:[#allocation2 + $0x90] sm:$0xff] %v1272
  %1299 = vst [vmem:[#allocation2 + $0x98] sm:$0xff] %v1273
  %1300 = vst [vmem:[#allocation2 + $0xa0] sm:$0xff] %v1274
  %1301 = vst [vmem:[#allocation2 + $0xa8] sm:$0xff] %v1275
  %1302 = vst [vmem:[#allocation2 + $0xb0] sm:$0xff] %v1276
  %1303 = vst [vmem:[#allocation2 + $0xb8] sm:$0xff] %v1277
  %1304 = vst [vmem:[#allocation2 + $0xc0] sm:$0xff] %v1278
  %1305 = vst [vmem:[#allocation2 + $0xc8] sm:$0xff] %v1279
  %v1306 = vrot.slane %v769, 6
  %v1307 = vrot.slane %v770, 6
  %v1308 = vrot.slane %v771, 6
  %v1309 = vrot.slane %v772, 6
  %v1310 = vrot.slane %v773, 6
  %v1311 = vrot.slane %v774, 6
  %v1312 = vrot.slane %v775, 6
  %v1313 = vrot.slane %v776, 6
  %v1314 = vrot.slane %v777, 6
  %v1315 = vrot.slane %v778, 6
  %v1316 = vrot.slane %v779, 6
  %v1317 = vrot.slane %v780, 6
  %v1318 = vrot.slane %v781, 6
  %v1319 = vrot.slane %v782, 6
  %v1320 = vrot.slane %v783, 6
  %v1321 = vrot.slane %v784, 6
  %v1322 = vrot.slane %v785, 6
  %v1323 = vrot.slane %v786, 6
  %v1324 = vrot.slane %v787, 6
  %v1325 = vrot.slane %v788, 6
  %v1326 = vrot.slane %v789, 6
  %v1327 = vrot.slane %v790, 6
  %v1328 = vrot.slane %v791, 6
  %v1329 = vrot.slane %v792, 6
  %v1330 = vrot.slane %v793, 6
  %v1331 = vrot.slane %v794, 6
  %v1332 = vsel %vm551, %v1330, %v1331
  %v1333 = vsel %vm551, %v1329, %v1330
  %v1334 = vsel %vm551, %v1328, %v1329
  %v1335 = vsel %vm551, %v1327, %v1328
  %v1336 = vsel %vm551, %v1326, %v1327
  %v1337 = vsel %vm551, %v1325, %v1326
  %v1338 = vsel %vm551, %v1324, %v1325
  %v1339 = vsel %vm551, %v1323, %v1324
  %v1340 = vsel %vm551, %v1322, %v1323
  %v1341 = vsel %vm551, %v1321, %v1322
  %v1342 = vsel %vm551, %v1320, %v1321
  %v1343 = vsel %vm551, %v1319, %v1320
  %v1344 = vsel %vm551, %v1318, %v1319
  %v1345 = vsel %vm551, %v1317, %v1318
  %v1346 = vsel %vm551, %v1316, %v1317
  %v1347 = vsel %vm551, %v1315, %v1316
  %v1348 = vsel %vm551, %v1314, %v1315
  %v1349 = vsel %vm551, %v1313, %v1314
  %v1350 = vsel %vm551, %v1312, %v1313
  %v1351 = vsel %vm551, %v1311, %v1312
  %v1352 = vsel %vm551, %v1310, %v1311
  %v1353 = vsel %vm551, %v1309, %v1310
  %v1354 = vsel %vm551, %v1308, %v1309
  %v1355 = vsel %vm551, %v1307, %v1308
  %v1356 = vsel %vm551, %v1306, %v1307
  %v1357 = vsel %vm551, %v1331, %v1306
  %s1358 = scalar_lea.vmem %s1, 640
  %v1359 = vld [vmem:[%s1358] sm:$0xff]
  %v1360 = vld [vmem:[%s1358 + $0x8] sm:$0xff]
  %v1361 = vld [vmem:[%s1358 + $0x10] sm:$0xff]
  %v1362 = vld [vmem:[%s1358 + $0x18] sm:$0xff]
  %v1363 = vld [vmem:[%s1358 + $0x20] sm:$0xff]
  %v1364 = vld [vmem:[%s1358 + $0x28] sm:$0xff]
  %v1365 = vld [vmem:[%s1358 + $0x30] sm:$0xff]
  %v1366 = vld [vmem:[%s1358 + $0x38] sm:$0xff]
  %v1367 = vld [vmem:[%s1358 + $0x40] sm:$0xff]
  %v1368 = vld [vmem:[%s1358 + $0x48] sm:$0xff]
  %v1369 = vld [vmem:[%s1358 + $0x50] sm:$0xff]
  %v1370 = vld [vmem:[%s1358 + $0x58] sm:$0xff]
  %v1371 = vld [vmem:[%s1358 + $0x60] sm:$0xff]
  %v1372 = vld [vmem:[%s1358 + $0x68] sm:$0xff]
  %v1373 = vld [vmem:[%s1358 + $0x70] sm:$0xff]
  %v1374 = vld [vmem:[%s1358 + $0x78] sm:$0xff]
  %1375 = vmatpush.msra.mxu0 %v1374
  %1376 = vmatpush.msra.mxu0 %v1373
  %1377 = vmatpush.msra.mxu0 %v1372
  %1378 = vmatpush.msra.mxu0 %v1371
  %1379 = vmatpush.msra.mxu0 %v1370
  %1380 = vmatpush.msra.mxu0 %v1369
  %1381 = vmatpush.msra.mxu0 %v1368
  %1382 = vmatpush.msra.mxu0 %v1367
  %1383 = vmatpush.msra.mxu0 %v1366
  %1384 = vmatpush.msra.mxu0 %v1365
  %1385 = vmatpush.msra.mxu0 %v1364
  %1386 = vmatpush.msra.mxu0 %v1363
  %1387 = vmatpush.msra.mxu0 %v1362
  %1388 = vmatpush.msra.mxu0 %v1361
  %1389 = vmatpush.msra.mxu0 %v1360
  %1390 = vmatpush.msra.mxu0 %v1359
  %1391 = vmatmul.f32.gmra.mxu0 %v1332
  %v1392 = vpop.f32.mrf.mxu0
  %v1393 = vadd.f32 0.0, %v1392
  %1394 = vmatmul.f32.gmra.mxu0 %v1357
  %v1395 = vpop.f32.mrf.mxu0
  %v1396 = vadd.f32 0.0, %v1395
  %1397 = vmatmul.f32.gmra.mxu0 %v1356
  %v1398 = vpop.f32.mrf.mxu0
  %v1399 = vadd.f32 0.0, %v1398
  %1400 = vmatmul.f32.gmra.mxu0 %v1355
  %v1401 = vpop.f32.mrf.mxu0
  %v1402 = vadd.f32 0.0, %v1401
  %1403 = vmatmul.f32.gmra.mxu0 %v1354
  %v1404 = vpop.f32.mrf.mxu0
  %v1405 = vadd.f32 0.0, %v1404
  %1406 = vmatmul.f32.gmra.mxu0 %v1353
  %v1407 = vpop.f32.mrf.mxu0
  %v1408 = vadd.f32 0.0, %v1407
  %1409 = vmatmul.f32.gmra.mxu0 %v1352
  %v1410 = vpop.f32.mrf.mxu0
  %v1411 = vadd.f32 0.0, %v1410
  %1412 = vmatmul.f32.gmra.mxu0 %v1351
  %v1413 = vpop.f32.mrf.mxu0
  %v1414 = vadd.f32 0.0, %v1413
  %1415 = vmatmul.f32.gmra.mxu0 %v1350
  %v1416 = vpop.f32.mrf.mxu0
  %v1417 = vadd.f32 0.0, %v1416
  %1418 = vmatmul.f32.gmra.mxu0 %v1349
  %v1419 = vpop.f32.mrf.mxu0
  %v1420 = vadd.f32 0.0, %v1419
  %1421 = vmatmul.f32.gmra.mxu0 %v1348
  %v1422 = vpop.f32.mrf.mxu0
  %v1423 = vadd.f32 0.0, %v1422
  %1424 = vmatmul.f32.gmra.mxu0 %v1347
  %v1425 = vpop.f32.mrf.mxu0
  %v1426 = vadd.f32 0.0, %v1425
  %1427 = vmatmul.f32.gmra.mxu0 %v1346
  %v1428 = vpop.f32.mrf.mxu0
  %v1429 = vadd.f32 0.0, %v1428
  %1430 = vmatmul.f32.gmra.mxu0 %v1345
  %v1431 = vpop.f32.mrf.mxu0
  %v1432 = vadd.f32 0.0, %v1431
  %1433 = vmatmul.f32.gmra.mxu0 %v1344
  %v1434 = vpop.f32.mrf.mxu0
  %v1435 = vadd.f32 0.0, %v1434
  %1436 = vmatmul.f32.gmra.mxu0 %v1343
  %v1437 = vpop.f32.mrf.mxu0
  %v1438 = vadd.f32 0.0, %v1437
  %1439 = vmatmul.f32.gmra.mxu0 %v1342
  %v1440 = vpop.f32.mrf.mxu0
  %v1441 = vadd.f32 0.0, %v1440
  %1442 = vmatmul.f32.gmra.mxu0 %v1341
  %v1443 = vpop.f32.mrf.mxu0
  %v1444 = vadd.f32 0.0, %v1443
  %1445 = vmatmul.f32.gmra.mxu0 %v1340
  %v1446 = vpop.f32.mrf.mxu0
  %v1447 = vadd.f32 0.0, %v1446
  %1448 = vmatmul.f32.gmra.mxu0 %v1339
  %v1449 = vpop.f32.mrf.mxu0
  %v1450 = vadd.f32 0.0, %v1449
  %1451 = vmatmul.f32.gmra.mxu0 %v1338
  %v1452 = vpop.f32.mrf.mxu0
  %v1453 = vadd.f32 0.0, %v1452
  %1454 = vmatmul.f32.gmra.mxu0 %v1337
  %v1455 = vpop.f32.mrf.mxu0
  %v1456 = vadd.f32 0.0, %v1455
  %1457 = vmatmul.f32.gmra.mxu0 %v1336
  %v1458 = vpop.f32.mrf.mxu0
  %v1459 = vadd.f32 0.0, %v1458
  %1460 = vmatmul.f32.gmra.mxu0 %v1335
  %v1461 = vpop.f32.mrf.mxu0
  %v1462 = vadd.f32 0.0, %v1461
  %1463 = vmatmul.f32.gmra.mxu0 %v1334
  %v1464 = vpop.f32.mrf.mxu0
  %v1465 = vadd.f32 0.0, %v1464
  %1466 = vmatmul.f32.gmra.mxu0 %v1333
  %v1467 = vpop.f32.mrf.mxu0
  %v1468 = vadd.f32 0.0, %v1467
  %1469 = vdwg.mxu0
  %v1470 = vld [vmem:[#allocation2] sm:$0xff]
  %v1471 = vld [vmem:[#allocation2 + $0x8] sm:$0xff]
  %v1472 = vld [vmem:[#allocation2 + $0x10] sm:$0xff]
  %v1473 = vld [vmem:[#allocation2 + $0x18] sm:$0xff]
  %v1474 = vld [vmem:[#allocation2 + $0x20] sm:$0xff]
  %v1475 = vld [vmem:[#allocation2 + $0x28] sm:$0xff]
  %v1476 = vld [vmem:[#allocation2 + $0x30] sm:$0xff]
  %v1477 = vld [vmem:[#allocation2 + $0x38] sm:$0xff]
  %v1478 = vld [vmem:[#allocation2 + $0x40] sm:$0xff]
  %v1479 = vld [vmem:[#allocation2 + $0x48] sm:$0xff]
  %v1480 = vld [vmem:[#allocation2 + $0x50] sm:$0xff]
  %v1481 = vld [vmem:[#allocation2 + $0x58] sm:$0xff]
  %v1482 = vld [vmem:[#allocation2 + $0x60] sm:$0xff]
  %v1483 = vld [vmem:[#allocation2 + $0x68] sm:$0xff]
  %v1484 = vld [vmem:[#allocation2 + $0x70] sm:$0xff]
  %v1485 = vld [vmem:[#allocation2 + $0x78] sm:$0xff]
  %v1486 = vld [vmem:[#allocation2 + $0x80] sm:$0xff]
  %v1487 = vld [vmem:[#allocation2 + $0x88] sm:$0xff]
  %v1488 = vld [vmem:[#allocation2 + $0x90] sm:$0xff]
  %v1489 = vld [vmem:[#allocation2 + $0x98] sm:$0xff]
  %v1490 = vld [vmem:[#allocation2 + $0xa0] sm:$0xff]
  %v1491 = vld [vmem:[#allocation2 + $0xa8] sm:$0xff]
  %v1492 = vld [vmem:[#allocation2 + $0xb0] sm:$0xff]
  %v1493 = vld [vmem:[#allocation2 + $0xb8] sm:$0xff]
  %v1494 = vld [vmem:[#allocation2 + $0xc0] sm:$0xff]
  %v1495 = vld [vmem:[#allocation2 + $0xc8] sm:$0xff]
  %v1496 = vadd.f32 %v1470, %v1393
  %v1497 = vadd.f32 %v1471, %v1396
  %v1498 = vadd.f32 %v1472, %v1399
  %v1499 = vadd.f32 %v1473, %v1402
  %v1500 = vadd.f32 %v1474, %v1405
  %v1501 = vadd.f32 %v1475, %v1408
  %v1502 = vadd.f32 %v1476, %v1411
  %v1503 = vadd.f32 %v1477, %v1414
  %v1504 = vadd.f32 %v1478, %v1417
  %v1505 = vadd.f32 %v1479, %v1420
  %v1506 = vadd.f32 %v1480, %v1423
  %v1507 = vadd.f32 %v1481, %v1426
  %v1508 = vadd.f32 %v1482, %v1429
  %v1509 = vadd.f32 %v1483, %v1432
  %v1510 = vadd.f32 %v1484, %v1435
  %v1511 = vadd.f32 %v1485, %v1438
  %v1512 = vadd.f32 %v1486, %v1441
  %v1513 = vadd.f32 %v1487, %v1444
  %v1514 = vadd.f32 %v1488, %v1447
  %v1515 = vadd.f32 %v1489, %v1450
  %v1516 = vadd.f32 %v1490, %v1453
  %v1517 = vadd.f32 %v1491, %v1456
  %v1518 = vadd.f32 %v1492, %v1459
  %v1519 = vadd.f32 %v1493, %v1462
  %v1520 = vadd.f32 %v1494, %v1465
  %v1521 = vadd.f32 %v1495, %v1468
  %1522 = vst [vmem:[#allocation2] sm:$0xff] %v1496
  %1523 = vst [vmem:[#allocation2 + $0x8] sm:$0xff] %v1497
  %1524 = vst [vmem:[#allocation2 + $0x10] sm:$0xff] %v1498
  %1525 = vst [vmem:[#allocation2 + $0x18] sm:$0xff] %v1499
  %1526 = vst [vmem:[#allocation2 + $0x20] sm:$0xff] %v1500
  %1527 = vst [vmem:[#allocation2 + $0x28] sm:$0xff] %v1501
  %1528 = vst [vmem:[#allocation2 + $0x30] sm:$0xff] %v1502
  %1529 = vst [vmem:[#allocation2 + $0x38] sm:$0xff] %v1503
  %1530 = vst [vmem:[#allocation2 + $0x40] sm:$0xff] %v1504
  %1531 = vst [vmem:[#allocation2 + $0x48] sm:$0xff] %v1505
  %1532 = vst [vmem:[#allocation2 + $0x50] sm:$0xff] %v1506
  %1533 = vst [vmem:[#allocation2 + $0x58] sm:$0xff] %v1507
  %1534 = vst [vmem:[#allocation2 + $0x60] sm:$0xff] %v1508
  %1535 = vst [vmem:[#allocation2 + $0x68] sm:$0xff] %v1509
  %1536 = vst [vmem:[#allocation2 + $0x70] sm:$0xff] %v1510
  %1537 = vst [vmem:[#allocation2 + $0x78] sm:$0xff] %v1511
  %1538 = vst [vmem:[#allocation2 + $0x80] sm:$0xff] %v1512
  %1539 = vst [vmem:[#allocation2 + $0x88] sm:$0xff] %v1513
  %1540 = vst [vmem:[#allocation2 + $0x90] sm:$0xff] %v1514
  %1541 = vst [vmem:[#allocation2 + $0x98] sm:$0xff] %v1515
  %1542 = vst [vmem:[#allocation2 + $0xa0] sm:$0xff] %v1516
  %1543 = vst [vmem:[#allocation2 + $0xa8] sm:$0xff] %v1517
  %1544 = vst [vmem:[#allocation2 + $0xb0] sm:$0xff] %v1518
  %1545 = vst [vmem:[#allocation2 + $0xb8] sm:$0xff] %v1519
  %1546 = vst [vmem:[#allocation2 + $0xc0] sm:$0xff] %v1520
  %1547 = vst [vmem:[#allocation2 + $0xc8] sm:$0xff] %v1521
  %v1548 = vrot.slane %v38, 7
  %v1549 = vrot.slane %v39, 7
  %v1550 = vrot.slane %v40, 7
  %v1551 = vrot.slane %v41, 7
  %v1552 = vrot.slane %v42, 7
  %v1553 = vrot.slane %v43, 7
  %v1554 = vrot.slane %v44, 7
  %v1555 = vrot.slane %v45, 7
  %v1556 = vrot.slane %v46, 7
  %v1557 = vrot.slane %v47, 7
  %v1558 = vrot.slane %v48, 7
  %v1559 = vrot.slane %v49, 7
  %v1560 = vrot.slane %v50, 7
  %v1561 = vrot.slane %v51, 7
  %v1562 = vrot.slane %v52, 7
  %v1563 = vrot.slane %v53, 7
  %v1564 = vrot.slane %v54, 7
  %v1565 = vrot.slane %v55, 7
  %v1566 = vrot.slane %v56, 7
  %v1567 = vrot.slane %v57, 7
  %v1568 = vrot.slane %v58, 7
  %v1569 = vrot.slane %v59, 7
  %v1570 = vrot.slane %v60, 7
  %v1571 = vrot.slane %v61, 7
  %v1572 = vrot.slane %v62, 7
  %v1573 = vrot.slane %v63, 7
  %vm1574 = vcmp.lt.s32.totalorder %v91, 1
  %v1575 = vsel %vm1574, %v1572, %v1573
  %v1576 = vsel %vm1574, %v1571, %v1572
  %v1577 = vsel %vm1574, %v1570, %v1571
  %v1578 = vsel %vm1574, %v1569, %v1570
  %v1579 = vsel %vm1574, %v1568, %v1569
  %v1580 = vsel %vm1574, %v1567, %v1568
  %v1581 = vsel %vm1574, %v1566, %v1567
  %v1582 = vsel %vm1574, %v1565, %v1566
  %v1583 = vsel %vm1574, %v1564, %v1565
  %v1584 = vsel %vm1574, %v1563, %v1564
  %v1585 = vsel %vm1574, %v1562, %v1563
  %v1586 = vsel %vm1574, %v1561, %v1562
  %v1587 = vsel %vm1574, %v1560, %v1561
  %v1588 = vsel %vm1574, %v1559, %v1560
  %v1589 = vsel %vm1574, %v1558, %v1559
  %v1590 = vsel %vm1574, %v1557, %v1558
  %v1591 = vsel %vm1574, %v1556, %v1557
  %v1592 = vsel %vm1574, %v1555, %v1556
  %v1593 = vsel %vm1574, %v1554, %v1555
  %v1594 = vsel %vm1574, %v1553, %v1554
  %v1595 = vsel %vm1574, %v1552, %v1553
  %v1596 = vsel %vm1574, %v1551, %v1552
  %v1597 = vsel %vm1574, %v1550, %v1551
  %v1598 = vsel %vm1574, %v1549, %v1550
  %v1599 = vsel %vm1574, %v1548, %v1549
  %v1600 = vsel %vm1574, %v1573, %v1548
  %s1601 = scalar_lea.vmem %s1, 768
  %v1602 = vld [vmem:[%s1601] sm:$0xff]
  %v1603 = vld [vmem:[%s1601 + $0x8] sm:$0xff]
  %v1604 = vld [vmem:[%s1601 + $0x10] sm:$0xff]
  %v1605 = vld [vmem:[%s1601 + $0x18] sm:$0xff]
  %v1606 = vld [vmem:[%s1601 + $0x20] sm:$0xff]
  %v1607 = vld [vmem:[%s1601 + $0x28] sm:$0xff]
  %v1608 = vld [vmem:[%s1601 + $0x30] sm:$0xff]
  %v1609 = vld [vmem:[%s1601 + $0x38] sm:$0xff]
  %v1610 = vld [vmem:[%s1601 + $0x40] sm:$0xff]
  %v1611 = vld [vmem:[%s1601 + $0x48] sm:$0xff]
  %v1612 = vld [vmem:[%s1601 + $0x50] sm:$0xff]
  %v1613 = vld [vmem:[%s1601 + $0x58] sm:$0xff]
  %v1614 = vld [vmem:[%s1601 + $0x60] sm:$0xff]
  %v1615 = vld [vmem:[%s1601 + $0x68] sm:$0xff]
  %v1616 = vld [vmem:[%s1601 + $0x70] sm:$0xff]
  %v1617 = vld [vmem:[%s1601 + $0x78] sm:$0xff]
  %1618 = vmatpush.msra.mxu0 %v1617
  %1619 = vmatpush.msra.mxu0 %v1616
  %1620 = vmatpush.msra.mxu0 %v1615
  %1621 = vmatpush.msra.mxu0 %v1614
  %1622 = vmatpush.msra.mxu0 %v1613
  %1623 = vmatpush.msra.mxu0 %v1612
  %1624 = vmatpush.msra.mxu0 %v1611
  %1625 = vmatpush.msra.mxu0 %v1610
  %1626 = vmatpush.msra.mxu0 %v1609
  %1627 = vmatpush.msra.mxu0 %v1608
  %1628 = vmatpush.msra.mxu0 %v1607
  %1629 = vmatpush.msra.mxu0 %v1606
  %1630 = vmatpush.msra.mxu0 %v1605
  %1631 = vmatpush.msra.mxu0 %v1604
  %1632 = vmatpush.msra.mxu0 %v1603
  %1633 = vmatpush.msra.mxu0 %v1602
  %1634 = vmatmul.f32.gmra.mxu0 %v1600
  %v1635 = vpop.f32.mrf.mxu0
  %v1636 = vadd.f32 0.0, %v1635
  %1637 = vmatmul.f32.gmra.mxu0 %v1599
  %v1638 = vpop.f32.mrf.mxu0
  %v1639 = vadd.f32 0.0, %v1638
  %1640 = vmatmul.f32.gmra.mxu0 %v1598
  %v1641 = vpop.f32.mrf.mxu0
  %v1642 = vadd.f32 0.0, %v1641
  %1643 = vmatmul.f32.gmra.mxu0 %v1597
  %v1644 = vpop.f32.mrf.mxu0
  %v1645 = vadd.f32 0.0, %v1644
  %1646 = vmatmul.f32.gmra.mxu0 %v1596
  %v1647 = vpop.f32.mrf.mxu0
  %v1648 = vadd.f32 0.0, %v1647
  %1649 = vmatmul.f32.gmra.mxu0 %v1595
  %v1650 = vpop.f32.mrf.mxu0
  %v1651 = vadd.f32 0.0, %v1650
  %1652 = vmatmul.f32.gmra.mxu0 %v1594
  %v1653 = vpop.f32.mrf.mxu0
  %v1654 = vadd.f32 0.0, %v1653
  %1655 = vmatmul.f32.gmra.mxu0 %v1593
  %v1656 = vpop.f32.mrf.mxu0
  %v1657 = vadd.f32 0.0, %v1656
  %1658 = vmatmul.f32.gmra.mxu0 %v1592
  %v1659 = vpop.f32.mrf.mxu0
  %v1660 = vadd.f32 0.0, %v1659
  %1661 = vmatmul.f32.gmra.mxu0 %v1591
  %v1662 = vpop.f32.mrf.mxu0
  %v1663 = vadd.f32 0.0, %v1662
  %1664 = vmatmul.f32.gmra.mxu0 %v1590
  %v1665 = vpop.f32.mrf.mxu0
  %v1666 = vadd.f32 0.0, %v1665
  %1667 = vmatmul.f32.gmra.mxu0 %v1589
  %v1668 = vpop.f32.mrf.mxu0
  %v1669 = vadd.f32 0.0, %v1668
  %1670 = vmatmul.f32.gmra.mxu0 %v1588
  %v1671 = vpop.f32.mrf.mxu0
  %v1672 = vadd.f32 0.0, %v1671
  %1673 = vmatmul.f32.gmra.mxu0 %v1587
  %v1674 = vpop.f32.mrf.mxu0
  %v1675 = vadd.f32 0.0, %v1674
  %1676 = vmatmul.f32.gmra.mxu0 %v1586
  %v1677 = vpop.f32.mrf.mxu0
  %v1678 = vadd.f32 0.0, %v1677
  %1679 = vmatmul.f32.gmra.mxu0 %v1585
  %v1680 = vpop.f32.mrf.mxu0
  %v1681 = vadd.f32 0.0, %v1680
  %1682 = vmatmul.f32.gmra.mxu0 %v1584
  %v1683 = vpop.f32.mrf.mxu0
  %v1684 = vadd.f32 0.0, %v1683
  %1685 = vmatmul.f32.gmra.mxu0 %v1583
  %v1686 = vpop.f32.mrf.mxu0
  %v1687 = vadd.f32 0.0, %v1686
  %1688 = vmatmul.f32.gmra.mxu0 %v1582
  %v1689 = vpop.f32.mrf.mxu0
  %v1690 = vadd.f32 0.0, %v1689
  %1691 = vmatmul.f32.gmra.mxu0 %v1581
  %v1692 = vpop.f32.mrf.mxu0
  %v1693 = vadd.f32 0.0, %v1692
  %1694 = vmatmul.f32.gmra.mxu0 %v1580
  %v1695 = vpop.f32.mrf.mxu0
  %v1696 = vadd.f32 0.0, %v1695
  %1697 = vmatmul.f32.gmra.mxu0 %v1579
  %v1698 = vpop.f32.mrf.mxu0
  %v1699 = vadd.f32 0.0, %v1698
  %1700 = vmatmul.f32.gmra.mxu0 %v1578
  %v1701 = vpop.f32.mrf.mxu0
  %v1702 = vadd.f32 0.0, %v1701
  %1703 = vmatmul.f32.gmra.mxu0 %v1577
  %v1704 = vpop.f32.mrf.mxu0
  %v1705 = vadd.f32 0.0, %v1704
  %1706 = vmatmul.f32.gmra.mxu0 %v1576
  %v1707 = vpop.f32.mrf.mxu0
  %v1708 = vadd.f32 0.0, %v1707
  %1709 = vmatmul.f32.gmra.mxu0 %v1575
  %v1710 = vpop.f32.mrf.mxu0
  %v1711 = vadd.f32 0.0, %v1710
  %1712 = vdwg.mxu0
  %v1713 = vld [vmem:[#allocation2] sm:$0xff]
  %v1714 = vld [vmem:[#allocation2 + $0x8] sm:$0xff]
  %v1715 = vld [vmem:[#allocation2 + $0x10] sm:$0xff]
  %v1716 = vld [vmem:[#allocation2 + $0x18] sm:$0xff]
  %v1717 = vld [vmem:[#allocation2 + $0x20] sm:$0xff]
  %v1718 = vld [vmem:[#allocation2 + $0x28] sm:$0xff]
  %v1719 = vld [vmem:[#allocation2 + $0x30] sm:$0xff]
  %v1720 = vld [vmem:[#allocation2 + $0x38] sm:$0xff]
  %v1721 = vld [vmem:[#allocation2 + $0x40] sm:$0xff]
  %v1722 = vld [vmem:[#allocation2 + $0x48] sm:$0xff]
  %v1723 = vld [vmem:[#allocation2 + $0x50] sm:$0xff]
  %v1724 = vld [vmem:[#allocation2 + $0x58] sm:$0xff]
  %v1725 = vld [vmem:[#allocation2 + $0x60] sm:$0xff]
  %v1726 = vld [vmem:[#allocation2 + $0x68] sm:$0xff]
  %v1727 = vld [vmem:[#allocation2 + $0x70] sm:$0xff]
  %v1728 = vld [vmem:[#allocation2 + $0x78] sm:$0xff]
  %v1729 = vld [vmem:[#allocation2 + $0x80] sm:$0xff]
  %v1730 = vld [vmem:[#allocation2 + $0x88] sm:$0xff]
  %v1731 = vld [vmem:[#allocation2 + $0x90] sm:$0xff]
  %v1732 = vld [vmem:[#allocation2 + $0x98] sm:$0xff]
  %v1733 = vld [vmem:[#allocation2 + $0xa0] sm:$0xff]
  %v1734 = vld [vmem:[#allocation2 + $0xa8] sm:$0xff]
  %v1735 = vld [vmem:[#allocation2 + $0xb0] sm:$0xff]
  %v1736 = vld [vmem:[#allocation2 + $0xb8] sm:$0xff]
  %v1737 = vld [vmem:[#allocation2 + $0xc0] sm:$0xff]
  %v1738 = vld [vmem:[#allocation2 + $0xc8] sm:$0xff]
  %v1739 = vadd.f32 %v1713, %v1636
  %v1740 = vadd.f32 %v1714, %v1639
  %v1741 = vadd.f32 %v1715, %v1642
  %v1742 = vadd.f32 %v1716, %v1645
  %v1743 = vadd.f32 %v1717, %v1648
  %v1744 = vadd.f32 %v1718, %v1651
  %v1745 = vadd.f32 %v1719, %v1654
  %v1746 = vadd.f32 %v1720, %v1657
  %v1747 = vadd.f32 %v1721, %v1660
  %v1748 = vadd.f32 %v1722, %v1663
  %v1749 = vadd.f32 %v1723, %v1666
  %v1750 = vadd.f32 %v1724, %v1669
  %v1751 = vadd.f32 %v1725, %v1672
  %v1752 = vadd.f32 %v1726, %v1675
  %v1753 = vadd.f32 %v1727, %v1678
  %v1754 = vadd.f32 %v1728, %v1681
  %v1755 = vadd.f32 %v1729, %v1684
  %v1756 = vadd.f32 %v1730, %v1687
  %v1757 = vadd.f32 %v1731, %v1690
  %v1758 = vadd.f32 %v1732, %v1693
  %v1759 = vadd.f32 %v1733, %v1696
  %v1760 = vadd.f32 %v1734, %v1699
  %v1761 = vadd.f32 %v1735, %v1702
  %v1762 = vadd.f32 %v1736, %v1705
  %v1763 = vadd.f32 %v1737, %v1708
  %v1764 = vadd.f32 %v1738, %v1711
  %1765 = vst [vmem:[#allocation2] sm:$0xff] %v1739
  %1766 = vst [vmem:[#allocation2 + $0x8] sm:$0xff] %v1740
  %1767 = vst [vmem:[#allocation2 + $0x10] sm:$0xff] %v1741
  %1768 = vst [vmem:[#allocation2 + $0x18] sm:$0xff] %v1742
  %1769 = vst [vmem:[#allocation2 + $0x20] sm:$0xff] %v1743
  %1770 = vst [vmem:[#allocation2 + $0x28] sm:$0xff] %v1744
  %1771 = vst [vmem:[#allocation2 + $0x30] sm:$0xff] %v1745
  %1772 = vst [vmem:[#allocation2 + $0x38] sm:$0xff] %v1746
  %1773 = vst [vmem:[#allocation2 + $0x40] sm:$0xff] %v1747
  %1774 = vst [vmem:[#allocation2 + $0x48] sm:$0xff] %v1748
  %1775 = vst [vmem:[#allocation2 + $0x50] sm:$0xff] %v1749
  %1776 = vst [vmem:[#allocation2 + $0x58] sm:$0xff] %v1750
  %1777 = vst [vmem:[#allocation2 + $0x60] sm:$0xff] %v1751
  %1778 = vst [vmem:[#allocation2 + $0x68] sm:$0xff] %v1752
  %1779 = vst [vmem:[#allocation2 + $0x70] sm:$0xff] %v1753
  %1780 = vst [vmem:[#allocation2 + $0x78] sm:$0xff] %v1754
  %1781 = vst [vmem:[#allocation2 + $0x80] sm:$0xff] %v1755
  %1782 = vst [vmem:[#allocation2 + $0x88] sm:$0xff] %v1756
  %1783 = vst [vmem:[#allocation2 + $0x90] sm:$0xff] %v1757
  %1784 = vst [vmem:[#allocation2 + $0x98] sm:$0xff] %v1758
  %1785 = vst [vmem:[#allocation2 + $0xa0] sm:$0xff] %v1759
  %1786 = vst [vmem:[#allocation2 + $0xa8] sm:$0xff] %v1760
  %1787 = vst [vmem:[#allocation2 + $0xb0] sm:$0xff] %v1761
  %1788 = vst [vmem:[#allocation2 + $0xb8] sm:$0xff] %v1762
  %1789 = vst [vmem:[#allocation2 + $0xc0] sm:$0xff] %v1763
  %1790 = vst [vmem:[#allocation2 + $0xc8] sm:$0xff] %v1764
  %v1791 = vrot.slane %v257, 7
  %v1792 = vrot.slane %v258, 7
  %v1793 = vrot.slane %v259, 7
  %v1794 = vrot.slane %v260, 7
  %v1795 = vrot.slane %v261, 7
  %v1796 = vrot.slane %v262, 7
  %v1797 = vrot.slane %v263, 7
  %v1798 = vrot.slane %v264, 7
  %v1799 = vrot.slane %v265, 7
  %v1800 = vrot.slane %v266, 7
  %v1801 = vrot.slane %v267, 7
  %v1802 = vrot.slane %v268, 7
  %v1803 = vrot.slane %v269, 7
  %v1804 = vrot.slane %v270, 7
  %v1805 = vrot.slane %v271, 7
  %v1806 = vrot.slane %v272, 7
  %v1807 = vrot.slane %v273, 7
  %v1808 = vrot.slane %v274, 7
  %v1809 = vrot.slane %v275, 7
  %v1810 = vrot.slane %v276, 7
  %v1811 = vrot.slane %v277, 7
  %v1812 = vrot.slane %v278, 7
  %v1813 = vrot.slane %v279, 7
  %v1814 = vrot.slane %v280, 7
  %v1815 = vrot.slane %v281, 7
  %v1816 = vrot.slane %v282, 7
  %v1817 = vsel %vm1574, %v1815, %v1816
  %v1818 = vsel %vm1574, %v1814, %v1815
  %v1819 = vsel %vm1574, %v1813, %v1814
  %v1820 = vsel %vm1574, %v1812, %v1813
  %v1821 = vsel %vm1574, %v1811, %v1812
  %v1822 = vsel %vm1574, %v1810, %v1811
  %v1823 = vsel %vm1574, %v1809, %v1810
  %v1824 = vsel %vm1574, %v1808, %v1809
  %v1825 = vsel %vm1574, %v1807, %v1808
  %v1826 = vsel %vm1574, %v1806, %v1807
  %v1827 = vsel %vm1574, %v1805, %v1806
  %v1828 = vsel %vm1574, %v1804, %v1805
  %v1829 = vsel %vm1574, %v1803, %v1804
  %v1830 = vsel %vm1574, %v1802, %v1803
  %v1831 = vsel %vm1574, %v1801, %v1802
  %v1832 = vsel %vm1574, %v1800, %v1801
  %v1833 = vsel %vm1574, %v1799, %v1800
  %v1834 = vsel %vm1574, %v1798, %v1799
  %v1835 = vsel %vm1574, %v1797, %v1798
  %v1836 = vsel %vm1574, %v1796, %v1797
  %v1837 = vsel %vm1574, %v1795, %v1796
  %v1838 = vsel %vm1574, %v1794, %v1795
  %v1839 = vsel %vm1574, %v1793, %v1794
  %v1840 = vsel %vm1574, %v1792, %v1793
  %v1841 = vsel %vm1574, %v1791, %v1792
  %v1842 = vsel %vm1574, %v1816, %v1791
  %s1843 = scalar_lea.vmem %s1, 896
  %v1844 = vld [vmem:[%s1843] sm:$0xff]
  %v1845 = vld [vmem:[%s1843 + $0x8] sm:$0xff]
  %v1846 = vld [vmem:[%s1843 + $0x10] sm:$0xff]
  %v1847 = vld [vmem:[%s1843 + $0x18] sm:$0xff]
  %v1848 = vld [vmem:[%s1843 + $0x20] sm:$0xff]
  %v1849 = vld [vmem:[%s1843 + $0x28] sm:$0xff]
  %v1850 = vld [vmem:[%s1843 + $0x30] sm:$0xff]
  %v1851 = vld [vmem:[%s1843 + $0x38] sm:$0xff]
  %v1852 = vld [vmem:[%s1843 + $0x40] sm:$0xff]
  %v1853 = vld [vmem:[%s1843 + $0x48] sm:$0xff]
  %v1854 = vld [vmem:[%s1843 + $0x50] sm:$0xff]
  %v1855 = vld [vmem:[%s1843 + $0x58] sm:$0xff]
  %v1856 = vld [vmem:[%s1843 + $0x60] sm:$0xff]
  %v1857 = vld [vmem:[%s1843 + $0x68] sm:$0xff]
  %v1858 = vld [vmem:[%s1843 + $0x70] sm:$0xff]
  %v1859 = vld [vmem:[%s1843 + $0x78] sm:$0xff]
  %1860 = vmatpush.msra.mxu0 %v1859
  %1861 = vmatpush.msra.mxu0 %v1858
  %1862 = vmatpush.msra.mxu0 %v1857
  %1863 = vmatpush.msra.mxu0 %v1856
  %1864 = vmatpush.msra.mxu0 %v1855
  %1865 = vmatpush.msra.mxu0 %v1854
  %1866 = vmatpush.msra.mxu0 %v1853
  %1867 = vmatpush.msra.mxu0 %v1852
  %1868 = vmatpush.msra.mxu0 %v1851
  %1869 = vmatpush.msra.mxu0 %v1850
  %1870 = vmatpush.msra.mxu0 %v1849
  %1871 = vmatpush.msra.mxu0 %v1848
  %1872 = vmatpush.msra.mxu0 %v1847
  %1873 = vmatpush.msra.mxu0 %v1846
  %1874 = vmatpush.msra.mxu0 %v1845
  %1875 = vmatpush.msra.mxu0 %v1844
  %1876 = vmatmul.f32.gmra.mxu0 %v1842
  %v1877 = vpop.f32.mrf.mxu0
  %v1878 = vadd.f32 0.0, %v1877
  %1879 = vmatmul.f32.gmra.mxu0 %v1841
  %v1880 = vpop.f32.mrf.mxu0
  %v1881 = vadd.f32 0.0, %v1880
  %1882 = vmatmul.f32.gmra.mxu0 %v1840
  %v1883 = vpop.f32.mrf.mxu0
  %v1884 = vadd.f32 0.0, %v1883
  %1885 = vmatmul.f32.gmra.mxu0 %v1839
  %v1886 = vpop.f32.mrf.mxu0
  %v1887 = vadd.f32 0.0, %v1886
  %1888 = vmatmul.f32.gmra.mxu0 %v1838
  %v1889 = vpop.f32.mrf.mxu0
  %v1890 = vadd.f32 0.0, %v1889
  %1891 = vmatmul.f32.gmra.mxu0 %v1837
  %v1892 = vpop.f32.mrf.mxu0
  %v1893 = vadd.f32 0.0, %v1892
  %1894 = vmatmul.f32.gmra.mxu0 %v1836
  %v1895 = vpop.f32.mrf.mxu0
  %v1896 = vadd.f32 0.0, %v1895
  %1897 = vmatmul.f32.gmra.mxu0 %v1835
  %v1898 = vpop.f32.mrf.mxu0
  %v1899 = vadd.f32 0.0, %v1898
  %1900 = vmatmul.f32.gmra.mxu0 %v1834
  %v1901 = vpop.f32.mrf.mxu0
  %v1902 = vadd.f32 0.0, %v1901
  %1903 = vmatmul.f32.gmra.mxu0 %v1833
  %v1904 = vpop.f32.mrf.mxu0
  %v1905 = vadd.f32 0.0, %v1904
  %1906 = vmatmul.f32.gmra.mxu0 %v1832
  %v1907 = vpop.f32.mrf.mxu0
  %v1908 = vadd.f32 0.0, %v1907
  %1909 = vmatmul.f32.gmra.mxu0 %v1831
  %v1910 = vpop.f32.mrf.mxu0
  %v1911 = vadd.f32 0.0, %v1910
  %1912 = vmatmul.f32.gmra.mxu0 %v1830
  %v1913 = vpop.f32.mrf.mxu0
  %v1914 = vadd.f32 0.0, %v1913
  %1915 = vmatmul.f32.gmra.mxu0 %v1829
  %v1916 = vpop.f32.mrf.mxu0
  %v1917 = vadd.f32 0.0, %v1916
  %1918 = vmatmul.f32.gmra.mxu0 %v1828
  %v1919 = vpop.f32.mrf.mxu0
  %v1920 = vadd.f32 0.0, %v1919
  %1921 = vmatmul.f32.gmra.mxu0 %v1827
  %v1922 = vpop.f32.mrf.mxu0
  %v1923 = vadd.f32 0.0, %v1922
  %1924 = vmatmul.f32.gmra.mxu0 %v1826
  %v1925 = vpop.f32.mrf.mxu0
  %v1926 = vadd.f32 0.0, %v1925
  %1927 = vmatmul.f32.gmra.mxu0 %v1825
  %v1928 = vpop.f32.mrf.mxu0
  %v1929 = vadd.f32 0.0, %v1928
  %1930 = vmatmul.f32.gmra.mxu0 %v1824
  %v1931 = vpop.f32.mrf.mxu0
  %v1932 = vadd.f32 0.0, %v1931
  %1933 = vmatmul.f32.gmra.mxu0 %v1823
  %v1934 = vpop.f32.mrf.mxu0
  %v1935 = vadd.f32 0.0, %v1934
  %1936 = vmatmul.f32.gmra.mxu0 %v1822
  %v1937 = vpop.f32.mrf.mxu0
  %v1938 = vadd.f32 0.0, %v1937
  %1939 = vmatmul.f32.gmra.mxu0 %v1821
  %v1940 = vpop.f32.mrf.mxu0
  %v1941 = vadd.f32 0.0, %v1940
  %1942 = vmatmul.f32.gmra.mxu0 %v1820
  %v1943 = vpop.f32.mrf.mxu0
  %v1944 = vadd.f32 0.0, %v1943
  %1945 = vmatmul.f32.gmra.mxu0 %v1819
  %v1946 = vpop.f32.mrf.mxu0
  %v1947 = vadd.f32 0.0, %v1946
  %1948 = vmatmul.f32.gmra.mxu0 %v1818
  %v1949 = vpop.f32.mrf.mxu0
  %v1950 = vadd.f32 0.0, %v1949
  %1951 = vmatmul.f32.gmra.mxu0 %v1817
  %v1952 = vpop.f32.mrf.mxu0
  %v1953 = vadd.f32 0.0, %v1952
  %1954 = vdwg.mxu0
  %v1955 = vld [vmem:[#allocation2] sm:$0xff]
  %v1956 = vld [vmem:[#allocation2 + $0x8] sm:$0xff]
  %v1957 = vld [vmem:[#allocation2 + $0x10] sm:$0xff]
  %v1958 = vld [vmem:[#allocation2 + $0x18] sm:$0xff]
  %v1959 = vld [vmem:[#allocation2 + $0x20] sm:$0xff]
  %v1960 = vld [vmem:[#allocation2 + $0x28] sm:$0xff]
  %v1961 = vld [vmem:[#allocation2 + $0x30] sm:$0xff]
  %v1962 = vld [vmem:[#allocation2 + $0x38] sm:$0xff]
  %v1963 = vld [vmem:[#allocation2 + $0x40] sm:$0xff]
  %v1964 = vld [vmem:[#allocation2 + $0x48] sm:$0xff]
  %v1965 = vld [vmem:[#allocation2 + $0x50] sm:$0xff]
  %v1966 = vld [vmem:[#allocation2 + $0x58] sm:$0xff]
  %v1967 = vld [vmem:[#allocation2 + $0x60] sm:$0xff]
  %v1968 = vld [vmem:[#allocation2 + $0x68] sm:$0xff]
  %v1969 = vld [vmem:[#allocation2 + $0x70] sm:$0xff]
  %v1970 = vld [vmem:[#allocation2 + $0x78] sm:$0xff]
  %v1971 = vld [vmem:[#allocation2 + $0x80] sm:$0xff]
  %v1972 = vld [vmem:[#allocation2 + $0x88] sm:$0xff]
  %v1973 = vld [vmem:[#allocation2 + $0x90] sm:$0xff]
  %v1974 = vld [vmem:[#allocation2 + $0x98] sm:$0xff]
  %v1975 = vld [vmem:[#allocation2 + $0xa0] sm:$0xff]
  %v1976 = vld [vmem:[#allocation2 + $0xa8] sm:$0xff]
  %v1977 = vld [vmem:[#allocation2 + $0xb0] sm:$0xff]
  %v1978 = vld [vmem:[#allocation2 + $0xb8] sm:$0xff]
  %v1979 = vld [vmem:[#allocation2 + $0xc0] sm:$0xff]
  %v1980 = vld [vmem:[#allocation2 + $0xc8] sm:$0xff]
  %v1981 = vadd.f32 %v1955, %v1878
  %v1982 = vadd.f32 %v1956, %v1881
  %v1983 = vadd.f32 %v1957, %v1884
  %v1984 = vadd.f32 %v1958, %v1887
  %v1985 = vadd.f32 %v1959, %v1890
  %v1986 = vadd.f32 %v1960, %v1893
  %v1987 = vadd.f32 %v1961, %v1896
  %v1988 = vadd.f32 %v1962, %v1899
  %v1989 = vadd.f32 %v1963, %v1902
  %v1990 = vadd.f32 %v1964, %v1905
  %v1991 = vadd.f32 %v1965, %v1908
  %v1992 = vadd.f32 %v1966, %v1911
  %v1993 = vadd.f32 %v1967, %v1914
  %v1994 = vadd.f32 %v1968, %v1917
  %v1995 = vadd.f32 %v1969, %v1920
  %v1996 = vadd.f32 %v1970, %v1923
  %v1997 = vadd.f32 %v1971, %v1926
  %v1998 = vadd.f32 %v1972, %v1929
  %v1999 = vadd.f32 %v1973, %v1932
  %v2000 = vadd.f32 %v1974, %v1935
  %v2001 = vadd.f32 %v1975, %v1938
  %v2002 = vadd.f32 %v1976, %v1941
  %v2003 = vadd.f32 %v1977, %v1944
  %v2004 = vadd.f32 %v1978, %v1947
  %v2005 = vadd.f32 %v1979, %v1950
  %v2006 = vadd.f32 %v1980, %v1953
  %2007 = vst [vmem:[#allocation2] sm:$0xff] %v1981
  %2008 = vst [vmem:[#allocation2 + $0x8] sm:$0xff] %v1982
  %2009 = vst [vmem:[#allocation2 + $0x10] sm:$0xff] %v1983
  %2010 = vst [vmem:[#allocation2 + $0x18] sm:$0xff] %v1984
  %2011 = vst [vmem:[#allocation2 + $0x20] sm:$0xff] %v1985
  %2012 = vst [vmem:[#allocation2 + $0x28] sm:$0xff] %v1986
  %2013 = vst [vmem:[#allocation2 + $0x30] sm:$0xff] %v1987
  %2014 = vst [vmem:[#allocation2 + $0x38] sm:$0xff] %v1988
  %2015 = vst [vmem:[#allocation2 + $0x40] sm:$0xff] %v1989
  %2016 = vst [vmem:[#allocation2 + $0x48] sm:$0xff] %v1990
  %2017 = vst [vmem:[#allocation2 + $0x50] sm:$0xff] %v1991
  %2018 = vst [vmem:[#allocation2 + $0x58] sm:$0xff] %v1992
  %2019 = vst [vmem:[#allocation2 + $0x60] sm:$0xff] %v1993
  %2020 = vst [vmem:[#allocation2 + $0x68] sm:$0xff] %v1994
  %2021 = vst [vmem:[#allocation2 + $0x70] sm:$0xff] %v1995
  %2022 = vst [vmem:[#allocation2 + $0x78] sm:$0xff] %v1996
  %2023 = vst [vmem:[#allocation2 + $0x80] sm:$0xff] %v1997
  %2024 = vst [vmem:[#allocation2 + $0x88] sm:$0xff] %v1998
  %2025 = vst [vmem:[#allocation2 + $0x90] sm:$0xff] %v1999
  %2026 = vst [vmem:[#allocation2 + $0x98] sm:$0xff] %v2000
  %2027 = vst [vmem:[#allocation2 + $0xa0] sm:$0xff] %v2001
  %2028 = vst [vmem:[#allocation2 + $0xa8] sm:$0xff] %v2002
  %2029 = vst [vmem:[#allocation2 + $0xb0] sm:$0xff] %v2003
  %2030 = vst [vmem:[#allocation2 + $0xb8] sm:$0xff] %v2004
  %2031 = vst [vmem:[#allocation2 + $0xc0] sm:$0xff] %v2005
  %2032 = vst [vmem:[#allocation2 + $0xc8] sm:$0xff] %v2006
  %s2033 = scalar_lea.vmem %s1, 1024
  %v2034 = vld [vmem:[%s2033] sm:$0xff]
  %v2035 = vld [vmem:[%s2033 + $0x8] sm:$0xff]
  %v2036 = vld [vmem:[%s2033 + $0x10] sm:$0xff]
  %v2037 = vld [vmem:[%s2033 + $0x18] sm:$0xff]
  %v2038 = vld [vmem:[%s2033 + $0x20] sm:$0xff]
  %v2039 = vld [vmem:[%s2033 + $0x28] sm:$0xff]
  %v2040 = vld [vmem:[%s2033 + $0x30] sm:$0xff]
  %v2041 = vld [vmem:[%s2033 + $0x38] sm:$0xff]
  %v2042 = vld [vmem:[%s2033 + $0x40] sm:$0xff]
  %v2043 = vld [vmem:[%s2033 + $0x48] sm:$0xff]
  %v2044 = vld [vmem:[%s2033 + $0x50] sm:$0xff]
  %v2045 = vld [vmem:[%s2033 + $0x58] sm:$0xff]
  %v2046 = vld [vmem:[%s2033 + $0x60] sm:$0xff]
  %v2047 = vld [vmem:[%s2033 + $0x68] sm:$0xff]
  %v2048 = vld [vmem:[%s2033 + $0x70] sm:$0xff]
  %v2049 = vld [vmem:[%s2033 + $0x78] sm:$0xff]
  %2050 = vmatpush.msra.mxu0 %v2049
  %2051 = vmatpush.msra.mxu0 %v2048
  %2052 = vmatpush.msra.mxu0 %v2047
  %2053 = vmatpush.msra.mxu0 %v2046
  %2054 = vmatpush.msra.mxu0 %v2045
  %2055 = vmatpush.msra.mxu0 %v2044
  %2056 = vmatpush.msra.mxu0 %v2043
  %2057 = vmatpush.msra.mxu0 %v2042
  %2058 = vmatpush.msra.mxu0 %v2041
  %2059 = vmatpush.msra.mxu0 %v2040
  %2060 = vmatpush.msra.mxu0 %v2039
  %2061 = vmatpush.msra.mxu0 %v2038
  %2062 = vmatpush.msra.mxu0 %v2037
  %2063 = vmatpush.msra.mxu0 %v2036
  %2064 = vmatpush.msra.mxu0 %v2035
  %2065 = vmatpush.msra.mxu0 %v2034
  %2066 = vmatmul.f32.gmra.mxu0 %v38
  %v2067 = vpop.f32.mrf.mxu0
  %v2068 = vadd.f32 0.0, %v2067
  %2069 = vmatmul.f32.gmra.mxu0 %v39
  %v2070 = vpop.f32.mrf.mxu0
  %v2071 = vadd.f32 0.0, %v2070
  %2072 = vmatmul.f32.gmra.mxu0 %v40
  %v2073 = vpop.f32.mrf.mxu0
  %v2074 = vadd.f32 0.0, %v2073
  %2075 = vmatmul.f32.gmra.mxu0 %v41
  %v2076 = vpop.f32.mrf.mxu0
  %v2077 = vadd.f32 0.0, %v2076
  %2078 = vmatmul.f32.gmra.mxu0 %v42
  %v2079 = vpop.f32.mrf.mxu0
  %v2080 = vadd.f32 0.0, %v2079
  %2081 = vmatmul.f32.gmra.mxu0 %v43
  %v2082 = vpop.f32.mrf.mxu0
  %v2083 = vadd.f32 0.0, %v2082
  %2084 = vmatmul.f32.gmra.mxu0 %v44
  %v2085 = vpop.f32.mrf.mxu0
  %v2086 = vadd.f32 0.0, %v2085
  %2087 = vmatmul.f32.gmra.mxu0 %v45
  %v2088 = vpop.f32.mrf.mxu0
  %v2089 = vadd.f32 0.0, %v2088
  %2090 = vmatmul.f32.gmra.mxu0 %v46
  %v2091 = vpop.f32.mrf.mxu0
  %v2092 = vadd.f32 0.0, %v2091
  %2093 = vmatmul.f32.gmra.mxu0 %v47
  %v2094 = vpop.f32.mrf.mxu0
  %v2095 = vadd.f32 0.0, %v2094
  %2096 = vmatmul.f32.gmra.mxu0 %v48
  %v2097 = vpop.f32.mrf.mxu0
  %v2098 = vadd.f32 0.0, %v2097
  %2099 = vmatmul.f32.gmra.mxu0 %v49
  %v2100 = vpop.f32.mrf.mxu0
  %v2101 = vadd.f32 0.0, %v2100
  %2102 = vmatmul.f32.gmra.mxu0 %v50
  %v2103 = vpop.f32.mrf.mxu0
  %v2104 = vadd.f32 0.0, %v2103
  %2105 = vmatmul.f32.gmra.mxu0 %v51
  %v2106 = vpop.f32.mrf.mxu0
  %v2107 = vadd.f32 0.0, %v2106
  %2108 = vmatmul.f32.gmra.mxu0 %v52
  %v2109 = vpop.f32.mrf.mxu0
  %v2110 = vadd.f32 0.0, %v2109
  %2111 = vmatmul.f32.gmra.mxu0 %v53
  %v2112 = vpop.f32.mrf.mxu0
  %v2113 = vadd.f32 0.0, %v2112
  %2114 = vmatmul.f32.gmra.mxu0 %v54
  %v2115 = vpop.f32.mrf.mxu0
  %v2116 = vadd.f32 0.0, %v2115
  %2117 = vmatmul.f32.gmra.mxu0 %v55
  %v2118 = vpop.f32.mrf.mxu0
  %v2119 = vadd.f32 0.0, %v2118
  %2120 = vmatmul.f32.gmra.mxu0 %v56
  %v2121 = vpop.f32.mrf.mxu0
  %v2122 = vadd.f32 0.0, %v2121
  %2123 = vmatmul.f32.gmra.mxu0 %v57
  %v2124 = vpop.f32.mrf.mxu0
  %v2125 = vadd.f32 0.0, %v2124
  %2126 = vmatmul.f32.gmra.mxu0 %v58
  %v2127 = vpop.f32.mrf.mxu0
  %v2128 = vadd.f32 0.0, %v2127
  %2129 = vmatmul.f32.gmra.mxu0 %v59
  %v2130 = vpop.f32.mrf.mxu0
  %v2131 = vadd.f32 0.0, %v2130
  %2132 = vmatmul.f32.gmra.mxu0 %v60
  %v2133 = vpop.f32.mrf.mxu0
  %v2134 = vadd.f32 0.0, %v2133
  %2135 = vmatmul.f32.gmra.mxu0 %v61
  %v2136 = vpop.f32.mrf.mxu0
  %v2137 = vadd.f32 0.0, %v2136
  %2138 = vmatmul.f32.gmra.mxu0 %v62
  %v2139 = vpop.f32.mrf.mxu0
  %v2140 = vadd.f32 0.0, %v2139
  %2141 = vmatmul.f32.gmra.mxu0 %v63
  %v2142 = vpop.f32.mrf.mxu0
  %v2143 = vadd.f32 0.0, %v2142
  %2144 = vdwg.mxu0
  %v2145 = vld [vmem:[#allocation2] sm:$0xff]
  %v2146 = vld [vmem:[#allocation2 + $0x8] sm:$0xff]
  %v2147 = vld [vmem:[#allocation2 + $0x10] sm:$0xff]
  %v2148 = vld [vmem:[#allocation2 + $0x18] sm:$0xff]
  %v2149 = vld [vmem:[#allocation2 + $0x20] sm:$0xff]
  %v2150 = vld [vmem:[#allocation2 + $0x28] sm:$0xff]
  %v2151 = vld [vmem:[#allocation2 + $0x30] sm:$0xff]
  %v2152 = vld [vmem:[#allocation2 + $0x38] sm:$0xff]
  %v2153 = vld [vmem:[#allocation2 + $0x40] sm:$0xff]
  %v2154 = vld [vmem:[#allocation2 + $0x48] sm:$0xff]
  %v2155 = vld [vmem:[#allocation2 + $0x50] sm:$0xff]
  %v2156 = vld [vmem:[#allocation2 + $0x58] sm:$0xff]
  %v2157 = vld [vmem:[#allocation2 + $0x60] sm:$0xff]
  %v2158 = vld [vmem:[#allocation2 + $0x68] sm:$0xff]
  %v2159 = vld [vmem:[#allocation2 + $0x70] sm:$0xff]
  %v2160 = vld [vmem:[#allocation2 + $0x78] sm:$0xff]
  %v2161 = vld [vmem:[#allocation2 + $0x80] sm:$0xff]
  %v2162 = vld [vmem:[#allocation2 + $0x88] sm:$0xff]
  %v2163 = vld [vmem:[#allocation2 + $0x90] sm:$0xff]
  %v2164 = vld [vmem:[#allocation2 + $0x98] sm:$0xff]
  %v2165 = vld [vmem:[#allocation2 + $0xa0] sm:$0xff]
  %v2166 = vld [vmem:[#allocation2 + $0xa8] sm:$0xff]
  %v2167 = vld [vmem:[#allocation2 + $0xb0] sm:$0xff]
  %v2168 = vld [vmem:[#allocation2 + $0xb8] sm:$0xff]
  %v2169 = vld [vmem:[#allocation2 + $0xc0] sm:$0xff]
  %v2170 = vld [vmem:[#allocation2 + $0xc8] sm:$0xff]
  %v2171 = vadd.f32 %v2145, %v2068
  %v2172 = vadd.f32 %v2146, %v2071
  %v2173 = vadd.f32 %v2147, %v2074
  %v2174 = vadd.f32 %v2148, %v2077
  %v2175 = vadd.f32 %v2149, %v2080
  %v2176 = vadd.f32 %v2150, %v2083
  %v2177 = vadd.f32 %v2151, %v2086
  %v2178 = vadd.f32 %v2152, %v2089
  %v2179 = vadd.f32 %v2153, %v2092
  %v2180 = vadd.f32 %v2154, %v2095
  %v2181 = vadd.f32 %v2155, %v2098
  %v2182 = vadd.f32 %v2156, %v2101
  %v2183 = vadd.f32 %v2157, %v2104
  %v2184 = vadd.f32 %v2158, %v2107
  %v2185 = vadd.f32 %v2159, %v2110
  %v2186 = vadd.f32 %v2160, %v2113
  %v2187 = vadd.f32 %v2161, %v2116
  %v2188 = vadd.f32 %v2162, %v2119
  %v2189 = vadd.f32 %v2163, %v2122
  %v2190 = vadd.f32 %v2164, %v2125
  %v2191 = vadd.f32 %v2165, %v2128
  %v2192 = vadd.f32 %v2166, %v2131
  %v2193 = vadd.f32 %v2167, %v2134
  %v2194 = vadd.f32 %v2168, %v2137
  %v2195 = vadd.f32 %v2169, %v2140
  %v2196 = vadd.f32 %v2170, %v2143
  %2197 = vst [vmem:[#allocation2] sm:$0xff] %v2171
  %2198 = vst [vmem:[#allocation2 + $0x8] sm:$0xff] %v2172
  %2199 = vst [vmem:[#allocation2 + $0x10] sm:$0xff] %v2173
  %2200 = vst [vmem:[#allocation2 + $0x18] sm:$0xff] %v2174
  %2201 = vst [vmem:[#allocation2 + $0x20] sm:$0xff] %v2175
  %2202 = vst [vmem:[#allocation2 + $0x28] sm:$0xff] %v2176
  %2203 = vst [vmem:[#allocation2 + $0x30] sm:$0xff] %v2177
  %2204 = vst [vmem:[#allocation2 + $0x38] sm:$0xff] %v2178
  %2205 = vst [vmem:[#allocation2 + $0x40] sm:$0xff] %v2179
  %2206 = vst [vmem:[#allocation2 + $0x48] sm:$0xff] %v2180
  %2207 = vst [vmem:[#allocation2 + $0x50] sm:$0xff] %v2181
  %2208 = vst [vmem:[#allocation2 + $0x58] sm:$0xff] %v2182
  %2209 = vst [vmem:[#allocation2 + $0x60] sm:$0xff] %v2183
  %2210 = vst [vmem:[#allocation2 + $0x68] sm:$0xff] %v2184
  %2211 = vst [vmem:[#allocation2 + $0x70] sm:$0xff] %v2185
  %2212 = vst [vmem:[#allocation2 + $0x78] sm:$0xff] %v2186
  %2213 = vst [vmem:[#allocation2 + $0x80] sm:$0xff] %v2187
  %2214 = vst [vmem:[#allocation2 + $0x88] sm:$0xff] %v2188
  %2215 = vst [vmem:[#allocation2 + $0x90] sm:$0xff] %v2189
  %2216 = vst [vmem:[#allocation2 + $0x98] sm:$0xff] %v2190
  %2217 = vst [vmem:[#allocation2 + $0xa0] sm:$0xff] %v2191
  %2218 = vst [vmem:[#allocation2 + $0xa8] sm:$0xff] %v2192
  %2219 = vst [vmem:[#allocation2 + $0xb0] sm:$0xff] %v2193
  %2220 = vst [vmem:[#allocation2 + $0xb8] sm:$0xff] %v2194
  %2221 = vst [vmem:[#allocation2 + $0xc0] sm:$0xff] %v2195
  %2222 = vst [vmem:[#allocation2 + $0xc8] sm:$0xff] %v2196
  %v2223 = vld [vmem:[#allocation2] sm:$0xff]
  %v2224 = vld [vmem:[#allocation2 + $0x8] sm:$0xff]
  %v2225 = vld [vmem:[#allocation2 + $0x10] sm:$0xff]
  %v2226 = vld [vmem:[#allocation2 + $0x18] sm:$0xff]
  %v2227 = vld [vmem:[#allocation2 + $0x20] sm:$0xff]
  %v2228 = vld [vmem:[#allocation2 + $0x28] sm:$0xff]
  %v2229 = vld [vmem:[#allocation2 + $0x30] sm:$0xff]
  %v2230 = vld [vmem:[#allocation2 + $0x38] sm:$0xff]
  %v2231 = vld [vmem:[#allocation2 + $0x40] sm:$0xff]
  %v2232 = vld [vmem:[#allocation2 + $0x48] sm:$0xff]
  %v2233 = vld [vmem:[#allocation2 + $0x50] sm:$0xff]
  %v2234 = vld [vmem:[#allocation2 + $0x58] sm:$0xff]
  %v2235 = vld [vmem:[#allocation2 + $0x60] sm:$0xff]
  %v2236 = vld [vmem:[#allocation2 + $0x68] sm:$0xff]
  %v2237 = vld [vmem:[#allocation2 + $0x70] sm:$0xff]
  %v2238 = vld [vmem:[#allocation2 + $0x78] sm:$0xff]
  %v2239 = vld [vmem:[#allocation2 + $0x80] sm:$0xff]
  %v2240 = vld [vmem:[#allocation2 + $0x88] sm:$0xff]
  %v2241 = vld [vmem:[#allocation2 + $0x90] sm:$0xff]
  %v2242 = vld [vmem:[#allocation2 + $0x98] sm:$0xff]
  %v2243 = vld [vmem:[#allocation2 + $0xa0] sm:$0xff]
  %v2244 = vld [vmem:[#allocation2 + $0xa8] sm:$0xff]
  %v2245 = vld [vmem:[#allocation2 + $0xb0] sm:$0xff]
  %v2246 = vld [vmem:[#allocation2 + $0xb8] sm:$0xff]
  %v2247 = vld [vmem:[#allocation2 + $0xc0] sm:$0xff]
  %v2248 = vld [vmem:[#allocation2 + $0xc8] sm:$0xff]
  %v2249 = vld [vmem:[%s2] sm:$0x1]
  %v2251 = vperm.slane %v2249, 0
  %v2253 = vmul.f32 %v2223, %v2251
  %v2254 = vmul.f32 %v2224, %v2251
  %v2255 = vmul.f32 %v2225, %v2251
  %v2256 = vmul.f32 %v2226, %v2251
  %v2257 = vmul.f32 %v2227, %v2251
  %v2258 = vmul.f32 %v2228, %v2251
  %v2259 = vmul.f32 %v2229, %v2251
  %v2260 = vmul.f32 %v2230, %v2251
  %v2261 = vmul.f32 %v2231, %v2251
  %v2262 = vmul.f32 %v2232, %v2251
  %v2263 = vmul.f32 %v2233, %v2251
  %v2264 = vmul.f32 %v2234, %v2251
  %v2265 = vmul.f32 %v2235, %v2251
  %v2266 = vmul.f32 %v2236, %v2251
  %v2267 = vmul.f32 %v2237, %v2251
  %v2268 = vmul.f32 %v2238, %v2251
  %v2269 = vmul.f32 %v2239, %v2251
  %v2270 = vmul.f32 %v2240, %v2251
  %v2271 = vmul.f32 %v2241, %v2251
  %v2272 = vmul.f32 %v2242, %v2251
  %v2273 = vmul.f32 %v2243, %v2251
  %v2274 = vmul.f32 %v2244, %v2251
  %v2275 = vmul.f32 %v2245, %v2251
  %v2276 = vmul.f32 %v2246, %v2251
  %v2277 = vmul.f32 %v2247, %v2251
  %v2278 = vmul.f32 %v2248, %v2251
  %v2279 = vld [vmem:[%s3] sm:$0x1]
  %v2281 = vperm.slane %v2279, 0
  %v2283 = vadd.f32 %v2253, %v2281
  %v2284 = vadd.f32 %v2254, %v2281
  %v2285 = vadd.f32 %v2255, %v2281
  %v2286 = vadd.f32 %v2256, %v2281
  %v2287 = vadd.f32 %v2257, %v2281
  %v2288 = vadd.f32 %v2258, %v2281
  %v2289 = vadd.f32 %v2259, %v2281
  %v2290 = vadd.f32 %v2260, %v2281
  %v2291 = vadd.f32 %v2261, %v2281
  %v2292 = vadd.f32 %v2262, %v2281
  %v2293 = vadd.f32 %v2263, %v2281
  %v2294 = vadd.f32 %v2264, %v2281
  %v2295 = vadd.f32 %v2265, %v2281
  %v2296 = vadd.f32 %v2266, %v2281
  %v2297 = vadd.f32 %v2267, %v2281
  %v2298 = vadd.f32 %v2268, %v2281
  %v2299 = vadd.f32 %v2269, %v2281
  %v2300 = vadd.f32 %v2270, %v2281
  %v2301 = vadd.f32 %v2271, %v2281
  %v2302 = vadd.f32 %v2272, %v2281
  %v2303 = vadd.f32 %v2273, %v2281
  %v2304 = vadd.f32 %v2274, %v2281
  %v2305 = vadd.f32 %v2275, %v2281
  %v2306 = vadd.f32 %v2276, %v2281
  %v2307 = vadd.f32 %v2277, %v2281
  %v2308 = vadd.f32 %v2278, %v2281
  %v2309 = vmax.f32 %v2283, 0.0
  %v2310 = vmax.f32 %v2284, 0.0
  %v2311 = vmax.f32 %v2285, 0.0
  %v2312 = vmax.f32 %v2286, 0.0
  %v2313 = vmax.f32 %v2287, 0.0
  %v2314 = vmax.f32 %v2288, 0.0
  %v2315 = vmax.f32 %v2289, 0.0
  %v2316 = vmax.f32 %v2290, 0.0
  %v2317 = vmax.f32 %v2291, 0.0
  %v2318 = vmax.f32 %v2292, 0.0
  %v2319 = vmax.f32 %v2293, 0.0
  %v2320 = vmax.f32 %v2294, 0.0
  %v2321 = vmax.f32 %v2295, 0.0
  %v2322 = vmax.f32 %v2296, 0.0
  %v2323 = vmax.f32 %v2297, 0.0
  %v2324 = vmax.f32 %v2298, 0.0
  %v2325 = vmax.f32 %v2299, 0.0
  %v2326 = vmax.f32 %v2300, 0.0
  %v2327 = vmax.f32 %v2301, 0.0
  %v2328 = vmax.f32 %v2302, 0.0
  %v2329 = vmax.f32 %v2303, 0.0
  %v2330 = vmax.f32 %v2304, 0.0
  %v2331 = vmax.f32 %v2305, 0.0
  %v2332 = vmax.f32 %v2306, 0.0
  %v2333 = vmax.f32 %v2307, 0.0
  %v2334 = vmax.f32 %v2308, 0.0
  %v2335 = vld [vmem:[%s7] sm:$0xff]
  %v2336 = vld [vmem:[%s7 + $0x8] sm:$0xff]
  %v2337 = vld [vmem:[%s7 + $0x10] sm:$0xff]
  %v2338 = vld [vmem:[%s7 + $0x18] sm:$0xff]
  %v2339 = vld [vmem:[%s7 + $0x20] sm:$0xff]
  %v2340 = vld [vmem:[%s7 + $0x28] sm:$0xff]
  %v2341 = vld [vmem:[%s7 + $0x30] sm:$0xff]
  %v2342 = vld [vmem:[%s7 + $0x38] sm:$0xff]
  %v2343 = vld [vmem:[%s7 + $0x40] sm:$0xff]
  %v2344 = vld [vmem:[%s7 + $0x48] sm:$0xff]
  %v2345 = vld [vmem:[%s7 + $0x50] sm:$0xff]
  %v2346 = vld [vmem:[%s7 + $0x58] sm:$0xff]
  %v2347 = vld [vmem:[%s7 + $0x60] sm:$0xff]
  %v2348 = vld [vmem:[%s7 + $0x68] sm:$0xff]
  %v2349 = vld [vmem:[%s7 + $0x70] sm:$0xff]
  %v2350 = vld [vmem:[%s7 + $0x78] sm:$0xff]
  %v2351 = vld [vmem:[%s7 + $0x80] sm:$0xff]
  %v2352 = vld [vmem:[%s7 + $0x88] sm:$0xff]
  %v2353 = vld [vmem:[%s7 + $0x90] sm:$0xff]
  %v2354 = vld [vmem:[%s7 + $0x98] sm:$0xff]
  %v2355 = vld [vmem:[%s7 + $0xa0] sm:$0xff]
  %v2356 = vld [vmem:[%s7 + $0xa8] sm:$0xff]
  %v2357 = vld [vmem:[%s7 + $0xb0] sm:$0xff]
  %v2358 = vld [vmem:[%s7 + $0xb8] sm:$0xff]
  %v2359 = vld [vmem:[%s7 + $0xc0] sm:$0xff]
  %v2360 = vld [vmem:[%s7 + $0xc8] sm:$0xff]
  %2362 = vset.pattern.permute.xlu0 0
  %2363 = vperm.xlu0 %2362, %v2335
  %v2364 = vpop.permute.xlu0 %2363
  %2367 = vset.pattern.permute.xlu0 0
  %2368 = vperm.xlu0 %2367, %v2336
  %v2369 = vpop.permute.xlu0 %2368
  %2372 = vset.pattern.permute.xlu0 0
  %2373 = vperm.xlu0 %2372, %v2337
  %v2374 = vpop.permute.xlu0 %2373
  %2377 = vset.pattern.permute.xlu0 0
  %2378 = vperm.xlu0 %2377, %v2338
  %v2379 = vpop.permute.xlu0 %2378
  %2382 = vset.pattern.permute.xlu0 0
  %2383 = vperm.xlu0 %2382, %v2339
  %v2384 = vpop.permute.xlu0 %2383
  %2387 = vset.pattern.permute.xlu0 0
  %2388 = vperm.xlu0 %2387, %v2340
  %v2389 = vpop.permute.xlu0 %2388
  %2392 = vset.pattern.permute.xlu0 0
  %2393 = vperm.xlu0 %2392, %v2341
  %v2394 = vpop.permute.xlu0 %2393
  %2397 = vset.pattern.permute.xlu0 0
  %2398 = vperm.xlu0 %2397, %v2342
  %v2399 = vpop.permute.xlu0 %2398
  %2402 = vset.pattern.permute.xlu0 0
  %2403 = vperm.xlu0 %2402, %v2343
  %v2404 = vpop.permute.xlu0 %2403
  %2407 = vset.pattern.permute.xlu0 0
  %2408 = vperm.xlu0 %2407, %v2344
  %v2409 = vpop.permute.xlu0 %2408
  %2412 = vset.pattern.permute.xlu0 0
  %2413 = vperm.xlu0 %2412, %v2345
  %v2414 = vpop.permute.xlu0 %2413
  %2417 = vset.pattern.permute.xlu0 0
  %2418 = vperm.xlu0 %2417, %v2346
  %v2419 = vpop.permute.xlu0 %2418
  %2422 = vset.pattern.permute.xlu0 0
  %2423 = vperm.xlu0 %2422, %v2347
  %v2424 = vpop.permute.xlu0 %2423
  %2427 = vset.pattern.permute.xlu0 0
  %2428 = vperm.xlu0 %2427, %v2348
  %v2429 = vpop.permute.xlu0 %2428
  %2432 = vset.pattern.permute.xlu0 0
  %2433 = vperm.xlu0 %2432, %v2349
  %v2434 = vpop.permute.xlu0 %2433
  %2437 = vset.pattern.permute.xlu0 0
  %2438 = vperm.xlu0 %2437, %v2350
  %v2439 = vpop.permute.xlu0 %2438
  %2442 = vset.pattern.permute.xlu0 0
  %2443 = vperm.xlu0 %2442, %v2351
  %v2444 = vpop.permute.xlu0 %2443
  %2447 = vset.pattern.permute.xlu0 0
  %2448 = vperm.xlu0 %2447, %v2352
  %v2449 = vpop.permute.xlu0 %2448
  %2452 = vset.pattern.permute.xlu0 0
  %2453 = vperm.xlu0 %2452, %v2353
  %v2454 = vpop.permute.xlu0 %2453
  %2457 = vset.pattern.permute.xlu0 0
  %2458 = vperm.xlu0 %2457, %v2354
  %v2459 = vpop.permute.xlu0 %2458
  %2462 = vset.pattern.permute.xlu0 0
  %2463 = vperm.xlu0 %2462, %v2355
  %v2464 = vpop.permute.xlu0 %2463
  %2467 = vset.pattern.permute.xlu0 0
  %2468 = vperm.xlu0 %2467, %v2356
  %v2469 = vpop.permute.xlu0 %2468
  %2472 = vset.pattern.permute.xlu0 0
  %2473 = vperm.xlu0 %2472, %v2357
  %v2474 = vpop.permute.xlu0 %2473
  %2477 = vset.pattern.permute.xlu0 0
  %2478 = vperm.xlu0 %2477, %v2358
  %v2479 = vpop.permute.xlu0 %2478
  %2482 = vset.pattern.permute.xlu0 0
  %2483 = vperm.xlu0 %2482, %v2359
  %v2484 = vpop.permute.xlu0 %2483
  %2487 = vset.pattern.permute.xlu0 0
  %2488 = vperm.xlu0 %2487, %v2360
  %v2489 = vpop.permute.xlu0 %2488
  %v2491 = vmul.f32 %v2309, %v2364
  %v2492 = vmul.f32 %v2310, %v2369
  %v2493 = vmul.f32 %v2311, %v2374
  %v2494 = vmul.f32 %v2312, %v2379
  %v2495 = vmul.f32 %v2313, %v2384
  %v2496 = vmul.f32 %v2314, %v2389
  %v2497 = vmul.f32 %v2315, %v2394
  %v2498 = vmul.f32 %v2316, %v2399
  %v2499 = vmul.f32 %v2317, %v2404
  %v2500 = vmul.f32 %v2318, %v2409
  %v2501 = vmul.f32 %v2319, %v2414
  %v2502 = vmul.f32 %v2320, %v2419
  %v2503 = vmul.f32 %v2321, %v2424
  %v2504 = vmul.f32 %v2322, %v2429
  %v2505 = vmul.f32 %v2323, %v2434
  %v2506 = vmul.f32 %v2324, %v2439
  %v2507 = vmul.f32 %v2325, %v2444
  %v2508 = vmul.f32 %v2326, %v2449
  %v2509 = vmul.f32 %v2327, %v2454
  %v2510 = vmul.f32 %v2328, %v2459
  %v2511 = vmul.f32 %v2329, %v2464
  %v2512 = vmul.f32 %v2330, %v2469
  %v2513 = vmul.f32 %v2331, %v2474
  %v2514 = vmul.f32 %v2332, %v2479
  %v2515 = vmul.f32 %v2333, %v2484
  %v2516 = vmul.f32 %v2334, %v2489
  %2517 = vst [vmem:[#allocation3] sm:$0xff] %v2491
  %2518 = vst [vmem:[#allocation3 + $0x8] sm:$0xff] %v2492
  %2519 = vst [vmem:[#allocation3 + $0x10] sm:$0xff] %v2493
  %2520 = vst [vmem:[#allocation3 + $0x18] sm:$0xff] %v2494
  %2521 = vst [vmem:[#allocation3 + $0x20] sm:$0xff] %v2495
  %2522 = vst [vmem:[#allocation3 + $0x28] sm:$0xff] %v2496
  %2523 = vst [vmem:[#allocation3 + $0x30] sm:$0xff] %v2497
  %2524 = vst [vmem:[#allocation3 + $0x38] sm:$0xff] %v2498
  %2525 = vst [vmem:[#allocation3 + $0x40] sm:$0xff] %v2499
  %2526 = vst [vmem:[#allocation3 + $0x48] sm:$0xff] %v2500
  %2527 = vst [vmem:[#allocation3 + $0x50] sm:$0xff] %v2501
  %2528 = vst [vmem:[#allocation3 + $0x58] sm:$0xff] %v2502
  %2529 = vst [vmem:[#allocation3 + $0x60] sm:$0xff] %v2503
  %2530 = vst [vmem:[#allocation3 + $0x68] sm:$0xff] %v2504
  %2531 = vst [vmem:[#allocation3 + $0x70] sm:$0xff] %v2505
  %2532 = vst [vmem:[#allocation3 + $0x78] sm:$0xff] %v2506
  %2533 = vst [vmem:[#allocation3 + $0x80] sm:$0xff] %v2507
  %2534 = vst [vmem:[#allocation3 + $0x88] sm:$0xff] %v2508
  %2535 = vst [vmem:[#allocation3 + $0x90] sm:$0xff] %v2509
  %2536 = vst [vmem:[#allocation3 + $0x98] sm:$0xff] %v2510
  %2537 = vst [vmem:[#allocation3 + $0xa0] sm:$0xff] %v2511
  %2538 = vst [vmem:[#allocation3 + $0xa8] sm:$0xff] %v2512
  %2539 = vst [vmem:[#allocation3 + $0xb0] sm:$0xff] %v2513
  %2540 = vst [vmem:[#allocation3 + $0xb8] sm:$0xff] %v2514
  %2541 = vst [vmem:[#allocation3 + $0xc0] sm:$0xff] %v2515
  %2542 = vst [vmem:[#allocation3 + $0xc8] sm:$0xff] %v2516
  %v2543 = vld [vmem:[#allocation3] sm:$0xff]
  %v2544 = vld [vmem:[#allocation3 + $0x8] sm:$0xff]
  %v2545 = vld [vmem:[#allocation3 + $0x10] sm:$0xff]
  %v2546 = vld [vmem:[#allocation3 + $0x18] sm:$0xff]
  %v2547 = vld [vmem:[#allocation3 + $0x20] sm:$0xff]
  %v2548 = vld [vmem:[#allocation3 + $0x28] sm:$0xff]
  %v2549 = vld [vmem:[#allocation3 + $0x30] sm:$0xff]
  %v2550 = vld [vmem:[#allocation3 + $0x38] sm:$0xff]
  %v2551 = vld [vmem:[#allocation3 + $0x40] sm:$0xff]
  %v2552 = vld [vmem:[#allocation3 + $0x48] sm:$0xff]
  %v2553 = vld [vmem:[#allocation3 + $0x50] sm:$0xff]
  %v2554 = vld [vmem:[#allocation3 + $0x58] sm:$0xff]
  %v2555 = vld [vmem:[#allocation3 + $0x60] sm:$0xff]
  %v2556 = vld [vmem:[#allocation3 + $0x68] sm:$0xff]
  %v2557 = vld [vmem:[#allocation3 + $0x70] sm:$0xff]
  %v2558 = vld [vmem:[#allocation3 + $0x78] sm:$0xff]
  %v2559 = vld [vmem:[#allocation3 + $0x80] sm:$0xff]
  %v2560 = vld [vmem:[#allocation3 + $0x88] sm:$0xff]
  %v2561 = vld [vmem:[#allocation3 + $0x90] sm:$0xff]
  %v2562 = vld [vmem:[#allocation3 + $0x98] sm:$0xff]
  %v2563 = vld [vmem:[#allocation3 + $0xa0] sm:$0xff]
  %v2564 = vld [vmem:[#allocation3 + $0xa8] sm:$0xff]
  %v2565 = vld [vmem:[#allocation3 + $0xb0] sm:$0xff]
  %v2566 = vld [vmem:[#allocation3 + $0xb8] sm:$0xff]
  %v2567 = vld [vmem:[#allocation3 + $0xc0] sm:$0xff]
  %v2568 = vld [vmem:[#allocation3 + $0xc8] sm:$0xff]
  %v2569 = vrot.slane %v2543, 5
  %v2570 = vrot.slane %v2544, 5
  %v2571 = vrot.slane %v2545, 5
  %v2572 = vrot.slane %v2546, 5
  %v2573 = vrot.slane %v2547, 5
  %v2574 = vrot.slane %v2548, 5
  %v2575 = vrot.slane %v2549, 5
  %v2576 = vrot.slane %v2550, 5
  %v2577 = vrot.slane %v2551, 5
  %v2578 = vrot.slane %v2552, 5
  %v2579 = vrot.slane %v2553, 5
  %v2580 = vrot.slane %v2554, 5
  %v2581 = vrot.slane %v2555, 5
  %v2582 = vrot.slane %v2556, 5
  %v2583 = vrot.slane %v2557, 5
  %v2584 = vrot.slane %v2558, 5
  %v2585 = vrot.slane %v2559, 5
  %v2586 = vrot.slane %v2560, 5
  %v2587 = vrot.slane %v2561, 5
  %v2588 = vrot.slane %v2562, 5
  %v2589 = vrot.slane %v2563, 5
  %v2590 = vrot.slane %v2564, 5
  %v2591 = vrot.slane %v2565, 5
  %v2592 = vrot.slane %v2566, 5
  %v2593 = vrot.slane %v2567, 5
  %v2594 = vrot.slane %v2568, 5
  %v2595 = vsel %vm92, %v2593, %v2594
  %v2596 = vsel %vm92, %v2592, %v2593
  %v2597 = vsel %vm92, %v2591, %v2592
  %v2598 = vsel %vm92, %v2590, %v2591
  %v2599 = vsel %vm92, %v2589, %v2590
  %v2600 = vsel %vm92, %v2588, %v2589
  %v2601 = vsel %vm92, %v2587, %v2588
  %v2602 = vsel %vm92, %v2586, %v2587
  %v2603 = vsel %vm92, %v2585, %v2586
  %v2604 = vsel %vm92, %v2584, %v2585
  %v2605 = vsel %vm92, %v2583, %v2584
  %v2606 = vsel %vm92, %v2582, %v2583
  %v2607 = vsel %vm92, %v2581, %v2582
  %v2608 = vsel %vm92, %v2580, %v2581
  %v2609 = vsel %vm92, %v2579, %v2580
  %v2610 = vsel %vm92, %v2578, %v2579
  %v2611 = vsel %vm92, %v2577, %v2578
  %v2612 = vsel %vm92, %v2576, %v2577
  %v2613 = vsel %vm92, %v2575, %v2576
  %v2614 = vsel %vm92, %v2574, %v2575
  %v2615 = vsel %vm92, %v2573, %v2574
  %v2616 = vsel %vm92, %v2572, %v2573
  %v2617 = vsel %vm92, %v2571, %v2572
  %v2618 = vsel %vm92, %v2570, %v2571
  %v2619 = vsel %vm92, %v2569, %v2570
  %v2620 = vsel %vm92, %v2594, %v2569
  %v2621 = vld [vmem:[%s4] sm:$0xff]
  %v2622 = vld [vmem:[%s4 + $0x8] sm:$0xff]
  %v2623 = vld [vmem:[%s4 + $0x10] sm:$0xff]
  %v2624 = vld [vmem:[%s4 + $0x18] sm:$0xff]
  %v2625 = vld [vmem:[%s4 + $0x20] sm:$0xff]
  %v2626 = vld [vmem:[%s4 + $0x28] sm:$0xff]
  %v2627 = vld [vmem:[%s4 + $0x30] sm:$0xff]
  %v2628 = vld [vmem:[%s4 + $0x38] sm:$0xff]
  %v2629 = vld [vmem:[%s4 + $0x40] sm:$0xff]
  %v2630 = vld [vmem:[%s4 + $0x48] sm:$0xff]
  %v2631 = vld [vmem:[%s4 + $0x50] sm:$0xff]
  %v2632 = vld [vmem:[%s4 + $0x58] sm:$0xff]
  %v2633 = vld [vmem:[%s4 + $0x60] sm:$0xff]
  %v2634 = vld [vmem:[%s4 + $0x68] sm:$0xff]
  %v2635 = vld [vmem:[%s4 + $0x70] sm:$0xff]
  %v2636 = vld [vmem:[%s4 + $0x78] sm:$0xff]
  %2637 = vmatpush.msra.mxu0 %v2636
  %2638 = vmatpush.msra.mxu0 %v2635
  %2639 = vmatpush.msra.mxu0 %v2634
  %2640 = vmatpush.msra.mxu0 %v2633
  %2641 = vmatpush.msra.mxu0 %v2632
  %2642 = vmatpush.msra.mxu0 %v2631
  %2643 = vmatpush.msra.mxu0 %v2630
  %2644 = vmatpush.msra.mxu0 %v2629
  %2645 = vmatpush.msra.mxu0 %v2628
  %2646 = vmatpush.msra.mxu0 %v2627
  %2647 = vmatpush.msra.mxu0 %v2626
  %2648 = vmatpush.msra.mxu0 %v2625
  %2649 = vmatpush.msra.mxu0 %v2624
  %2650 = vmatpush.msra.mxu0 %v2623
  %2651 = vmatpush.msra.mxu0 %v2622
  %2652 = vmatpush.msra.mxu0 %v2621
  %2653 = vmatmul.f32.gmra.mxu0 %v2595
  %v2654 = vpop.f32.mrf.mxu0
  %v2655 = vadd.f32 0.0, %v2654
  %2656 = vmatmul.f32.gmra.mxu0 %v2620
  %v2657 = vpop.f32.mrf.mxu0
  %v2658 = vadd.f32 0.0, %v2657
  %2659 = vmatmul.f32.gmra.mxu0 %v2619
  %v2660 = vpop.f32.mrf.mxu0
  %v2661 = vadd.f32 0.0, %v2660
  %2662 = vmatmul.f32.gmra.mxu0 %v2618
  %v2663 = vpop.f32.mrf.mxu0
  %v2664 = vadd.f32 0.0, %v2663
  %2665 = vmatmul.f32.gmra.mxu0 %v2617
  %v2666 = vpop.f32.mrf.mxu0
  %v2667 = vadd.f32 0.0, %v2666
  %2668 = vmatmul.f32.gmra.mxu0 %v2616
  %v2669 = vpop.f32.mrf.mxu0
  %v2670 = vadd.f32 0.0, %v2669
  %2671 = vmatmul.f32.gmra.mxu0 %v2615
  %v2672 = vpop.f32.mrf.mxu0
  %v2673 = vadd.f32 0.0, %v2672
  %2674 = vmatmul.f32.gmra.mxu0 %v2614
  %v2675 = vpop.f32.mrf.mxu0
  %v2676 = vadd.f32 0.0, %v2675
  %2677 = vmatmul.f32.gmra.mxu0 %v2613
  %v2678 = vpop.f32.mrf.mxu0
  %v2679 = vadd.f32 0.0, %v2678
  %2680 = vmatmul.f32.gmra.mxu0 %v2612
  %v2681 = vpop.f32.mrf.mxu0
  %v2682 = vadd.f32 0.0, %v2681
  %2683 = vmatmul.f32.gmra.mxu0 %v2611
  %v2684 = vpop.f32.mrf.mxu0
  %v2685 = vadd.f32 0.0, %v2684
  %2686 = vmatmul.f32.gmra.mxu0 %v2610
  %v2687 = vpop.f32.mrf.mxu0
  %v2688 = vadd.f32 0.0, %v2687
  %2689 = vmatmul.f32.gmra.mxu0 %v2609
  %v2690 = vpop.f32.mrf.mxu0
  %v2691 = vadd.f32 0.0, %v2690
  %2692 = vmatmul.f32.gmra.mxu0 %v2608
  %v2693 = vpop.f32.mrf.mxu0
  %v2694 = vadd.f32 0.0, %v2693
  %2695 = vmatmul.f32.gmra.mxu0 %v2607
  %v2696 = vpop.f32.mrf.mxu0
  %v2697 = vadd.f32 0.0, %v2696
  %2698 = vmatmul.f32.gmra.mxu0 %v2606
  %v2699 = vpop.f32.mrf.mxu0
  %v2700 = vadd.f32 0.0, %v2699
  %2701 = vmatmul.f32.gmra.mxu0 %v2605
  %v2702 = vpop.f32.mrf.mxu0
  %v2703 = vadd.f32 0.0, %v2702
  %2704 = vmatmul.f32.gmra.mxu0 %v2604
  %v2705 = vpop.f32.mrf.mxu0
  %v2706 = vadd.f32 0.0, %v2705
  %2707 = vmatmul.f32.gmra.mxu0 %v2603
  %v2708 = vpop.f32.mrf.mxu0
  %v2709 = vadd.f32 0.0, %v2708
  %2710 = vmatmul.f32.gmra.mxu0 %v2602
  %v2711 = vpop.f32.mrf.mxu0
  %v2712 = vadd.f32 0.0, %v2711
  %2713 = vmatmul.f32.gmra.mxu0 %v2601
  %v2714 = vpop.f32.mrf.mxu0
  %v2715 = vadd.f32 0.0, %v2714
  %2716 = vmatmul.f32.gmra.mxu0 %v2600
  %v2717 = vpop.f32.mrf.mxu0
  %v2718 = vadd.f32 0.0, %v2717
  %2719 = vmatmul.f32.gmra.mxu0 %v2599
  %v2720 = vpop.f32.mrf.mxu0
  %v2721 = vadd.f32 0.0, %v2720
  %2722 = vmatmul.f32.gmra.mxu0 %v2598
  %v2723 = vpop.f32.mrf.mxu0
  %v2724 = vadd.f32 0.0, %v2723
  %2725 = vmatmul.f32.gmra.mxu0 %v2597
  %v2726 = vpop.f32.mrf.mxu0
  %v2727 = vadd.f32 0.0, %v2726
  %2728 = vmatmul.f32.gmra.mxu0 %v2596
  %v2729 = vpop.f32.mrf.mxu0
  %v2730 = vadd.f32 0.0, %v2729
  %2731 = vdwg.mxu0
  %2732 = vst [vmem:[#allocation2] sm:$0xff] %v2655
  %2733 = vst [vmem:[#allocation2 + $0x8] sm:$0xff] %v2658
  %2734 = vst [vmem:[#allocation2 + $0x10] sm:$0xff] %v2661
  %2735 = vst [vmem:[#allocation2 + $0x18] sm:$0xff] %v2664
  %2736 = vst [vmem:[#allocation2 + $0x20] sm:$0xff] %v2667
  %2737 = vst [vmem:[#allocation2 + $0x28] sm:$0xff] %v2670
  %2738 = vst [vmem:[#allocation2 + $0x30] sm:$0xff] %v2673
  %2739 = vst [vmem:[#allocation2 + $0x38] sm:$0xff] %v2676
  %2740 = vst [vmem:[#allocation2 + $0x40] sm:$0xff] %v2679
  %2741 = vst [vmem:[#allocation2 + $0x48] sm:$0xff] %v2682
  %2742 = vst [vmem:[#allocation2 + $0x50] sm:$0xff] %v2685
  %2743 = vst [vmem:[#allocation2 + $0x58] sm:$0xff] %v2688
  %2744 = vst [vmem:[#allocation2 + $0x60] sm:$0xff] %v2691
  %2745 = vst [vmem:[#allocation2 + $0x68] sm:$0xff] %v2694
  %2746 = vst [vmem:[#allocation2 + $0x70] sm:$0xff] %v2697
  %2747 = vst [vmem:[#allocation2 + $0x78] sm:$0xff] %v2700
  %2748 = vst [vmem:[#allocation2 + $0x80] sm:$0xff] %v2703
  %2749 = vst [vmem:[#allocation2 + $0x88] sm:$0xff] %v2706
  %2750 = vst [vmem:[#allocation2 + $0x90] sm:$0xff] %v2709
  %2751 = vst [vmem:[#allocation2 + $0x98] sm:$0xff] %v2712
  %2752 = vst [vmem:[#allocation2 + $0xa0] sm:$0xff] %v2715
  %2753 = vst [vmem:[#allocation2 + $0xa8] sm:$0xff] %v2718
  %2754 = vst [vmem:[#allocation2 + $0xb0] sm:$0xff] %v2721
  %2755 = vst [vmem:[#allocation2 + $0xb8] sm:$0xff] %v2724
  %2756 = vst [vmem:[#allocation2 + $0xc0] sm:$0xff] %v2727
  %2757 = vst [vmem:[#allocation2 + $0xc8] sm:$0xff] %v2730
  %v2758 = vrot.slane %v2543, 6
  %v2759 = vrot.slane %v2544, 6
  %v2760 = vrot.slane %v2545, 6
  %v2761 = vrot.slane %v2546, 6
  %v2762 = vrot.slane %v2547, 6
  %v2763 = vrot.slane %v2548, 6
  %v2764 = vrot.slane %v2549, 6
  %v2765 = vrot.slane %v2550, 6
  %v2766 = vrot.slane %v2551, 6
  %v2767 = vrot.slane %v2552, 6
  %v2768 = vrot.slane %v2553, 6
  %v2769 = vrot.slane %v2554, 6
  %v2770 = vrot.slane %v2555, 6
  %v2771 = vrot.slane %v2556, 6
  %v2772 = vrot.slane %v2557, 6
  %v2773 = vrot.slane %v2558, 6
  %v2774 = vrot.slane %v2559, 6
  %v2775 = vrot.slane %v2560, 6
  %v2776 = vrot.slane %v2561, 6
  %v2777 = vrot.slane %v2562, 6
  %v2778 = vrot.slane %v2563, 6
  %v2779 = vrot.slane %v2564, 6
  %v2780 = vrot.slane %v2565, 6
  %v2781 = vrot.slane %v2566, 6
  %v2782 = vrot.slane %v2567, 6
  %v2783 = vrot.slane %v2568, 6
  %v2784 = vsel %vm551, %v2782, %v2783
  %v2785 = vsel %vm551, %v2781, %v2782
  %v2786 = vsel %vm551, %v2780, %v2781
  %v2787 = vsel %vm551, %v2779, %v2780
  %v2788 = vsel %vm551, %v2778, %v2779
  %v2789 = vsel %vm551, %v2777, %v2778
  %v2790 = vsel %vm551, %v2776, %v2777
  %v2791 = vsel %vm551, %v2775, %v2776
  %v2792 = vsel %vm551, %v2774, %v2775
  %v2793 = vsel %vm551, %v2773, %v2774
  %v2794 = vsel %vm551, %v2772, %v2773
  %v2795 = vsel %vm551, %v2771, %v2772
  %v2796 = vsel %vm551, %v2770, %v2771
  %v2797 = vsel %vm551, %v2769, %v2770
  %v2798 = vsel %vm551, %v2768, %v2769
  %v2799 = vsel %vm551, %v2767, %v2768
  %v2800 = vsel %vm551, %v2766, %v2767
  %v2801 = vsel %vm551, %v2765, %v2766
  %v2802 = vsel %vm551, %v2764, %v2765
  %v2803 = vsel %vm551, %v2763, %v2764
  %v2804 = vsel %vm551, %v2762, %v2763
  %v2805 = vsel %vm551, %v2761, %v2762
  %v2806 = vsel %vm551, %v2760, %v2761
  %v2807 = vsel %vm551, %v2759, %v2760
  %v2808 = vsel %vm551, %v2758, %v2759
  %v2809 = vsel %vm551, %v2783, %v2758
  %s2810 = scalar_lea.vmem %s4, 128
  %v2811 = vld [vmem:[%s2810] sm:$0xff]
  %v2812 = vld [vmem:[%s2810 + $0x8] sm:$0xff]
  %v2813 = vld [vmem:[%s2810 + $0x10] sm:$0xff]
  %v2814 = vld [vmem:[%s2810 + $0x18] sm:$0xff]
  %v2815 = vld [vmem:[%s2810 + $0x20] sm:$0xff]
  %v2816 = vld [vmem:[%s2810 + $0x28] sm:$0xff]
  %v2817 = vld [vmem:[%s2810 + $0x30] sm:$0xff]
  %v2818 = vld [vmem:[%s2810 + $0x38] sm:$0xff]
  %v2819 = vld [vmem:[%s2810 + $0x40] sm:$0xff]
  %v2820 = vld [vmem:[%s2810 + $0x48] sm:$0xff]
  %v2821 = vld [vmem:[%s2810 + $0x50] sm:$0xff]
  %v2822 = vld [vmem:[%s2810 + $0x58] sm:$0xff]
  %v2823 = vld [vmem:[%s2810 + $0x60] sm:$0xff]
  %v2824 = vld [vmem:[%s2810 + $0x68] sm:$0xff]
  %v2825 = vld [vmem:[%s2810 + $0x70] sm:$0xff]
  %v2826 = vld [vmem:[%s2810 + $0x78] sm:$0xff]
  %2827 = vmatpush.msra.mxu0 %v2826
  %2828 = vmatpush.msra.mxu0 %v2825
  %2829 = vmatpush.msra.mxu0 %v2824
  %2830 = vmatpush.msra.mxu0 %v2823
  %2831 = vmatpush.msra.mxu0 %v2822
  %2832 = vmatpush.msra.mxu0 %v2821
  %2833 = vmatpush.msra.mxu0 %v2820
  %2834 = vmatpush.msra.mxu0 %v2819
  %2835 = vmatpush.msra.mxu0 %v2818
  %2836 = vmatpush.msra.mxu0 %v2817
  %2837 = vmatpush.msra.mxu0 %v2816
  %2838 = vmatpush.msra.mxu0 %v2815
  %2839 = vmatpush.msra.mxu0 %v2814
  %2840 = vmatpush.msra.mxu0 %v2813
  %2841 = vmatpush.msra.mxu0 %v2812
  %2842 = vmatpush.msra.mxu0 %v2811
  %2843 = vmatmul.f32.gmra.mxu0 %v2784
  %v2844 = vpop.f32.mrf.mxu0
  %v2845 = vadd.f32 0.0, %v2844
  %2846 = vmatmul.f32.gmra.mxu0 %v2809
  %v2847 = vpop.f32.mrf.mxu0
  %v2848 = vadd.f32 0.0, %v2847
  %2849 = vmatmul.f32.gmra.mxu0 %v2808
  %v2850 = vpop.f32.mrf.mxu0
  %v2851 = vadd.f32 0.0, %v2850
  %2852 = vmatmul.f32.gmra.mxu0 %v2807
  %v2853 = vpop.f32.mrf.mxu0
  %v2854 = vadd.f32 0.0, %v2853
  %2855 = vmatmul.f32.gmra.mxu0 %v2806
  %v2856 = vpop.f32.mrf.mxu0
  %v2857 = vadd.f32 0.0, %v2856
  %2858 = vmatmul.f32.gmra.mxu0 %v2805
  %v2859 = vpop.f32.mrf.mxu0
  %v2860 = vadd.f32 0.0, %v2859
  %2861 = vmatmul.f32.gmra.mxu0 %v2804
  %v2862 = vpop.f32.mrf.mxu0
  %v2863 = vadd.f32 0.0, %v2862
  %2864 = vmatmul.f32.gmra.mxu0 %v2803
  %v2865 = vpop.f32.mrf.mxu0
  %v2866 = vadd.f32 0.0, %v2865
  %2867 = vmatmul.f32.gmra.mxu0 %v2802
  %v2868 = vpop.f32.mrf.mxu0
  %v2869 = vadd.f32 0.0, %v2868
  %2870 = vmatmul.f32.gmra.mxu0 %v2801
  %v2871 = vpop.f32.mrf.mxu0
  %v2872 = vadd.f32 0.0, %v2871
  %2873 = vmatmul.f32.gmra.mxu0 %v2800
  %v2874 = vpop.f32.mrf.mxu0
  %v2875 = vadd.f32 0.0, %v2874
  %2876 = vmatmul.f32.gmra.mxu0 %v2799
  %v2877 = vpop.f32.mrf.mxu0
  %v2878 = vadd.f32 0.0, %v2877
  %2879 = vmatmul.f32.gmra.mxu0 %v2798
  %v2880 = vpop.f32.mrf.mxu0
  %v2881 = vadd.f32 0.0, %v2880
  %2882 = vmatmul.f32.gmra.mxu0 %v2797
  %v2883 = vpop.f32.mrf.mxu0
  %v2884 = vadd.f32 0.0, %v2883
  %2885 = vmatmul.f32.gmra.mxu0 %v2796
  %v2886 = vpop.f32.mrf.mxu0
  %v2887 = vadd.f32 0.0, %v2886
  %2888 = vmatmul.f32.gmra.mxu0 %v2795
  %v2889 = vpop.f32.mrf.mxu0
  %v2890 = vadd.f32 0.0, %v2889
  %2891 = vmatmul.f32.gmra.mxu0 %v2794
  %v2892 = vpop.f32.mrf.mxu0
  %v2893 = vadd.f32 0.0, %v2892
  %2894 = vmatmul.f32.gmra.mxu0 %v2793
  %v2895 = vpop.f32.mrf.mxu0
  %v2896 = vadd.f32 0.0, %v2895
  %2897 = vmatmul.f32.gmra.mxu0 %v2792
  %v2898 = vpop.f32.mrf.mxu0
  %v2899 = vadd.f32 0.0, %v2898
  %2900 = vmatmul.f32.gmra.mxu0 %v2791
  %v2901 = vpop.f32.mrf.mxu0
  %v2902 = vadd.f32 0.0, %v2901
  %2903 = vmatmul.f32.gmra.mxu0 %v2790
  %v2904 = vpop.f32.mrf.mxu0
  %v2905 = vadd.f32 0.0, %v2904
  %2906 = vmatmul.f32.gmra.mxu0 %v2789
  %v2907 = vpop.f32.mrf.mxu0
  %v2908 = vadd.f32 0.0, %v2907
  %2909 = vmatmul.f32.gmra.mxu0 %v2788
  %v2910 = vpop.f32.mrf.mxu0
  %v2911 = vadd.f32 0.0, %v2910
  %2912 = vmatmul.f32.gmra.mxu0 %v2787
  %v2913 = vpop.f32.mrf.mxu0
  %v2914 = vadd.f32 0.0, %v2913
  %2915 = vmatmul.f32.gmra.mxu0 %v2786
  %v2916 = vpop.f32.mrf.mxu0
  %v2917 = vadd.f32 0.0, %v2916
  %2918 = vmatmul.f32.gmra.mxu0 %v2785
  %v2919 = vpop.f32.mrf.mxu0
  %v2920 = vadd.f32 0.0, %v2919
  %2921 = vdwg.mxu0
  %v2922 = vld [vmem:[#allocation2] sm:$0xff]
  %v2923 = vld [vmem:[#allocation2 + $0x8] sm:$0xff]
  %v2924 = vld [vmem:[#allocation2 + $0x10] sm:$0xff]
  %v2925 = vld [vmem:[#allocation2 + $0x18] sm:$0xff]
  %v2926 = vld [vmem:[#allocation2 + $0x20] sm:$0xff]
  %v2927 = vld [vmem:[#allocation2 + $0x28] sm:$0xff]
  %v2928 = vld [vmem:[#allocation2 + $0x30] sm:$0xff]
  %v2929 = vld [vmem:[#allocation2 + $0x38] sm:$0xff]
  %v2930 = vld [vmem:[#allocation2 + $0x40] sm:$0xff]
  %v2931 = vld [vmem:[#allocation2 + $0x48] sm:$0xff]
  %v2932 = vld [vmem:[#allocation2 + $0x50] sm:$0xff]
  %v2933 = vld [vmem:[#allocation2 + $0x58] sm:$0xff]
  %v2934 = vld [vmem:[#allocation2 + $0x60] sm:$0xff]
  %v2935 = vld [vmem:[#allocation2 + $0x68] sm:$0xff]
  %v2936 = vld [vmem:[#allocation2 + $0x70] sm:$0xff]
  %v2937 = vld [vmem:[#allocation2 + $0x78] sm:$0xff]
  %v2938 = vld [vmem:[#allocation2 + $0x80] sm:$0xff]
  %v2939 = vld [vmem:[#allocation2 + $0x88] sm:$0xff]
  %v2940 = vld [vmem:[#allocation2 + $0x90] sm:$0xff]
  %v2941 = vld [vmem:[#allocation2 + $0x98] sm:$0xff]
  %v2942 = vld [vmem:[#allocation2 + $0xa0] sm:$0xff]
  %v2943 = vld [vmem:[#allocation2 + $0xa8] sm:$0xff]
  %v2944 = vld [vmem:[#allocation2 + $0xb0] sm:$0xff]
  %v2945 = vld [vmem:[#allocation2 + $0xb8] sm:$0xff]
  %v2946 = vld [vmem:[#allocation2 + $0xc0] sm:$0xff]
  %v2947 = vld [vmem:[#allocation2 + $0xc8] sm:$0xff]
  %v2948 = vadd.f32 %v2922, %v2845
  %v2949 = vadd.f32 %v2923, %v2848
  %v2950 = vadd.f32 %v2924, %v2851
  %v2951 = vadd.f32 %v2925, %v2854
  %v2952 = vadd.f32 %v2926, %v2857
  %v2953 = vadd.f32 %v2927, %v2860
  %v2954 = vadd.f32 %v2928, %v2863
  %v2955 = vadd.f32 %v2929, %v2866
  %v2956 = vadd.f32 %v2930, %v2869
  %v2957 = vadd.f32 %v2931, %v2872
  %v2958 = vadd.f32 %v2932, %v2875
  %v2959 = vadd.f32 %v2933, %v2878
  %v2960 = vadd.f32 %v2934, %v2881
  %v2961 = vadd.f32 %v2935, %v2884
  %v2962 = vadd.f32 %v2936, %v2887
  %v2963 = vadd.f32 %v2937, %v2890
  %v2964 = vadd.f32 %v2938, %v2893
  %v2965 = vadd.f32 %v2939, %v2896
  %v2966 = vadd.f32 %v2940, %v2899
  %v2967 = vadd.f32 %v2941, %v2902
  %v2968 = vadd.f32 %v2942, %v2905
  %v2969 = vadd.f32 %v2943, %v2908
  %v2970 = vadd.f32 %v2944, %v2911
  %v2971 = vadd.f32 %v2945, %v2914
  %v2972 = vadd.f32 %v2946, %v2917
  %v2973 = vadd.f32 %v2947, %v2920
  %2974 = vst [vmem:[#allocation2] sm:$0xff] %v2948
  %2975 = vst [vmem:[#allocation2 + $0x8] sm:$0xff] %v2949
  %2976 = vst [vmem:[#allocation2 + $0x10] sm:$0xff] %v2950
  %2977 = vst [vmem:[#allocation2 + $0x18] sm:$0xff] %v2951
  %2978 = vst [vmem:[#allocation2 + $0x20] sm:$0xff] %v2952
  %2979 = vst [vmem:[#allocation2 + $0x28] sm:$0xff] %v2953
  %2980 = vst [vmem:[#allocation2 + $0x30] sm:$0xff] %v2954
  %2981 = vst [vmem:[#allocation2 + $0x38] sm:$0xff] %v2955
  %2982 = vst [vmem:[#allocation2 + $0x40] sm:$0xff] %v2956
  %2983 = vst [vmem:[#allocation2 + $0x48] sm:$0xff] %v2957
  %2984 = vst [vmem:[#allocation2 + $0x50] sm:$0xff] %v2958
  %2985 = vst [vmem:[#allocation2 + $0x58] sm:$0xff] %v2959
  %2986 = vst [vmem:[#allocation2 + $0x60] sm:$0xff] %v2960
  %2987 = vst [vmem:[#allocation2 + $0x68] sm:$0xff] %v2961
  %2988 = vst [vmem:[#allocation2 + $0x70] sm:$0xff] %v2962
  %2989 = vst [vmem:[#allocation2 + $0x78] sm:$0xff] %v2963
  %2990 = vst [vmem:[#allocation2 + $0x80] sm:$0xff] %v2964
  %2991 = vst [vmem:[#allocation2 + $0x88] sm:$0xff] %v2965
  %2992 = vst [vmem:[#allocation2 + $0x90] sm:$0xff] %v2966
  %2993 = vst [vmem:[#allocation2 + $0x98] sm:$0xff] %v2967
  %2994 = vst [vmem:[#allocation2 + $0xa0] sm:$0xff] %v2968
  %2995 = vst [vmem:[#allocation2 + $0xa8] sm:$0xff] %v2969
  %2996 = vst [vmem:[#allocation2 + $0xb0] sm:$0xff] %v2970
  %2997 = vst [vmem:[#allocation2 + $0xb8] sm:$0xff] %v2971
  %2998 = vst [vmem:[#allocation2 + $0xc0] sm:$0xff] %v2972
  %2999 = vst [vmem:[#allocation2 + $0xc8] sm:$0xff] %v2973
  %v3000 = vrot.slane %v2543, 7
  %v3001 = vrot.slane %v2544, 7
  %v3002 = vrot.slane %v2545, 7
  %v3003 = vrot.slane %v2546, 7
  %v3004 = vrot.slane %v2547, 7
  %v3005 = vrot.slane %v2548, 7
  %v3006 = vrot.slane %v2549, 7
  %v3007 = vrot.slane %v2550, 7
  %v3008 = vrot.slane %v2551, 7
  %v3009 = vrot.slane %v2552, 7
  %v3010 = vrot.slane %v2553, 7
  %v3011 = vrot.slane %v2554, 7
  %v3012 = vrot.slane %v2555, 7
  %v3013 = vrot.slane %v2556, 7
  %v3014 = vrot.slane %v2557, 7
  %v3015 = vrot.slane %v2558, 7
  %v3016 = vrot.slane %v2559, 7
  %v3017 = vrot.slane %v2560, 7
  %v3018 = vrot.slane %v2561, 7
  %v3019 = vrot.slane %v2562, 7
  %v3020 = vrot.slane %v2563, 7
  %v3021 = vrot.slane %v2564, 7
  %v3022 = vrot.slane %v2565, 7
  %v3023 = vrot.slane %v2566, 7
  %v3024 = vrot.slane %v2567, 7
  %v3025 = vrot.slane %v2568, 7
  %v3026 = vsel %vm1574, %v3024, %v3025
  %v3027 = vsel %vm1574, %v3023, %v3024
  %v3028 = vsel %vm1574, %v3022, %v3023
  %v3029 = vsel %vm1574, %v3021, %v3022
  %v3030 = vsel %vm1574, %v3020, %v3021
  %v3031 = vsel %vm1574, %v3019, %v3020
  %v3032 = vsel %vm1574, %v3018, %v3019
  %v3033 = vsel %vm1574, %v3017, %v3018
  %v3034 = vsel %vm1574, %v3016, %v3017
  %v3035 = vsel %vm1574, %v3015, %v3016
  %v3036 = vsel %vm1574, %v3014, %v3015
  %v3037 = vsel %vm1574, %v3013, %v3014
  %v3038 = vsel %vm1574, %v3012, %v3013
  %v3039 = vsel %vm1574, %v3011, %v3012
  %v3040 = vsel %vm1574, %v3010, %v3011
  %v3041 = vsel %vm1574, %v3009, %v3010
  %v3042 = vsel %vm1574, %v3008, %v3009
  %v3043 = vsel %vm1574, %v3007, %v3008
  %v3044 = vsel %vm1574, %v3006, %v3007
  %v3045 = vsel %vm1574, %v3005, %v3006
  %v3046 = vsel %vm1574, %v3004, %v3005
  %v3047 = vsel %vm1574, %v3003, %v3004
  %v3048 = vsel %vm1574, %v3002, %v3003
  %v3049 = vsel %vm1574, %v3001, %v3002
  %v3050 = vsel %vm1574, %v3000, %v3001
  %v3051 = vsel %vm1574, %v3025, %v3000
  %s3052 = scalar_lea.vmem %s4, 256
  %v3053 = vld [vmem:[%s3052] sm:$0xff]
  %v3054 = vld [vmem:[%s3052 + $0x8] sm:$0xff]
  %v3055 = vld [vmem:[%s3052 + $0x10] sm:$0xff]
  %v3056 = vld [vmem:[%s3052 + $0x18] sm:$0xff]
  %v3057 = vld [vmem:[%s3052 + $0x20] sm:$0xff]
  %v3058 = vld [vmem:[%s3052 + $0x28] sm:$0xff]
  %v3059 = vld [vmem:[%s3052 + $0x30] sm:$0xff]
  %v3060 = vld [vmem:[%s3052 + $0x38] sm:$0xff]
  %v3061 = vld [vmem:[%s3052 + $0x40] sm:$0xff]
  %v3062 = vld [vmem:[%s3052 + $0x48] sm:$0xff]
  %v3063 = vld [vmem:[%s3052 + $0x50] sm:$0xff]
  %v3064 = vld [vmem:[%s3052 + $0x58] sm:$0xff]
  %v3065 = vld [vmem:[%s3052 + $0x60] sm:$0xff]
  %v3066 = vld [vmem:[%s3052 + $0x68] sm:$0xff]
  %v3067 = vld [vmem:[%s3052 + $0x70] sm:$0xff]
  %v3068 = vld [vmem:[%s3052 + $0x78] sm:$0xff]
  %3069 = vmatpush.msra.mxu0 %v3068
  %3070 = vmatpush.msra.mxu0 %v3067
  %3071 = vmatpush.msra.mxu0 %v3066
  %3072 = vmatpush.msra.mxu0 %v3065
  %3073 = vmatpush.msra.mxu0 %v3064
  %3074 = vmatpush.msra.mxu0 %v3063
  %3075 = vmatpush.msra.mxu0 %v3062
  %3076 = vmatpush.msra.mxu0 %v3061
  %3077 = vmatpush.msra.mxu0 %v3060
  %3078 = vmatpush.msra.mxu0 %v3059
  %3079 = vmatpush.msra.mxu0 %v3058
  %3080 = vmatpush.msra.mxu0 %v3057
  %3081 = vmatpush.msra.mxu0 %v3056
  %3082 = vmatpush.msra.mxu0 %v3055
  %3083 = vmatpush.msra.mxu0 %v3054
  %3084 = vmatpush.msra.mxu0 %v3053
  %3085 = vmatmul.f32.gmra.mxu0 %v3026
  %v3086 = vpop.f32.mrf.mxu0
  %v3087 = vadd.f32 0.0, %v3086
  %3088 = vmatmul.f32.gmra.mxu0 %v3051
  %v3089 = vpop.f32.mrf.mxu0
  %v3090 = vadd.f32 0.0, %v3089
  %3091 = vmatmul.f32.gmra.mxu0 %v3050
  %v3092 = vpop.f32.mrf.mxu0
  %v3093 = vadd.f32 0.0, %v3092
  %3094 = vmatmul.f32.gmra.mxu0 %v3049
  %v3095 = vpop.f32.mrf.mxu0
  %v3096 = vadd.f32 0.0, %v3095
  %3097 = vmatmul.f32.gmra.mxu0 %v3048
  %v3098 = vpop.f32.mrf.mxu0
  %v3099 = vadd.f32 0.0, %v3098
  %3100 = vmatmul.f32.gmra.mxu0 %v3047
  %v3101 = vpop.f32.mrf.mxu0
  %v3102 = vadd.f32 0.0, %v3101
  %3103 = vmatmul.f32.gmra.mxu0 %v3046
  %v3104 = vpop.f32.mrf.mxu0
  %v3105 = vadd.f32 0.0, %v3104
  %3106 = vmatmul.f32.gmra.mxu0 %v3045
  %v3107 = vpop.f32.mrf.mxu0
  %v3108 = vadd.f32 0.0, %v3107
  %3109 = vmatmul.f32.gmra.mxu0 %v3044
  %v3110 = vpop.f32.mrf.mxu0
  %v3111 = vadd.f32 0.0, %v3110
  %3112 = vmatmul.f32.gmra.mxu0 %v3043
  %v3113 = vpop.f32.mrf.mxu0
  %v3114 = vadd.f32 0.0, %v3113
  %3115 = vmatmul.f32.gmra.mxu0 %v3042
  %v3116 = vpop.f32.mrf.mxu0
  %v3117 = vadd.f32 0.0, %v3116
  %3118 = vmatmul.f32.gmra.mxu0 %v3041
  %v3119 = vpop.f32.mrf.mxu0
  %v3120 = vadd.f32 0.0, %v3119
  %3121 = vmatmul.f32.gmra.mxu0 %v3040
  %v3122 = vpop.f32.mrf.mxu0
  %v3123 = vadd.f32 0.0, %v3122
  %3124 = vmatmul.f32.gmra.mxu0 %v3039
  %v3125 = vpop.f32.mrf.mxu0
  %v3126 = vadd.f32 0.0, %v3125
  %3127 = vmatmul.f32.gmra.mxu0 %v3038
  %v3128 = vpop.f32.mrf.mxu0
  %v3129 = vadd.f32 0.0, %v3128
  %3130 = vmatmul.f32.gmra.mxu0 %v3037
  %v3131 = vpop.f32.mrf.mxu0
  %v3132 = vadd.f32 0.0, %v3131
  %3133 = vmatmul.f32.gmra.mxu0 %v3036
  %v3134 = vpop.f32.mrf.mxu0
  %v3135 = vadd.f32 0.0, %v3134
  %3136 = vmatmul.f32.gmra.mxu0 %v3035
  %v3137 = vpop.f32.mrf.mxu0
  %v3138 = vadd.f32 0.0, %v3137
  %3139 = vmatmul.f32.gmra.mxu0 %v3034
  %v3140 = vpop.f32.mrf.mxu0
  %v3141 = vadd.f32 0.0, %v3140
  %3142 = vmatmul.f32.gmra.mxu0 %v3033
  %v3143 = vpop.f32.mrf.mxu0
  %v3144 = vadd.f32 0.0, %v3143
  %3145 = vmatmul.f32.gmra.mxu0 %v3032
  %v3146 = vpop.f32.mrf.mxu0
  %v3147 = vadd.f32 0.0, %v3146
  %3148 = vmatmul.f32.gmra.mxu0 %v3031
  %v3149 = vpop.f32.mrf.mxu0
  %v3150 = vadd.f32 0.0, %v3149
  %3151 = vmatmul.f32.gmra.mxu0 %v3030
  %v3152 = vpop.f32.mrf.mxu0
  %v3153 = vadd.f32 0.0, %v3152
  %3154 = vmatmul.f32.gmra.mxu0 %v3029
  %v3155 = vpop.f32.mrf.mxu0
  %v3156 = vadd.f32 0.0, %v3155
  %3157 = vmatmul.f32.gmra.mxu0 %v3028
  %v3158 = vpop.f32.mrf.mxu0
  %v3159 = vadd.f32 0.0, %v3158
  %3160 = vmatmul.f32.gmra.mxu0 %v3027
  %v3161 = vpop.f32.mrf.mxu0
  %v3162 = vadd.f32 0.0, %v3161
  %3163 = vdwg.mxu0
  %v3164 = vld [vmem:[#allocation2] sm:$0xff]
  %v3165 = vld [vmem:[#allocation2 + $0x8] sm:$0xff]
  %v3166 = vld [vmem:[#allocation2 + $0x10] sm:$0xff]
  %v3167 = vld [vmem:[#allocation2 + $0x18] sm:$0xff]
  %v3168 = vld [vmem:[#allocation2 + $0x20] sm:$0xff]
  %v3169 = vld [vmem:[#allocation2 + $0x28] sm:$0xff]
  %v3170 = vld [vmem:[#allocation2 + $0x30] sm:$0xff]
  %v3171 = vld [vmem:[#allocation2 + $0x38] sm:$0xff]
  %v3172 = vld [vmem:[#allocation2 + $0x40] sm:$0xff]
  %v3173 = vld [vmem:[#allocation2 + $0x48] sm:$0xff]
  %v3174 = vld [vmem:[#allocation2 + $0x50] sm:$0xff]
  %v3175 = vld [vmem:[#allocation2 + $0x58] sm:$0xff]
  %v3176 = vld [vmem:[#allocation2 + $0x60] sm:$0xff]
  %v3177 = vld [vmem:[#allocation2 + $0x68] sm:$0xff]
  %v3178 = vld [vmem:[#allocation2 + $0x70] sm:$0xff]
  %v3179 = vld [vmem:[#allocation2 + $0x78] sm:$0xff]
  %v3180 = vld [vmem:[#allocation2 + $0x80] sm:$0xff]
  %v3181 = vld [vmem:[#allocation2 + $0x88] sm:$0xff]
  %v3182 = vld [vmem:[#allocation2 + $0x90] sm:$0xff]
  %v3183 = vld [vmem:[#allocation2 + $0x98] sm:$0xff]
  %v3184 = vld [vmem:[#allocation2 + $0xa0] sm:$0xff]
  %v3185 = vld [vmem:[#allocation2 + $0xa8] sm:$0xff]
  %v3186 = vld [vmem:[#allocation2 + $0xb0] sm:$0xff]
  %v3187 = vld [vmem:[#allocation2 + $0xb8] sm:$0xff]
  %v3188 = vld [vmem:[#allocation2 + $0xc0] sm:$0xff]
  %v3189 = vld [vmem:[#allocation2 + $0xc8] sm:$0xff]
  %v3190 = vadd.f32 %v3164, %v3087
  %v3191 = vadd.f32 %v3165, %v3090
  %v3192 = vadd.f32 %v3166, %v3093
  %v3193 = vadd.f32 %v3167, %v3096
  %v3194 = vadd.f32 %v3168, %v3099
  %v3195 = vadd.f32 %v3169, %v3102
  %v3196 = vadd.f32 %v3170, %v3105
  %v3197 = vadd.f32 %v3171, %v3108
  %v3198 = vadd.f32 %v3172, %v3111
  %v3199 = vadd.f32 %v3173, %v3114
  %v3200 = vadd.f32 %v3174, %v3117
  %v3201 = vadd.f32 %v3175, %v3120
  %v3202 = vadd.f32 %v3176, %v3123
  %v3203 = vadd.f32 %v3177, %v3126
  %v3204 = vadd.f32 %v3178, %v3129
  %v3205 = vadd.f32 %v3179, %v3132
  %v3206 = vadd.f32 %v3180, %v3135
  %v3207 = vadd.f32 %v3181, %v3138
  %v3208 = vadd.f32 %v3182, %v3141
  %v3209 = vadd.f32 %v3183, %v3144
  %v3210 = vadd.f32 %v3184, %v3147
  %v3211 = vadd.f32 %v3185, %v3150
  %v3212 = vadd.f32 %v3186, %v3153
  %v3213 = vadd.f32 %v3187, %v3156
  %v3214 = vadd.f32 %v3188, %v3159
  %v3215 = vadd.f32 %v3189, %v3162
  %3216 = vst [vmem:[#allocation2] sm:$0xff] %v3190
  %3217 = vst [vmem:[#allocation2 + $0x8] sm:$0xff] %v3191
  %3218 = vst [vmem:[#allocation2 + $0x10] sm:$0xff] %v3192
  %3219 = vst [vmem:[#allocation2 + $0x18] sm:$0xff] %v3193
  %3220 = vst [vmem:[#allocation2 + $0x20] sm:$0xff] %v3194
  %3221 = vst [vmem:[#allocation2 + $0x28] sm:$0xff] %v3195
  %3222 = vst [vmem:[#allocation2 + $0x30] sm:$0xff] %v3196
  %3223 = vst [vmem:[#allocation2 + $0x38] sm:$0xff] %v3197
  %3224 = vst [vmem:[#allocation2 + $0x40] sm:$0xff] %v3198
  %3225 = vst [vmem:[#allocation2 + $0x48] sm:$0xff] %v3199
  %3226 = vst [vmem:[#allocation2 + $0x50] sm:$0xff] %v3200
  %3227 = vst [vmem:[#allocation2 + $0x58] sm:$0xff] %v3201
  %3228 = vst [vmem:[#allocation2 + $0x60] sm:$0xff] %v3202
  %3229 = vst [vmem:[#allocation2 + $0x68] sm:$0xff] %v3203
  %3230 = vst [vmem:[#allocation2 + $0x70] sm:$0xff] %v3204
  %3231 = vst [vmem:[#allocation2 + $0x78] sm:$0xff] %v3205
  %3232 = vst [vmem:[#allocation2 + $0x80] sm:$0xff] %v3206
  %3233 = vst [vmem:[#allocation2 + $0x88] sm:$0xff] %v3207
  %3234 = vst [vmem:[#allocation2 + $0x90] sm:$0xff] %v3208
  %3235 = vst [vmem:[#allocation2 + $0x98] sm:$0xff] %v3209
  %3236 = vst [vmem:[#allocation2 + $0xa0] sm:$0xff] %v3210
  %3237 = vst [vmem:[#allocation2 + $0xa8] sm:$0xff] %v3211
  %3238 = vst [vmem:[#allocation2 + $0xb0] sm:$0xff] %v3212
  %3239 = vst [vmem:[#allocation2 + $0xb8] sm:$0xff] %v3213
  %3240 = vst [vmem:[#allocation2 + $0xc0] sm:$0xff] %v3214
  %3241 = vst [vmem:[#allocation2 + $0xc8] sm:$0xff] %v3215
  %s3242 = scalar_lea.vmem %s4, 384
  %v3243 = vld [vmem:[%s3242] sm:$0xff]
  %v3244 = vld [vmem:[%s3242 + $0x8] sm:$0xff]
  %v3245 = vld [vmem:[%s3242 + $0x10] sm:$0xff]
  %v3246 = vld [vmem:[%s3242 + $0x18] sm:$0xff]
  %v3247 = vld [vmem:[%s3242 + $0x20] sm:$0xff]
  %v3248 = vld [vmem:[%s3242 + $0x28] sm:$0xff]
  %v3249 = vld [vmem:[%s3242 + $0x30] sm:$0xff]
  %v3250 = vld [vmem:[%s3242 + $0x38] sm:$0xff]
  %v3251 = vld [vmem:[%s3242 + $0x40] sm:$0xff]
  %v3252 = vld [vmem:[%s3242 + $0x48] sm:$0xff]
  %v3253 = vld [vmem:[%s3242 + $0x50] sm:$0xff]
  %v3254 = vld [vmem:[%s3242 + $0x58] sm:$0xff]
  %v3255 = vld [vmem:[%s3242 + $0x60] sm:$0xff]
  %v3256 = vld [vmem:[%s3242 + $0x68] sm:$0xff]
  %v3257 = vld [vmem:[%s3242 + $0x70] sm:$0xff]
  %v3258 = vld [vmem:[%s3242 + $0x78] sm:$0xff]
  %3259 = vmatpush.msra.mxu0 %v3258
  %3260 = vmatpush.msra.mxu0 %v3257
  %3261 = vmatpush.msra.mxu0 %v3256
  %3262 = vmatpush.msra.mxu0 %v3255
  %3263 = vmatpush.msra.mxu0 %v3254
  %3264 = vmatpush.msra.mxu0 %v3253
  %3265 = vmatpush.msra.mxu0 %v3252
  %3266 = vmatpush.msra.mxu0 %v3251
  %3267 = vmatpush.msra.mxu0 %v3250
  %3268 = vmatpush.msra.mxu0 %v3249
  %3269 = vmatpush.msra.mxu0 %v3248
  %3270 = vmatpush.msra.mxu0 %v3247
  %3271 = vmatpush.msra.mxu0 %v3246
  %3272 = vmatpush.msra.mxu0 %v3245
  %3273 = vmatpush.msra.mxu0 %v3244
  %3274 = vmatpush.msra.mxu0 %v3243
  %3275 = vmatmul.f32.gmra.mxu0 %v3051
  %v3276 = vpop.f32.mrf.mxu0
  %v3277 = vadd.f32 0.0, %v3276
  %3278 = vmatmul.f32.gmra.mxu0 %v3050
  %v3279 = vpop.f32.mrf.mxu0
  %v3280 = vadd.f32 0.0, %v3279
  %3281 = vmatmul.f32.gmra.mxu0 %v3049
  %v3282 = vpop.f32.mrf.mxu0
  %v3283 = vadd.f32 0.0, %v3282
  %3284 = vmatmul.f32.gmra.mxu0 %v3048
  %v3285 = vpop.f32.mrf.mxu0
  %v3286 = vadd.f32 0.0, %v3285
  %3287 = vmatmul.f32.gmra.mxu0 %v3047
  %v3288 = vpop.f32.mrf.mxu0
  %v3289 = vadd.f32 0.0, %v3288
  %3290 = vmatmul.f32.gmra.mxu0 %v3046
  %v3291 = vpop.f32.mrf.mxu0
  %v3292 = vadd.f32 0.0, %v3291
  %3293 = vmatmul.f32.gmra.mxu0 %v3045
  %v3294 = vpop.f32.mrf.mxu0
  %v3295 = vadd.f32 0.0, %v3294
  %3296 = vmatmul.f32.gmra.mxu0 %v3044
  %v3297 = vpop.f32.mrf.mxu0
  %v3298 = vadd.f32 0.0, %v3297
  %3299 = vmatmul.f32.gmra.mxu0 %v3043
  %v3300 = vpop.f32.mrf.mxu0
  %v3301 = vadd.f32 0.0, %v3300
  %3302 = vmatmul.f32.gmra.mxu0 %v3042
  %v3303 = vpop.f32.mrf.mxu0
  %v3304 = vadd.f32 0.0, %v3303
  %3305 = vmatmul.f32.gmra.mxu0 %v3041
  %v3306 = vpop.f32.mrf.mxu0
  %v3307 = vadd.f32 0.0, %v3306
  %3308 = vmatmul.f32.gmra.mxu0 %v3040
  %v3309 = vpop.f32.mrf.mxu0
  %v3310 = vadd.f32 0.0, %v3309
  %3311 = vmatmul.f32.gmra.mxu0 %v3039
  %v3312 = vpop.f32.mrf.mxu0
  %v3313 = vadd.f32 0.0, %v3312
  %3314 = vmatmul.f32.gmra.mxu0 %v3038
  %v3315 = vpop.f32.mrf.mxu0
  %v3316 = vadd.f32 0.0, %v3315
  %3317 = vmatmul.f32.gmra.mxu0 %v3037
  %v3318 = vpop.f32.mrf.mxu0
  %v3319 = vadd.f32 0.0, %v3318
  %3320 = vmatmul.f32.gmra.mxu0 %v3036
  %v3321 = vpop.f32.mrf.mxu0
  %v3322 = vadd.f32 0.0, %v3321
  %3323 = vmatmul.f32.gmra.mxu0 %v3035
  %v3324 = vpop.f32.mrf.mxu0
  %v3325 = vadd.f32 0.0, %v3324
  %3326 = vmatmul.f32.gmra.mxu0 %v3034
  %v3327 = vpop.f32.mrf.mxu0
  %v3328 = vadd.f32 0.0, %v3327
  %3329 = vmatmul.f32.gmra.mxu0 %v3033
  %v3330 = vpop.f32.mrf.mxu0
  %v3331 = vadd.f32 0.0, %v3330
  %3332 = vmatmul.f32.gmra.mxu0 %v3032
  %v3333 = vpop.f32.mrf.mxu0
  %v3334 = vadd.f32 0.0, %v3333
  %3335 = vmatmul.f32.gmra.mxu0 %v3031
  %v3336 = vpop.f32.mrf.mxu0
  %v3337 = vadd.f32 0.0, %v3336
  %3338 = vmatmul.f32.gmra.mxu0 %v3030
  %v3339 = vpop.f32.mrf.mxu0
  %v3340 = vadd.f32 0.0, %v3339
  %3341 = vmatmul.f32.gmra.mxu0 %v3029
  %v3342 = vpop.f32.mrf.mxu0
  %v3343 = vadd.f32 0.0, %v3342
  %3344 = vmatmul.f32.gmra.mxu0 %v3028
  %v3345 = vpop.f32.mrf.mxu0
  %v3346 = vadd.f32 0.0, %v3345
  %3347 = vmatmul.f32.gmra.mxu0 %v3027
  %v3348 = vpop.f32.mrf.mxu0
  %v3349 = vadd.f32 0.0, %v3348
  %3350 = vmatmul.f32.gmra.mxu0 %v3026
  %v3351 = vpop.f32.mrf.mxu0
  %v3352 = vadd.f32 0.0, %v3351
  %3353 = vdwg.mxu0
  %v3354 = vld [vmem:[#allocation2] sm:$0xff]
  %v3355 = vld [vmem:[#allocation2 + $0x8] sm:$0xff]
  %v3356 = vld [vmem:[#allocation2 + $0x10] sm:$0xff]
  %v3357 = vld [vmem:[#allocation2 + $0x18] sm:$0xff]
  %v3358 = vld [vmem:[#allocation2 + $0x20] sm:$0xff]
  %v3359 = vld [vmem:[#allocation2 + $0x28] sm:$0xff]
  %v3360 = vld [vmem:[#allocation2 + $0x30] sm:$0xff]
  %v3361 = vld [vmem:[#allocation2 + $0x38] sm:$0xff]
  %v3362 = vld [vmem:[#allocation2 + $0x40] sm:$0xff]
  %v3363 = vld [vmem:[#allocation2 + $0x48] sm:$0xff]
  %v3364 = vld [vmem:[#allocation2 + $0x50] sm:$0xff]
  %v3365 = vld [vmem:[#allocation2 + $0x58] sm:$0xff]
  %v3366 = vld [vmem:[#allocation2 + $0x60] sm:$0xff]
  %v3367 = vld [vmem:[#allocation2 + $0x68] sm:$0xff]
  %v3368 = vld [vmem:[#allocation2 + $0x70] sm:$0xff]
  %v3369 = vld [vmem:[#allocation2 + $0x78] sm:$0xff]
  %v3370 = vld [vmem:[#allocation2 + $0x80] sm:$0xff]
  %v3371 = vld [vmem:[#allocation2 + $0x88] sm:$0xff]
  %v3372 = vld [vmem:[#allocation2 + $0x90] sm:$0xff]
  %v3373 = vld [vmem:[#allocation2 + $0x98] sm:$0xff]
  %v3374 = vld [vmem:[#allocation2 + $0xa0] sm:$0xff]
  %v3375 = vld [vmem:[#allocation2 + $0xa8] sm:$0xff]
  %v3376 = vld [vmem:[#allocation2 + $0xb0] sm:$0xff]
  %v3377 = vld [vmem:[#allocation2 + $0xb8] sm:$0xff]
  %v3378 = vld [vmem:[#allocation2 + $0xc0] sm:$0xff]
  %v3379 = vld [vmem:[#allocation2 + $0xc8] sm:$0xff]
  %v3380 = vadd.f32 %v3354, %v3277
  %v3381 = vadd.f32 %v3355, %v3280
  %v3382 = vadd.f32 %v3356, %v3283
  %v3383 = vadd.f32 %v3357, %v3286
  %v3384 = vadd.f32 %v3358, %v3289
  %v3385 = vadd.f32 %v3359, %v3292
  %v3386 = vadd.f32 %v3360, %v3295
  %v3387 = vadd.f32 %v3361, %v3298
  %v3388 = vadd.f32 %v3362, %v3301
  %v3389 = vadd.f32 %v3363, %v3304
  %v3390 = vadd.f32 %v3364, %v3307
  %v3391 = vadd.f32 %v3365, %v3310
  %v3392 = vadd.f32 %v3366, %v3313
  %v3393 = vadd.f32 %v3367, %v3316
  %v3394 = vadd.f32 %v3368, %v3319
  %v3395 = vadd.f32 %v3369, %v3322
  %v3396 = vadd.f32 %v3370, %v3325
  %v3397 = vadd.f32 %v3371, %v3328
  %v3398 = vadd.f32 %v3372, %v3331
  %v3399 = vadd.f32 %v3373, %v3334
  %v3400 = vadd.f32 %v3374, %v3337
  %v3401 = vadd.f32 %v3375, %v3340
  %v3402 = vadd.f32 %v3376, %v3343
  %v3403 = vadd.f32 %v3377, %v3346
  %v3404 = vadd.f32 %v3378, %v3349
  %v3405 = vadd.f32 %v3379, %v3352
  %3406 = vst [vmem:[#allocation2] sm:$0xff] %v3380
  %3407 = vst [vmem:[#allocation2 + $0x8] sm:$0xff] %v3381
  %3408 = vst [vmem:[#allocation2 + $0x10] sm:$0xff] %v3382
  %3409 = vst [vmem:[#allocation2 + $0x18] sm:$0xff] %v3383
  %3410 = vst [vmem:[#allocation2 + $0x20] sm:$0xff] %v3384
  %3411 = vst [vmem:[#allocation2 + $0x28] sm:$0xff] %v3385
  %3412 = vst [vmem:[#allocation2 + $0x30] sm:$0xff] %v3386
  %3413 = vst [vmem:[#allocation2 + $0x38] sm:$0xff] %v3387
  %3414 = vst [vmem:[#allocation2 + $0x40] sm:$0xff] %v3388
  %3415 = vst [vmem:[#allocation2 + $0x48] sm:$0xff] %v3389
  %3416 = vst [vmem:[#allocation2 + $0x50] sm:$0xff] %v3390
  %3417 = vst [vmem:[#allocation2 + $0x58] sm:$0xff] %v3391
  %3418 = vst [vmem:[#allocation2 + $0x60] sm:$0xff] %v3392
  %3419 = vst [vmem:[#allocation2 + $0x68] sm:$0xff] %v3393
  %3420 = vst [vmem:[#allocation2 + $0x70] sm:$0xff] %v3394
  %3421 = vst [vmem:[#allocation2 + $0x78] sm:$0xff] %v3395
  %3422 = vst [vmem:[#allocation2 + $0x80] sm:$0xff] %v3396
  %3423 = vst [vmem:[#allocation2 + $0x88] sm:$0xff] %v3397
  %3424 = vst [vmem:[#allocation2 + $0x90] sm:$0xff] %v3398
  %3425 = vst [vmem:[#allocation2 + $0x98] sm:$0xff] %v3399
  %3426 = vst [vmem:[#allocation2 + $0xa0] sm:$0xff] %v3400
  %3427 = vst [vmem:[#allocation2 + $0xa8] sm:$0xff] %v3401
  %3428 = vst [vmem:[#allocation2 + $0xb0] sm:$0xff] %v3402
  %3429 = vst [vmem:[#allocation2 + $0xb8] sm:$0xff] %v3403
  %3430 = vst [vmem:[#allocation2 + $0xc0] sm:$0xff] %v3404
  %3431 = vst [vmem:[#allocation2 + $0xc8] sm:$0xff] %v3405
  %s3432 = scalar_lea.vmem %s4, 512
  %v3433 = vld [vmem:[%s3432] sm:$0xff]
  %v3434 = vld [vmem:[%s3432 + $0x8] sm:$0xff]
  %v3435 = vld [vmem:[%s3432 + $0x10] sm:$0xff]
  %v3436 = vld [vmem:[%s3432 + $0x18] sm:$0xff]
  %v3437 = vld [vmem:[%s3432 + $0x20] sm:$0xff]
  %v3438 = vld [vmem:[%s3432 + $0x28] sm:$0xff]
  %v3439 = vld [vmem:[%s3432 + $0x30] sm:$0xff]
  %v3440 = vld [vmem:[%s3432 + $0x38] sm:$0xff]
  %v3441 = vld [vmem:[%s3432 + $0x40] sm:$0xff]
  %v3442 = vld [vmem:[%s3432 + $0x48] sm:$0xff]
  %v3443 = vld [vmem:[%s3432 + $0x50] sm:$0xff]
  %v3444 = vld [vmem:[%s3432 + $0x58] sm:$0xff]
  %v3445 = vld [vmem:[%s3432 + $0x60] sm:$0xff]
  %v3446 = vld [vmem:[%s3432 + $0x68] sm:$0xff]
  %v3447 = vld [vmem:[%s3432 + $0x70] sm:$0xff]
  %v3448 = vld [vmem:[%s3432 + $0x78] sm:$0xff]
  %3449 = vmatpush.msra.mxu0 %v3448
  %3450 = vmatpush.msra.mxu0 %v3447
  %3451 = vmatpush.msra.mxu0 %v3446
  %3452 = vmatpush.msra.mxu0 %v3445
  %3453 = vmatpush.msra.mxu0 %v3444
  %3454 = vmatpush.msra.mxu0 %v3443
  %3455 = vmatpush.msra.mxu0 %v3442
  %3456 = vmatpush.msra.mxu0 %v3441
  %3457 = vmatpush.msra.mxu0 %v3440
  %3458 = vmatpush.msra.mxu0 %v3439
  %3459 = vmatpush.msra.mxu0 %v3438
  %3460 = vmatpush.msra.mxu0 %v3437
  %3461 = vmatpush.msra.mxu0 %v3436
  %3462 = vmatpush.msra.mxu0 %v3435
  %3463 = vmatpush.msra.mxu0 %v3434
  %3464 = vmatpush.msra.mxu0 %v3433
  %3465 = vmatmul.f32.gmra.mxu0 %v2543
  %v3466 = vpop.f32.mrf.mxu0
  %v3467 = vadd.f32 0.0, %v3466
  %3468 = vmatmul.f32.gmra.mxu0 %v2544
  %v3469 = vpop.f32.mrf.mxu0
  %v3470 = vadd.f32 0.0, %v3469
  %3471 = vmatmul.f32.gmra.mxu0 %v2545
  %v3472 = vpop.f32.mrf.mxu0
  %v3473 = vadd.f32 0.0, %v3472
  %3474 = vmatmul.f32.gmra.mxu0 %v2546
  %v3475 = vpop.f32.mrf.mxu0
  %v3476 = vadd.f32 0.0, %v3475
  %3477 = vmatmul.f32.gmra.mxu0 %v2547
  %v3478 = vpop.f32.mrf.mxu0
  %v3479 = vadd.f32 0.0, %v3478
  %3480 = vmatmul.f32.gmra.mxu0 %v2548
  %v3481 = vpop.f32.mrf.mxu0
  %v3482 = vadd.f32 0.0, %v3481
  %3483 = vmatmul.f32.gmra.mxu0 %v2549
  %v3484 = vpop.f32.mrf.mxu0
  %v3485 = vadd.f32 0.0, %v3484
  %3486 = vmatmul.f32.gmra.mxu0 %v2550
  %v3487 = vpop.f32.mrf.mxu0
  %v3488 = vadd.f32 0.0, %v3487
  %3489 = vmatmul.f32.gmra.mxu0 %v2551
  %v3490 = vpop.f32.mrf.mxu0
  %v3491 = vadd.f32 0.0, %v3490
  %3492 = vmatmul.f32.gmra.mxu0 %v2552
  %v3493 = vpop.f32.mrf.mxu0
  %v3494 = vadd.f32 0.0, %v3493
  %3495 = vmatmul.f32.gmra.mxu0 %v2553
  %v3496 = vpop.f32.mrf.mxu0
  %v3497 = vadd.f32 0.0, %v3496
  %3498 = vmatmul.f32.gmra.mxu0 %v2554
  %v3499 = vpop.f32.mrf.mxu0
  %v3500 = vadd.f32 0.0, %v3499
  %3501 = vmatmul.f32.gmra.mxu0 %v2555
  %v3502 = vpop.f32.mrf.mxu0
  %v3503 = vadd.f32 0.0, %v3502
  %3504 = vmatmul.f32.gmra.mxu0 %v2556
  %v3505 = vpop.f32.mrf.mxu0
  %v3506 = vadd.f32 0.0, %v3505
  %3507 = vmatmul.f32.gmra.mxu0 %v2557
  %v3508 = vpop.f32.mrf.mxu0
  %v3509 = vadd.f32 0.0, %v3508
  %3510 = vmatmul.f32.gmra.mxu0 %v2558
  %v3511 = vpop.f32.mrf.mxu0
  %v3512 = vadd.f32 0.0, %v3511
  %3513 = vmatmul.f32.gmra.mxu0 %v2559
  %v3514 = vpop.f32.mrf.mxu0
  %v3515 = vadd.f32 0.0, %v3514
  %3516 = vmatmul.f32.gmra.mxu0 %v2560
  %v3517 = vpop.f32.mrf.mxu0
  %v3518 = vadd.f32 0.0, %v3517
  %3519 = vmatmul.f32.gmra.mxu0 %v2561
  %v3520 = vpop.f32.mrf.mxu0
  %v3521 = vadd.f32 0.0, %v3520
  %3522 = vmatmul.f32.gmra.mxu0 %v2562
  %v3523 = vpop.f32.mrf.mxu0
  %v3524 = vadd.f32 0.0, %v3523
  %3525 = vmatmul.f32.gmra.mxu0 %v2563
  %v3526 = vpop.f32.mrf.mxu0
  %v3527 = vadd.f32 0.0, %v3526
  %3528 = vmatmul.f32.gmra.mxu0 %v2564
  %v3529 = vpop.f32.mrf.mxu0
  %v3530 = vadd.f32 0.0, %v3529
  %3531 = vmatmul.f32.gmra.mxu0 %v2565
  %v3532 = vpop.f32.mrf.mxu0
  %v3533 = vadd.f32 0.0, %v3532
  %3534 = vmatmul.f32.gmra.mxu0 %v2566
  %v3535 = vpop.f32.mrf.mxu0
  %v3536 = vadd.f32 0.0, %v3535
  %3537 = vmatmul.f32.gmra.mxu0 %v2567
  %v3538 = vpop.f32.mrf.mxu0
  %v3539 = vadd.f32 0.0, %v3538
  %3540 = vmatmul.f32.gmra.mxu0 %v2568
  %v3541 = vpop.f32.mrf.mxu0
  %v3542 = vadd.f32 0.0, %v3541
  %3543 = vdwg.mxu0
  %v3544 = vld [vmem:[#allocation2] sm:$0xff]
  %v3545 = vld [vmem:[#allocation2 + $0x8] sm:$0xff]
  %v3546 = vld [vmem:[#allocation2 + $0x10] sm:$0xff]
  %v3547 = vld [vmem:[#allocation2 + $0x18] sm:$0xff]
  %v3548 = vld [vmem:[#allocation2 + $0x20] sm:$0xff]
  %v3549 = vld [vmem:[#allocation2 + $0x28] sm:$0xff]
  %v3550 = vld [vmem:[#allocation2 + $0x30] sm:$0xff]
  %v3551 = vld [vmem:[#allocation2 + $0x38] sm:$0xff]
  %v3552 = vld [vmem:[#allocation2 + $0x40] sm:$0xff]
  %v3553 = vld [vmem:[#allocation2 + $0x48] sm:$0xff]
  %v3554 = vld [vmem:[#allocation2 + $0x50] sm:$0xff]
  %v3555 = vld [vmem:[#allocation2 + $0x58] sm:$0xff]
  %v3556 = vld [vmem:[#allocation2 + $0x60] sm:$0xff]
  %v3557 = vld [vmem:[#allocation2 + $0x68] sm:$0xff]
  %v3558 = vld [vmem:[#allocation2 + $0x70] sm:$0xff]
  %v3559 = vld [vmem:[#allocation2 + $0x78] sm:$0xff]
  %v3560 = vld [vmem:[#allocation2 + $0x80] sm:$0xff]
  %v3561 = vld [vmem:[#allocation2 + $0x88] sm:$0xff]
  %v3562 = vld [vmem:[#allocation2 + $0x90] sm:$0xff]
  %v3563 = vld [vmem:[#allocation2 + $0x98] sm:$0xff]
  %v3564 = vld [vmem:[#allocation2 + $0xa0] sm:$0xff]
  %v3565 = vld [vmem:[#allocation2 + $0xa8] sm:$0xff]
  %v3566 = vld [vmem:[#allocation2 + $0xb0] sm:$0xff]
  %v3567 = vld [vmem:[#allocation2 + $0xb8] sm:$0xff]
  %v3568 = vld [vmem:[#allocation2 + $0xc0] sm:$0xff]
  %v3569 = vld [vmem:[#allocation2 + $0xc8] sm:$0xff]
  %v3570 = vadd.f32 %v3544, %v3467
  %v3571 = vadd.f32 %v3545, %v3470
  %v3572 = vadd.f32 %v3546, %v3473
  %v3573 = vadd.f32 %v3547, %v3476
  %v3574 = vadd.f32 %v3548, %v3479
  %v3575 = vadd.f32 %v3549, %v3482
  %v3576 = vadd.f32 %v3550, %v3485
  %v3577 = vadd.f32 %v3551, %v3488
  %v3578 = vadd.f32 %v3552, %v3491
  %v3579 = vadd.f32 %v3553, %v3494
  %v3580 = vadd.f32 %v3554, %v3497
  %v3581 = vadd.f32 %v3555, %v3500
  %v3582 = vadd.f32 %v3556, %v3503
  %v3583 = vadd.f32 %v3557, %v3506
  %v3584 = vadd.f32 %v3558, %v3509
  %v3585 = vadd.f32 %v3559, %v3512
  %v3586 = vadd.f32 %v3560, %v3515
  %v3587 = vadd.f32 %v3561, %v3518
  %v3588 = vadd.f32 %v3562, %v3521
  %v3589 = vadd.f32 %v3563, %v3524
  %v3590 = vadd.f32 %v3564, %v3527
  %v3591 = vadd.f32 %v3565, %v3530
  %v3592 = vadd.f32 %v3566, %v3533
  %v3593 = vadd.f32 %v3567, %v3536
  %v3594 = vadd.f32 %v3568, %v3539
  %v3595 = vadd.f32 %v3569, %v3542
  %3596 = vst [vmem:[#allocation2] sm:$0xff] %v3570
  %3597 = vst [vmem:[#allocation2 + $0x8] sm:$0xff] %v3571
  %3598 = vst [vmem:[#allocation2 + $0x10] sm:$0xff] %v3572
  %3599 = vst [vmem:[#allocation2 + $0x18] sm:$0xff] %v3573
  %3600 = vst [vmem:[#allocation2 + $0x20] sm:$0xff] %v3574
  %3601 = vst [vmem:[#allocation2 + $0x28] sm:$0xff] %v3575
  %3602 = vst [vmem:[#allocation2 + $0x30] sm:$0xff] %v3576
  %3603 = vst [vmem:[#allocation2 + $0x38] sm:$0xff] %v3577
  %3604 = vst [vmem:[#allocation2 + $0x40] sm:$0xff] %v3578
  %3605 = vst [vmem:[#allocation2 + $0x48] sm:$0xff] %v3579
  %3606 = vst [vmem:[#allocation2 + $0x50] sm:$0xff] %v3580
  %3607 = vst [vmem:[#allocation2 + $0x58] sm:$0xff] %v3581
  %3608 = vst [vmem:[#allocation2 + $0x60] sm:$0xff] %v3582
  %3609 = vst [vmem:[#allocation2 + $0x68] sm:$0xff] %v3583
  %3610 = vst [vmem:[#allocation2 + $0x70] sm:$0xff] %v3584
  %3611 = vst [vmem:[#allocation2 + $0x78] sm:$0xff] %v3585
  %3612 = vst [vmem:[#allocation2 + $0x80] sm:$0xff] %v3586
  %3613 = vst [vmem:[#allocation2 + $0x88] sm:$0xff] %v3587
  %3614 = vst [vmem:[#allocation2 + $0x90] sm:$0xff] %v3588
  %3615 = vst [vmem:[#allocation2 + $0x98] sm:$0xff] %v3589
  %3616 = vst [vmem:[#allocation2 + $0xa0] sm:$0xff] %v3590
  %3617 = vst [vmem:[#allocation2 + $0xa8] sm:$0xff] %v3591
  %3618 = vst [vmem:[#allocation2 + $0xb0] sm:$0xff] %v3592
  %3619 = vst [vmem:[#allocation2 + $0xb8] sm:$0xff] %v3593
  %3620 = vst [vmem:[#allocation2 + $0xc0] sm:$0xff] %v3594
  %3621 = vst [vmem:[#allocation2 + $0xc8] sm:$0xff] %v3595
  %v3622 = vrot.slane %v2543, 1
  %v3623 = vrot.slane %v2544, 1
  %v3624 = vrot.slane %v2545, 1
  %v3625 = vrot.slane %v2546, 1
  %v3626 = vrot.slane %v2547, 1
  %v3627 = vrot.slane %v2548, 1
  %v3628 = vrot.slane %v2549, 1
  %v3629 = vrot.slane %v2550, 1
  %v3630 = vrot.slane %v2551, 1
  %v3631 = vrot.slane %v2552, 1
  %v3632 = vrot.slane %v2553, 1
  %v3633 = vrot.slane %v2554, 1
  %v3634 = vrot.slane %v2555, 1
  %v3635 = vrot.slane %v2556, 1
  %v3636 = vrot.slane %v2557, 1
  %v3637 = vrot.slane %v2558, 1
  %v3638 = vrot.slane %v2559, 1
  %v3639 = vrot.slane %v2560, 1
  %v3640 = vrot.slane %v2561, 1
  %v3641 = vrot.slane %v2562, 1
  %v3642 = vrot.slane %v2563, 1
  %v3643 = vrot.slane %v2564, 1
  %v3644 = vrot.slane %v2565, 1
  %v3645 = vrot.slane %v2566, 1
  %v3646 = vrot.slane %v2567, 1
  %v3647 = vrot.slane %v2568, 1
  %vm3648 = vcmp.lt.s32.totalorder %v91, 7
  %v3649 = vsel %vm3648, %v3646, %v3647
  %v3650 = vsel %vm3648, %v3645, %v3646
  %v3651 = vsel %vm3648, %v3644, %v3645
  %v3652 = vsel %vm3648, %v3643, %v3644
  %v3653 = vsel %vm3648, %v3642, %v3643
  %v3654 = vsel %vm3648, %v3641, %v3642
  %v3655 = vsel %vm3648, %v3640, %v3641
  %v3656 = vsel %vm3648, %v3639, %v3640
  %v3657 = vsel %vm3648, %v3638, %v3639
  %v3658 = vsel %vm3648, %v3637, %v3638
  %v3659 = vsel %vm3648, %v3636, %v3637
  %v3660 = vsel %vm3648, %v3635, %v3636
  %v3661 = vsel %vm3648, %v3634, %v3635
  %v3662 = vsel %vm3648, %v3633, %v3634
  %v3663 = vsel %vm3648, %v3632, %v3633
  %v3664 = vsel %vm3648, %v3631, %v3632
  %v3665 = vsel %vm3648, %v3630, %v3631
  %v3666 = vsel %vm3648, %v3629, %v3630
  %v3667 = vsel %vm3648, %v3628, %v3629
  %v3668 = vsel %vm3648, %v3627, %v3628
  %v3669 = vsel %vm3648, %v3626, %v3627
  %v3670 = vsel %vm3648, %v3625, %v3626
  %v3671 = vsel %vm3648, %v3624, %v3625
  %v3672 = vsel %vm3648, %v3623, %v3624
  %v3673 = vsel %vm3648, %v3622, %v3623
  %v3674 = vsel %vm3648, %v3647, %v3622
  %s3675 = scalar_lea.vmem %s4, 640
  %v3676 = vld [vmem:[%s3675] sm:$0xff]
  %v3677 = vld [vmem:[%s3675 + $0x8] sm:$0xff]
  %v3678 = vld [vmem:[%s3675 + $0x10] sm:$0xff]
  %v3679 = vld [vmem:[%s3675 + $0x18] sm:$0xff]
  %v3680 = vld [vmem:[%s3675 + $0x20] sm:$0xff]
  %v3681 = vld [vmem:[%s3675 + $0x28] sm:$0xff]
  %v3682 = vld [vmem:[%s3675 + $0x30] sm:$0xff]
  %v3683 = vld [vmem:[%s3675 + $0x38] sm:$0xff]
  %v3684 = vld [vmem:[%s3675 + $0x40] sm:$0xff]
  %v3685 = vld [vmem:[%s3675 + $0x48] sm:$0xff]
  %v3686 = vld [vmem:[%s3675 + $0x50] sm:$0xff]
  %v3687 = vld [vmem:[%s3675 + $0x58] sm:$0xff]
  %v3688 = vld [vmem:[%s3675 + $0x60] sm:$0xff]
  %v3689 = vld [vmem:[%s3675 + $0x68] sm:$0xff]
  %v3690 = vld [vmem:[%s3675 + $0x70] sm:$0xff]
  %v3691 = vld [vmem:[%s3675 + $0x78] sm:$0xff]
  %3692 = vmatpush.msra.mxu0 %v3691
  %3693 = vmatpush.msra.mxu0 %v3690
  %3694 = vmatpush.msra.mxu0 %v3689
  %3695 = vmatpush.msra.mxu0 %v3688
  %3696 = vmatpush.msra.mxu0 %v3687
  %3697 = vmatpush.msra.mxu0 %v3686
  %3698 = vmatpush.msra.mxu0 %v3685
  %3699 = vmatpush.msra.mxu0 %v3684
  %3700 = vmatpush.msra.mxu0 %v3683
  %3701 = vmatpush.msra.mxu0 %v3682
  %3702 = vmatpush.msra.mxu0 %v3681
  %3703 = vmatpush.msra.mxu0 %v3680
  %3704 = vmatpush.msra.mxu0 %v3679
  %3705 = vmatpush.msra.mxu0 %v3678
  %3706 = vmatpush.msra.mxu0 %v3677
  %3707 = vmatpush.msra.mxu0 %v3676
  %3708 = vmatmul.f32.gmra.mxu0 %v3673
  %v3709 = vpop.f32.mrf.mxu0
  %v3710 = vadd.f32 0.0, %v3709
  %3711 = vmatmul.f32.gmra.mxu0 %v3672
  %v3712 = vpop.f32.mrf.mxu0
  %v3713 = vadd.f32 0.0, %v3712
  %3714 = vmatmul.f32.gmra.mxu0 %v3671
  %v3715 = vpop.f32.mrf.mxu0
  %v3716 = vadd.f32 0.0, %v3715
  %3717 = vmatmul.f32.gmra.mxu0 %v3670
  %v3718 = vpop.f32.mrf.mxu0
  %v3719 = vadd.f32 0.0, %v3718
  %3720 = vmatmul.f32.gmra.mxu0 %v3669
  %v3721 = vpop.f32.mrf.mxu0
  %v3722 = vadd.f32 0.0, %v3721
  %3723 = vmatmul.f32.gmra.mxu0 %v3668
  %v3724 = vpop.f32.mrf.mxu0
  %v3725 = vadd.f32 0.0, %v3724
  %3726 = vmatmul.f32.gmra.mxu0 %v3667
  %v3727 = vpop.f32.mrf.mxu0
  %v3728 = vadd.f32 0.0, %v3727
  %3729 = vmatmul.f32.gmra.mxu0 %v3666
  %v3730 = vpop.f32.mrf.mxu0
  %v3731 = vadd.f32 0.0, %v3730
  %3732 = vmatmul.f32.gmra.mxu0 %v3665
  %v3733 = vpop.f32.mrf.mxu0
  %v3734 = vadd.f32 0.0, %v3733
  %3735 = vmatmul.f32.gmra.mxu0 %v3664
  %v3736 = vpop.f32.mrf.mxu0
  %v3737 = vadd.f32 0.0, %v3736
  %3738 = vmatmul.f32.gmra.mxu0 %v3663
  %v3739 = vpop.f32.mrf.mxu0
  %v3740 = vadd.f32 0.0, %v3739
  %3741 = vmatmul.f32.gmra.mxu0 %v3662
  %v3742 = vpop.f32.mrf.mxu0
  %v3743 = vadd.f32 0.0, %v3742
  %3744 = vmatmul.f32.gmra.mxu0 %v3661
  %v3745 = vpop.f32.mrf.mxu0
  %v3746 = vadd.f32 0.0, %v3745
  %3747 = vmatmul.f32.gmra.mxu0 %v3660
  %v3748 = vpop.f32.mrf.mxu0
  %v3749 = vadd.f32 0.0, %v3748
  %3750 = vmatmul.f32.gmra.mxu0 %v3659
  %v3751 = vpop.f32.mrf.mxu0
  %v3752 = vadd.f32 0.0, %v3751
  %3753 = vmatmul.f32.gmra.mxu0 %v3658
  %v3754 = vpop.f32.mrf.mxu0
  %v3755 = vadd.f32 0.0, %v3754
  %3756 = vmatmul.f32.gmra.mxu0 %v3657
  %v3757 = vpop.f32.mrf.mxu0
  %v3758 = vadd.f32 0.0, %v3757
  %3759 = vmatmul.f32.gmra.mxu0 %v3656
  %v3760 = vpop.f32.mrf.mxu0
  %v3761 = vadd.f32 0.0, %v3760
  %3762 = vmatmul.f32.gmra.mxu0 %v3655
  %v3763 = vpop.f32.mrf.mxu0
  %v3764 = vadd.f32 0.0, %v3763
  %3765 = vmatmul.f32.gmra.mxu0 %v3654
  %v3766 = vpop.f32.mrf.mxu0
  %v3767 = vadd.f32 0.0, %v3766
  %3768 = vmatmul.f32.gmra.mxu0 %v3653
  %v3769 = vpop.f32.mrf.mxu0
  %v3770 = vadd.f32 0.0, %v3769
  %3771 = vmatmul.f32.gmra.mxu0 %v3652
  %v3772 = vpop.f32.mrf.mxu0
  %v3773 = vadd.f32 0.0, %v3772
  %3774 = vmatmul.f32.gmra.mxu0 %v3651
  %v3775 = vpop.f32.mrf.mxu0
  %v3776 = vadd.f32 0.0, %v3775
  %3777 = vmatmul.f32.gmra.mxu0 %v3650
  %v3778 = vpop.f32.mrf.mxu0
  %v3779 = vadd.f32 0.0, %v3778
  %3780 = vmatmul.f32.gmra.mxu0 %v3649
  %v3781 = vpop.f32.mrf.mxu0
  %v3782 = vadd.f32 0.0, %v3781
  %3783 = vmatmul.f32.gmra.mxu0 %v3674
  %v3784 = vpop.f32.mrf.mxu0
  %v3785 = vadd.f32 0.0, %v3784
  %3786 = vdwg.mxu0
  %v3787 = vld [vmem:[#allocation2] sm:$0xff]
  %v3788 = vld [vmem:[#allocation2 + $0x8] sm:$0xff]
  %v3789 = vld [vmem:[#allocation2 + $0x10] sm:$0xff]
  %v3790 = vld [vmem:[#allocation2 + $0x18] sm:$0xff]
  %v3791 = vld [vmem:[#allocation2 + $0x20] sm:$0xff]
  %v3792 = vld [vmem:[#allocation2 + $0x28] sm:$0xff]
  %v3793 = vld [vmem:[#allocation2 + $0x30] sm:$0xff]
  %v3794 = vld [vmem:[#allocation2 + $0x38] sm:$0xff]
  %v3795 = vld [vmem:[#allocation2 + $0x40] sm:$0xff]
  %v3796 = vld [vmem:[#allocation2 + $0x48] sm:$0xff]
  %v3797 = vld [vmem:[#allocation2 + $0x50] sm:$0xff]
  %v3798 = vld [vmem:[#allocation2 + $0x58] sm:$0xff]
  %v3799 = vld [vmem:[#allocation2 + $0x60] sm:$0xff]
  %v3800 = vld [vmem:[#allocation2 + $0x68] sm:$0xff]
  %v3801 = vld [vmem:[#allocation2 + $0x70] sm:$0xff]
  %v3802 = vld [vmem:[#allocation2 + $0x78] sm:$0xff]
  %v3803 = vld [vmem:[#allocation2 + $0x80] sm:$0xff]
  %v3804 = vld [vmem:[#allocation2 + $0x88] sm:$0xff]
  %v3805 = vld [vmem:[#allocation2 + $0x90] sm:$0xff]
  %v3806 = vld [vmem:[#allocation2 + $0x98] sm:$0xff]
  %v3807 = vld [vmem:[#allocation2 + $0xa0] sm:$0xff]
  %v3808 = vld [vmem:[#allocation2 + $0xa8] sm:$0xff]
  %v3809 = vld [vmem:[#allocation2 + $0xb0] sm:$0xff]
  %v3810 = vld [vmem:[#allocation2 + $0xb8] sm:$0xff]
  %v3811 = vld [vmem:[#allocation2 + $0xc0] sm:$0xff]
  %v3812 = vld [vmem:[#allocation2 + $0xc8] sm:$0xff]
  %v3813 = vadd.f32 %v3787, %v3710
  %v3814 = vadd.f32 %v3788, %v3713
  %v3815 = vadd.f32 %v3789, %v3716
  %v3816 = vadd.f32 %v3790, %v3719
  %v3817 = vadd.f32 %v3791, %v3722
  %v3818 = vadd.f32 %v3792, %v3725
  %v3819 = vadd.f32 %v3793, %v3728
  %v3820 = vadd.f32 %v3794, %v3731
  %v3821 = vadd.f32 %v3795, %v3734
  %v3822 = vadd.f32 %v3796, %v3737
  %v3823 = vadd.f32 %v3797, %v3740
  %v3824 = vadd.f32 %v3798, %v3743
  %v3825 = vadd.f32 %v3799, %v3746
  %v3826 = vadd.f32 %v3800, %v3749
  %v3827 = vadd.f32 %v3801, %v3752
  %v3828 = vadd.f32 %v3802, %v3755
  %v3829 = vadd.f32 %v3803, %v3758
  %v3830 = vadd.f32 %v3804, %v3761
  %v3831 = vadd.f32 %v3805, %v3764
  %v3832 = vadd.f32 %v3806, %v3767
  %v3833 = vadd.f32 %v3807, %v3770
  %v3834 = vadd.f32 %v3808, %v3773
  %v3835 = vadd.f32 %v3809, %v3776
  %v3836 = vadd.f32 %v3810, %v3779
  %v3837 = vadd.f32 %v3811, %v3782
  %v3838 = vadd.f32 %v3812, %v3785
  %3839 = vst [vmem:[#allocation2] sm:$0xff] %v3813
  %3840 = vst [vmem:[#allocation2 + $0x8] sm:$0xff] %v3814
  %3841 = vst [vmem:[#allocation2 + $0x10] sm:$0xff] %v3815
  %3842 = vst [vmem:[#allocation2 + $0x18] sm:$0xff] %v3816
  %3843 = vst [vmem:[#allocation2 + $0x20] sm:$0xff] %v3817
  %3844 = vst [vmem:[#allocation2 + $0x28] sm:$0xff] %v3818
  %3845 = vst [vmem:[#allocation2 + $0x30] sm:$0xff] %v3819
  %3846 = vst [vmem:[#allocation2 + $0x38] sm:$0xff] %v3820
  %3847 = vst [vmem:[#allocation2 + $0x40] sm:$0xff] %v3821
  %3848 = vst [vmem:[#allocation2 + $0x48] sm:$0xff] %v3822
  %3849 = vst [vmem:[#allocation2 + $0x50] sm:$0xff] %v3823
  %3850 = vst [vmem:[#allocation2 + $0x58] sm:$0xff] %v3824
  %3851 = vst [vmem:[#allocation2 + $0x60] sm:$0xff] %v3825
  %3852 = vst [vmem:[#allocation2 + $0x68] sm:$0xff] %v3826
  %3853 = vst [vmem:[#allocation2 + $0x70] sm:$0xff] %v3827
  %3854 = vst [vmem:[#allocation2 + $0x78] sm:$0xff] %v3828
  %3855 = vst [vmem:[#allocation2 + $0x80] sm:$0xff] %v3829
  %3856 = vst [vmem:[#allocation2 + $0x88] sm:$0xff] %v3830
  %3857 = vst [vmem:[#allocation2 + $0x90] sm:$0xff] %v3831
  %3858 = vst [vmem:[#allocation2 + $0x98] sm:$0xff] %v3832
  %3859 = vst [vmem:[#allocation2 + $0xa0] sm:$0xff] %v3833
  %3860 = vst [vmem:[#allocation2 + $0xa8] sm:$0xff] %v3834
  %3861 = vst [vmem:[#allocation2 + $0xb0] sm:$0xff] %v3835
  %3862 = vst [vmem:[#allocation2 + $0xb8] sm:$0xff] %v3836
  %3863 = vst [vmem:[#allocation2 + $0xc0] sm:$0xff] %v3837
  %3864 = vst [vmem:[#allocation2 + $0xc8] sm:$0xff] %v3838
  %s3865 = scalar_lea.vmem %s4, 768
  %v3866 = vld [vmem:[%s3865] sm:$0xff]
  %v3867 = vld [vmem:[%s3865 + $0x8] sm:$0xff]
  %v3868 = vld [vmem:[%s3865 + $0x10] sm:$0xff]
  %v3869 = vld [vmem:[%s3865 + $0x18] sm:$0xff]
  %v3870 = vld [vmem:[%s3865 + $0x20] sm:$0xff]
  %v3871 = vld [vmem:[%s3865 + $0x28] sm:$0xff]
  %v3872 = vld [vmem:[%s3865 + $0x30] sm:$0xff]
  %v3873 = vld [vmem:[%s3865 + $0x38] sm:$0xff]
  %v3874 = vld [vmem:[%s3865 + $0x40] sm:$0xff]
  %v3875 = vld [vmem:[%s3865 + $0x48] sm:$0xff]
  %v3876 = vld [vmem:[%s3865 + $0x50] sm:$0xff]
  %v3877 = vld [vmem:[%s3865 + $0x58] sm:$0xff]
  %v3878 = vld [vmem:[%s3865 + $0x60] sm:$0xff]
  %v3879 = vld [vmem:[%s3865 + $0x68] sm:$0xff]
  %v3880 = vld [vmem:[%s3865 + $0x70] sm:$0xff]
  %v3881 = vld [vmem:[%s3865 + $0x78] sm:$0xff]
  %3882 = vmatpush.msra.mxu0 %v3881
  %3883 = vmatpush.msra.mxu0 %v3880
  %3884 = vmatpush.msra.mxu0 %v3879
  %3885 = vmatpush.msra.mxu0 %v3878
  %3886 = vmatpush.msra.mxu0 %v3877
  %3887 = vmatpush.msra.mxu0 %v3876
  %3888 = vmatpush.msra.mxu0 %v3875
  %3889 = vmatpush.msra.mxu0 %v3874
  %3890 = vmatpush.msra.mxu0 %v3873
  %3891 = vmatpush.msra.mxu0 %v3872
  %3892 = vmatpush.msra.mxu0 %v3871
  %3893 = vmatpush.msra.mxu0 %v3870
  %3894 = vmatpush.msra.mxu0 %v3869
  %3895 = vmatpush.msra.mxu0 %v3868
  %3896 = vmatpush.msra.mxu0 %v3867
  %3897 = vmatpush.msra.mxu0 %v3866
  %3898 = vmatmul.f32.gmra.mxu0 %v3672
  %v3899 = vpop.f32.mrf.mxu0
  %v3900 = vadd.f32 0.0, %v3899
  %3901 = vmatmul.f32.gmra.mxu0 %v3671
  %v3902 = vpop.f32.mrf.mxu0
  %v3903 = vadd.f32 0.0, %v3902
  %3904 = vmatmul.f32.gmra.mxu0 %v3670
  %v3905 = vpop.f32.mrf.mxu0
  %v3906 = vadd.f32 0.0, %v3905
  %3907 = vmatmul.f32.gmra.mxu0 %v3669
  %v3908 = vpop.f32.mrf.mxu0
  %v3909 = vadd.f32 0.0, %v3908
  %3910 = vmatmul.f32.gmra.mxu0 %v3668
  %v3911 = vpop.f32.mrf.mxu0
  %v3912 = vadd.f32 0.0, %v3911
  %3913 = vmatmul.f32.gmra.mxu0 %v3667
  %v3914 = vpop.f32.mrf.mxu0
  %v3915 = vadd.f32 0.0, %v3914
  %3916 = vmatmul.f32.gmra.mxu0 %v3666
  %v3917 = vpop.f32.mrf.mxu0
  %v3918 = vadd.f32 0.0, %v3917
  %3919 = vmatmul.f32.gmra.mxu0 %v3665
  %v3920 = vpop.f32.mrf.mxu0
  %v3921 = vadd.f32 0.0, %v3920
  %3922 = vmatmul.f32.gmra.mxu0 %v3664
  %v3923 = vpop.f32.mrf.mxu0
  %v3924 = vadd.f32 0.0, %v3923
  %3925 = vmatmul.f32.gmra.mxu0 %v3663
  %v3926 = vpop.f32.mrf.mxu0
  %v3927 = vadd.f32 0.0, %v3926
  %3928 = vmatmul.f32.gmra.mxu0 %v3662
  %v3929 = vpop.f32.mrf.mxu0
  %v3930 = vadd.f32 0.0, %v3929
  %3931 = vmatmul.f32.gmra.mxu0 %v3661
  %v3932 = vpop.f32.mrf.mxu0
  %v3933 = vadd.f32 0.0, %v3932
  %3934 = vmatmul.f32.gmra.mxu0 %v3660
  %v3935 = vpop.f32.mrf.mxu0
  %v3936 = vadd.f32 0.0, %v3935
  %3937 = vmatmul.f32.gmra.mxu0 %v3659
  %v3938 = vpop.f32.mrf.mxu0
  %v3939 = vadd.f32 0.0, %v3938
  %3940 = vmatmul.f32.gmra.mxu0 %v3658
  %v3941 = vpop.f32.mrf.mxu0
  %v3942 = vadd.f32 0.0, %v3941
  %3943 = vmatmul.f32.gmra.mxu0 %v3657
  %v3944 = vpop.f32.mrf.mxu0
  %v3945 = vadd.f32 0.0, %v3944
  %3946 = vmatmul.f32.gmra.mxu0 %v3656
  %v3947 = vpop.f32.mrf.mxu0
  %v3948 = vadd.f32 0.0, %v3947
  %3949 = vmatmul.f32.gmra.mxu0 %v3655
  %v3950 = vpop.f32.mrf.mxu0
  %v3951 = vadd.f32 0.0, %v3950
  %3952 = vmatmul.f32.gmra.mxu0 %v3654
  %v3953 = vpop.f32.mrf.mxu0
  %v3954 = vadd.f32 0.0, %v3953
  %3955 = vmatmul.f32.gmra.mxu0 %v3653
  %v3956 = vpop.f32.mrf.mxu0
  %v3957 = vadd.f32 0.0, %v3956
  %3958 = vmatmul.f32.gmra.mxu0 %v3652
  %v3959 = vpop.f32.mrf.mxu0
  %v3960 = vadd.f32 0.0, %v3959
  %3961 = vmatmul.f32.gmra.mxu0 %v3651
  %v3962 = vpop.f32.mrf.mxu0
  %v3963 = vadd.f32 0.0, %v3962
  %3964 = vmatmul.f32.gmra.mxu0 %v3650
  %v3965 = vpop.f32.mrf.mxu0
  %v3966 = vadd.f32 0.0, %v3965
  %3967 = vmatmul.f32.gmra.mxu0 %v3649
  %v3968 = vpop.f32.mrf.mxu0
  %v3969 = vadd.f32 0.0, %v3968
  %3970 = vmatmul.f32.gmra.mxu0 %v3674
  %v3971 = vpop.f32.mrf.mxu0
  %v3972 = vadd.f32 0.0, %v3971
  %3973 = vmatmul.f32.gmra.mxu0 %v3673
  %v3974 = vpop.f32.mrf.mxu0
  %v3975 = vadd.f32 0.0, %v3974
  %3976 = vdwg.mxu0
  %v3977 = vld [vmem:[#allocation2] sm:$0xff]
  %v3978 = vld [vmem:[#allocation2 + $0x8] sm:$0xff]
  %v3979 = vld [vmem:[#allocation2 + $0x10] sm:$0xff]
  %v3980 = vld [vmem:[#allocation2 + $0x18] sm:$0xff]
  %v3981 = vld [vmem:[#allocation2 + $0x20] sm:$0xff]
  %v3982 = vld [vmem:[#allocation2 + $0x28] sm:$0xff]
  %v3983 = vld [vmem:[#allocation2 + $0x30] sm:$0xff]
  %v3984 = vld [vmem:[#allocation2 + $0x38] sm:$0xff]
  %v3985 = vld [vmem:[#allocation2 + $0x40] sm:$0xff]
  %v3986 = vld [vmem:[#allocation2 + $0x48] sm:$0xff]
  %v3987 = vld [vmem:[#allocation2 + $0x50] sm:$0xff]
  %v3988 = vld [vmem:[#allocation2 + $0x58] sm:$0xff]
  %v3989 = vld [vmem:[#allocation2 + $0x60] sm:$0xff]
  %v3990 = vld [vmem:[#allocation2 + $0x68] sm:$0xff]
  %v3991 = vld [vmem:[#allocation2 + $0x70] sm:$0xff]
  %v3992 = vld [vmem:[#allocation2 + $0x78] sm:$0xff]
  %v3993 = vld [vmem:[#allocation2 + $0x80] sm:$0xff]
  %v3994 = vld [vmem:[#allocation2 + $0x88] sm:$0xff]
  %v3995 = vld [vmem:[#allocation2 + $0x90] sm:$0xff]
  %v3996 = vld [vmem:[#allocation2 + $0x98] sm:$0xff]
  %v3997 = vld [vmem:[#allocation2 + $0xa0] sm:$0xff]
  %v3998 = vld [vmem:[#allocation2 + $0xa8] sm:$0xff]
  %v3999 = vld [vmem:[#allocation2 + $0xb0] sm:$0xff]
  %v4000 = vld [vmem:[#allocation2 + $0xb8] sm:$0xff]
  %v4001 = vld [vmem:[#allocation2 + $0xc0] sm:$0xff]
  %v4002 = vld [vmem:[#allocation2 + $0xc8] sm:$0xff]
  %v4003 = vadd.f32 %v3977, %v3900
  %v4004 = vadd.f32 %v3978, %v3903
  %v4005 = vadd.f32 %v3979, %v3906
  %v4006 = vadd.f32 %v3980, %v3909
  %v4007 = vadd.f32 %v3981, %v3912
  %v4008 = vadd.f32 %v3982, %v3915
  %v4009 = vadd.f32 %v3983, %v3918
  %v4010 = vadd.f32 %v3984, %v3921
  %v4011 = vadd.f32 %v3985, %v3924
  %v4012 = vadd.f32 %v3986, %v3927
  %v4013 = vadd.f32 %v3987, %v3930
  %v4014 = vadd.f32 %v3988, %v3933
  %v4015 = vadd.f32 %v3989, %v3936
  %v4016 = vadd.f32 %v3990, %v3939
  %v4017 = vadd.f32 %v3991, %v3942
  %v4018 = vadd.f32 %v3992, %v3945
  %v4019 = vadd.f32 %v3993, %v3948
  %v4020 = vadd.f32 %v3994, %v3951
  %v4021 = vadd.f32 %v3995, %v3954
  %v4022 = vadd.f32 %v3996, %v3957
  %v4023 = vadd.f32 %v3997, %v3960
  %v4024 = vadd.f32 %v3998, %v3963
  %v4025 = vadd.f32 %v3999, %v3966
  %v4026 = vadd.f32 %v4000, %v3969
  %v4027 = vadd.f32 %v4001, %v3972
  %v4028 = vadd.f32 %v4002, %v3975
  %4029 = vst [vmem:[#allocation2] sm:$0xff] %v4003
  %4030 = vst [vmem:[#allocation2 + $0x8] sm:$0xff] %v4004
  %4031 = vst [vmem:[#allocation2 + $0x10] sm:$0xff] %v4005
  %4032 = vst [vmem:[#allocation2 + $0x18] sm:$0xff] %v4006
  %4033 = vst [vmem:[#allocation2 + $0x20] sm:$0xff] %v4007
  %4034 = vst [vmem:[#allocation2 + $0x28] sm:$0xff] %v4008
  %4035 = vst [vmem:[#allocation2 + $0x30] sm:$0xff] %v4009
  %4036 = vst [vmem:[#allocation2 + $0x38] sm:$0xff] %v4010
  %4037 = vst [vmem:[#allocation2 + $0x40] sm:$0xff] %v4011
  %4038 = vst [vmem:[#allocation2 + $0x48] sm:$0xff] %v4012
  %4039 = vst [vmem:[#allocation2 + $0x50] sm:$0xff] %v4013
  %4040 = vst [vmem:[#allocation2 + $0x58] sm:$0xff] %v4014
  %4041 = vst [vmem:[#allocation2 + $0x60] sm:$0xff] %v4015
  %4042 = vst [vmem:[#allocation2 + $0x68] sm:$0xff] %v4016
  %4043 = vst [vmem:[#allocation2 + $0x70] sm:$0xff] %v4017
  %4044 = vst [vmem:[#allocation2 + $0x78] sm:$0xff] %v4018
  %4045 = vst [vmem:[#allocation2 + $0x80] sm:$0xff] %v4019
  %4046 = vst [vmem:[#allocation2 + $0x88] sm:$0xff] %v4020
  %4047 = vst [vmem:[#allocation2 + $0x90] sm:$0xff] %v4021
  %4048 = vst [vmem:[#allocation2 + $0x98] sm:$0xff] %v4022
  %4049 = vst [vmem:[#allocation2 + $0xa0] sm:$0xff] %v4023
  %4050 = vst [vmem:[#allocation2 + $0xa8] sm:$0xff] %v4024
  %4051 = vst [vmem:[#allocation2 + $0xb0] sm:$0xff] %v4025
  %4052 = vst [vmem:[#allocation2 + $0xb8] sm:$0xff] %v4026
  %4053 = vst [vmem:[#allocation2 + $0xc0] sm:$0xff] %v4027
  %4054 = vst [vmem:[#allocation2 + $0xc8] sm:$0xff] %v4028
  %v4055 = vrot.slane %v2543, 2
  %v4056 = vrot.slane %v2544, 2
  %v4057 = vrot.slane %v2545, 2
  %v4058 = vrot.slane %v2546, 2
  %v4059 = vrot.slane %v2547, 2
  %v4060 = vrot.slane %v2548, 2
  %v4061 = vrot.slane %v2549, 2
  %v4062 = vrot.slane %v2550, 2
  %v4063 = vrot.slane %v2551, 2
  %v4064 = vrot.slane %v2552, 2
  %v4065 = vrot.slane %v2553, 2
  %v4066 = vrot.slane %v2554, 2
  %v4067 = vrot.slane %v2555, 2
  %v4068 = vrot.slane %v2556, 2
  %v4069 = vrot.slane %v2557, 2
  %v4070 = vrot.slane %v2558, 2
  %v4071 = vrot.slane %v2559, 2
  %v4072 = vrot.slane %v2560, 2
  %v4073 = vrot.slane %v2561, 2
  %v4074 = vrot.slane %v2562, 2
  %v4075 = vrot.slane %v2563, 2
  %v4076 = vrot.slane %v2564, 2
  %v4077 = vrot.slane %v2565, 2
  %v4078 = vrot.slane %v2566, 2
  %v4079 = vrot.slane %v2567, 2
  %v4080 = vrot.slane %v2568, 2
  %vm4081 = vcmp.lt.s32.totalorder %v91, 6
  %v4082 = vsel %vm4081, %v4079, %v4080
  %v4083 = vsel %vm4081, %v4078, %v4079
  %v4084 = vsel %vm4081, %v4077, %v4078
  %v4085 = vsel %vm4081, %v4076, %v4077
  %v4086 = vsel %vm4081, %v4075, %v4076
  %v4087 = vsel %vm4081, %v4074, %v4075
  %v4088 = vsel %vm4081, %v4073, %v4074
  %v4089 = vsel %vm4081, %v4072, %v4073
  %v4090 = vsel %vm4081, %v4071, %v4072
  %v4091 = vsel %vm4081, %v4070, %v4071
  %v4092 = vsel %vm4081, %v4069, %v4070
  %v4093 = vsel %vm4081, %v4068, %v4069
  %v4094 = vsel %vm4081, %v4067, %v4068
  %v4095 = vsel %vm4081, %v4066, %v4067
  %v4096 = vsel %vm4081, %v4065, %v4066
  %v4097 = vsel %vm4081, %v4064, %v4065
  %v4098 = vsel %vm4081, %v4063, %v4064
  %v4099 = vsel %vm4081, %v4062, %v4063
  %v4100 = vsel %vm4081, %v4061, %v4062
  %v4101 = vsel %vm4081, %v4060, %v4061
  %v4102 = vsel %vm4081, %v4059, %v4060
  %v4103 = vsel %vm4081, %v4058, %v4059
  %v4104 = vsel %vm4081, %v4057, %v4058
  %v4105 = vsel %vm4081, %v4056, %v4057
  %v4106 = vsel %vm4081, %v4055, %v4056
  %v4107 = vsel %vm4081, %v4080, %v4055
  %s4108 = scalar_lea.vmem %s4, 896
  %v4109 = vld [vmem:[%s4108] sm:$0xff]
  %v4110 = vld [vmem:[%s4108 + $0x8] sm:$0xff]
  %v4111 = vld [vmem:[%s4108 + $0x10] sm:$0xff]
  %v4112 = vld [vmem:[%s4108 + $0x18] sm:$0xff]
  %v4113 = vld [vmem:[%s4108 + $0x20] sm:$0xff]
  %v4114 = vld [vmem:[%s4108 + $0x28] sm:$0xff]
  %v4115 = vld [vmem:[%s4108 + $0x30] sm:$0xff]
  %v4116 = vld [vmem:[%s4108 + $0x38] sm:$0xff]
  %v4117 = vld [vmem:[%s4108 + $0x40] sm:$0xff]
  %v4118 = vld [vmem:[%s4108 + $0x48] sm:$0xff]
  %v4119 = vld [vmem:[%s4108 + $0x50] sm:$0xff]
  %v4120 = vld [vmem:[%s4108 + $0x58] sm:$0xff]
  %v4121 = vld [vmem:[%s4108 + $0x60] sm:$0xff]
  %v4122 = vld [vmem:[%s4108 + $0x68] sm:$0xff]
  %v4123 = vld [vmem:[%s4108 + $0x70] sm:$0xff]
  %v4124 = vld [vmem:[%s4108 + $0x78] sm:$0xff]
  %4125 = vmatpush.msra.mxu0 %v4124
  %4126 = vmatpush.msra.mxu0 %v4123
  %4127 = vmatpush.msra.mxu0 %v4122
  %4128 = vmatpush.msra.mxu0 %v4121
  %4129 = vmatpush.msra.mxu0 %v4120
  %4130 = vmatpush.msra.mxu0 %v4119
  %4131 = vmatpush.msra.mxu0 %v4118
  %4132 = vmatpush.msra.mxu0 %v4117
  %4133 = vmatpush.msra.mxu0 %v4116
  %4134 = vmatpush.msra.mxu0 %v4115
  %4135 = vmatpush.msra.mxu0 %v4114
  %4136 = vmatpush.msra.mxu0 %v4113
  %4137 = vmatpush.msra.mxu0 %v4112
  %4138 = vmatpush.msra.mxu0 %v4111
  %4139 = vmatpush.msra.mxu0 %v4110
  %4140 = vmatpush.msra.mxu0 %v4109
  %4141 = vmatmul.f32.gmra.mxu0 %v4105
  %v4142 = vpop.f32.mrf.mxu0
  %v4143 = vadd.f32 0.0, %v4142
  %4144 = vmatmul.f32.gmra.mxu0 %v4104
  %v4145 = vpop.f32.mrf.mxu0
  %v4146 = vadd.f32 0.0, %v4145
  %4147 = vmatmul.f32.gmra.mxu0 %v4103
  %v4148 = vpop.f32.mrf.mxu0
  %v4149 = vadd.f32 0.0, %v4148
  %4150 = vmatmul.f32.gmra.mxu0 %v4102
  %v4151 = vpop.f32.mrf.mxu0
  %v4152 = vadd.f32 0.0, %v4151
  %4153 = vmatmul.f32.gmra.mxu0 %v4101
  %v4154 = vpop.f32.mrf.mxu0
  %v4155 = vadd.f32 0.0, %v4154
  %4156 = vmatmul.f32.gmra.mxu0 %v4100
  %v4157 = vpop.f32.mrf.mxu0
  %v4158 = vadd.f32 0.0, %v4157
  %4159 = vmatmul.f32.gmra.mxu0 %v4099
  %v4160 = vpop.f32.mrf.mxu0
  %v4161 = vadd.f32 0.0, %v4160
  %4162 = vmatmul.f32.gmra.mxu0 %v4098
  %v4163 = vpop.f32.mrf.mxu0
  %v4164 = vadd.f32 0.0, %v4163
  %4165 = vmatmul.f32.gmra.mxu0 %v4097
  %v4166 = vpop.f32.mrf.mxu0
  %v4167 = vadd.f32 0.0, %v4166
  %4168 = vmatmul.f32.gmra.mxu0 %v4096
  %v4169 = vpop.f32.mrf.mxu0
  %v4170 = vadd.f32 0.0, %v4169
  %4171 = vmatmul.f32.gmra.mxu0 %v4095
  %v4172 = vpop.f32.mrf.mxu0
  %v4173 = vadd.f32 0.0, %v4172
  %4174 = vmatmul.f32.gmra.mxu0 %v4094
  %v4175 = vpop.f32.mrf.mxu0
  %v4176 = vadd.f32 0.0, %v4175
  %4177 = vmatmul.f32.gmra.mxu0 %v4093
  %v4178 = vpop.f32.mrf.mxu0
  %v4179 = vadd.f32 0.0, %v4178
  %4180 = vmatmul.f32.gmra.mxu0 %v4092
  %v4181 = vpop.f32.mrf.mxu0
  %v4182 = vadd.f32 0.0, %v4181
  %4183 = vmatmul.f32.gmra.mxu0 %v4091
  %v4184 = vpop.f32.mrf.mxu0
  %v4185 = vadd.f32 0.0, %v4184
  %4186 = vmatmul.f32.gmra.mxu0 %v4090
  %v4187 = vpop.f32.mrf.mxu0
  %v4188 = vadd.f32 0.0, %v4187
  %4189 = vmatmul.f32.gmra.mxu0 %v4089
  %v4190 = vpop.f32.mrf.mxu0
  %v4191 = vadd.f32 0.0, %v4190
  %4192 = vmatmul.f32.gmra.mxu0 %v4088
  %v4193 = vpop.f32.mrf.mxu0
  %v4194 = vadd.f32 0.0, %v4193
  %4195 = vmatmul.f32.gmra.mxu0 %v4087
  %v4196 = vpop.f32.mrf.mxu0
  %v4197 = vadd.f32 0.0, %v4196
  %4198 = vmatmul.f32.gmra.mxu0 %v4086
  %v4199 = vpop.f32.mrf.mxu0
  %v4200 = vadd.f32 0.0, %v4199
  %4201 = vmatmul.f32.gmra.mxu0 %v4085
  %v4202 = vpop.f32.mrf.mxu0
  %v4203 = vadd.f32 0.0, %v4202
  %4204 = vmatmul.f32.gmra.mxu0 %v4084
  %v4205 = vpop.f32.mrf.mxu0
  %v4206 = vadd.f32 0.0, %v4205
  %4207 = vmatmul.f32.gmra.mxu0 %v4083
  %v4208 = vpop.f32.mrf.mxu0
  %v4209 = vadd.f32 0.0, %v4208
  %4210 = vmatmul.f32.gmra.mxu0 %v4082
  %v4211 = vpop.f32.mrf.mxu0
  %v4212 = vadd.f32 0.0, %v4211
  %4213 = vmatmul.f32.gmra.mxu0 %v4107
  %v4214 = vpop.f32.mrf.mxu0
  %v4215 = vadd.f32 0.0, %v4214
  %4216 = vmatmul.f32.gmra.mxu0 %v4106
  %v4217 = vpop.f32.mrf.mxu0
  %v4218 = vadd.f32 0.0, %v4217
  %4219 = vdwg.mxu0
  %v4220 = vld [vmem:[#allocation2] sm:$0xff]
  %v4221 = vld [vmem:[#allocation2 + $0x8] sm:$0xff]
  %v4222 = vld [vmem:[#allocation2 + $0x10] sm:$0xff]
  %v4223 = vld [vmem:[#allocation2 + $0x18] sm:$0xff]
  %v4224 = vld [vmem:[#allocation2 + $0x20] sm:$0xff]
  %v4225 = vld [vmem:[#allocation2 + $0x28] sm:$0xff]
  %v4226 = vld [vmem:[#allocation2 + $0x30] sm:$0xff]
  %v4227 = vld [vmem:[#allocation2 + $0x38] sm:$0xff]
  %v4228 = vld [vmem:[#allocation2 + $0x40] sm:$0xff]
  %v4229 = vld [vmem:[#allocation2 + $0x48] sm:$0xff]
  %v4230 = vld [vmem:[#allocation2 + $0x50] sm:$0xff]
  %v4231 = vld [vmem:[#allocation2 + $0x58] sm:$0xff]
  %v4232 = vld [vmem:[#allocation2 + $0x60] sm:$0xff]
  %v4233 = vld [vmem:[#allocation2 + $0x68] sm:$0xff]
  %v4234 = vld [vmem:[#allocation2 + $0x70] sm:$0xff]
  %v4235 = vld [vmem:[#allocation2 + $0x78] sm:$0xff]
  %v4236 = vld [vmem:[#allocation2 + $0x80] sm:$0xff]
  %v4237 = vld [vmem:[#allocation2 + $0x88] sm:$0xff]
  %v4238 = vld [vmem:[#allocation2 + $0x90] sm:$0xff]
  %v4239 = vld [vmem:[#allocation2 + $0x98] sm:$0xff]
  %v4240 = vld [vmem:[#allocation2 + $0xa0] sm:$0xff]
  %v4241 = vld [vmem:[#allocation2 + $0xa8] sm:$0xff]
  %v4242 = vld [vmem:[#allocation2 + $0xb0] sm:$0xff]
  %v4243 = vld [vmem:[#allocation2 + $0xb8] sm:$0xff]
  %v4244 = vld [vmem:[#allocation2 + $0xc0] sm:$0xff]
  %v4245 = vld [vmem:[#allocation2 + $0xc8] sm:$0xff]
  %v4246 = vadd.f32 %v4220, %v4143
  %v4247 = vadd.f32 %v4221, %v4146
  %v4248 = vadd.f32 %v4222, %v4149
  %v4249 = vadd.f32 %v4223, %v4152
  %v4250 = vadd.f32 %v4224, %v4155
  %v4251 = vadd.f32 %v4225, %v4158
  %v4252 = vadd.f32 %v4226, %v4161
  %v4253 = vadd.f32 %v4227, %v4164
  %v4254 = vadd.f32 %v4228, %v4167
  %v4255 = vadd.f32 %v4229, %v4170
  %v4256 = vadd.f32 %v4230, %v4173
  %v4257 = vadd.f32 %v4231, %v4176
  %v4258 = vadd.f32 %v4232, %v4179
  %v4259 = vadd.f32 %v4233, %v4182
  %v4260 = vadd.f32 %v4234, %v4185
  %v4261 = vadd.f32 %v4235, %v4188
  %v4262 = vadd.f32 %v4236, %v4191
  %v4263 = vadd.f32 %v4237, %v4194
  %v4264 = vadd.f32 %v4238, %v4197
  %v4265 = vadd.f32 %v4239, %v4200
  %v4266 = vadd.f32 %v4240, %v4203
  %v4267 = vadd.f32 %v4241, %v4206
  %v4268 = vadd.f32 %v4242, %v4209
  %v4269 = vadd.f32 %v4243, %v4212
  %v4270 = vadd.f32 %v4244, %v4215
  %v4271 = vadd.f32 %v4245, %v4218
  %4272 = vst [vmem:[#allocation2] sm:$0xff] %v4246
  %4273 = vst [vmem:[#allocation2 + $0x8] sm:$0xff] %v4247
  %4274 = vst [vmem:[#allocation2 + $0x10] sm:$0xff] %v4248
  %4275 = vst [vmem:[#allocation2 + $0x18] sm:$0xff] %v4249
  %4276 = vst [vmem:[#allocation2 + $0x20] sm:$0xff] %v4250
  %4277 = vst [vmem:[#allocation2 + $0x28] sm:$0xff] %v4251
  %4278 = vst [vmem:[#allocation2 + $0x30] sm:$0xff] %v4252
  %4279 = vst [vmem:[#allocation2 + $0x38] sm:$0xff] %v4253
  %4280 = vst [vmem:[#allocation2 + $0x40] sm:$0xff] %v4254
  %4281 = vst [vmem:[#allocation2 + $0x48] sm:$0xff] %v4255
  %4282 = vst [vmem:[#allocation2 + $0x50] sm:$0xff] %v4256
  %4283 = vst [vmem:[#allocation2 + $0x58] sm:$0xff] %v4257
  %4284 = vst [vmem:[#allocation2 + $0x60] sm:$0xff] %v4258
  %4285 = vst [vmem:[#allocation2 + $0x68] sm:$0xff] %v4259
  %4286 = vst [vmem:[#allocation2 + $0x70] sm:$0xff] %v4260
  %4287 = vst [vmem:[#allocation2 + $0x78] sm:$0xff] %v4261
  %4288 = vst [vmem:[#allocation2 + $0x80] sm:$0xff] %v4262
  %4289 = vst [vmem:[#allocation2 + $0x88] sm:$0xff] %v4263
  %4290 = vst [vmem:[#allocation2 + $0x90] sm:$0xff] %v4264
  %4291 = vst [vmem:[#allocation2 + $0x98] sm:$0xff] %v4265
  %4292 = vst [vmem:[#allocation2 + $0xa0] sm:$0xff] %v4266
  %4293 = vst [vmem:[#allocation2 + $0xa8] sm:$0xff] %v4267
  %4294 = vst [vmem:[#allocation2 + $0xb0] sm:$0xff] %v4268
  %4295 = vst [vmem:[#allocation2 + $0xb8] sm:$0xff] %v4269
  %4296 = vst [vmem:[#allocation2 + $0xc0] sm:$0xff] %v4270
  %4297 = vst [vmem:[#allocation2 + $0xc8] sm:$0xff] %v4271
  %v4298 = vrot.slane %v2543, 3
  %v4299 = vrot.slane %v2544, 3
  %v4300 = vrot.slane %v2545, 3
  %v4301 = vrot.slane %v2546, 3
  %v4302 = vrot.slane %v2547, 3
  %v4303 = vrot.slane %v2548, 3
  %v4304 = vrot.slane %v2549, 3
  %v4305 = vrot.slane %v2550, 3
  %v4306 = vrot.slane %v2551, 3
  %v4307 = vrot.slane %v2552, 3
  %v4308 = vrot.slane %v2553, 3
  %v4309 = vrot.slane %v2554, 3
  %v4310 = vrot.slane %v2555, 3
  %v4311 = vrot.slane %v2556, 3
  %v4312 = vrot.slane %v2557, 3
  %v4313 = vrot.slane %v2558, 3
  %v4314 = vrot.slane %v2559, 3
  %v4315 = vrot.slane %v2560, 3
  %v4316 = vrot.slane %v2561, 3
  %v4317 = vrot.slane %v2562, 3
  %v4318 = vrot.slane %v2563, 3
  %v4319 = vrot.slane %v2564, 3
  %v4320 = vrot.slane %v2565, 3
  %v4321 = vrot.slane %v2566, 3
  %v4322 = vrot.slane %v2567, 3
  %v4323 = vrot.slane %v2568, 3
  %vm4324 = vcmp.lt.s32.totalorder %v91, 5
  %v4325 = vsel %vm4324, %v4322, %v4323
  %v4326 = vsel %vm4324, %v4321, %v4322
  %v4327 = vsel %vm4324, %v4320, %v4321
  %v4328 = vsel %vm4324, %v4319, %v4320
  %v4329 = vsel %vm4324, %v4318, %v4319
  %v4330 = vsel %vm4324, %v4317, %v4318
  %v4331 = vsel %vm4324, %v4316, %v4317
  %v4332 = vsel %vm4324, %v4315, %v4316
  %v4333 = vsel %vm4324, %v4314, %v4315
  %v4334 = vsel %vm4324, %v4313, %v4314
  %v4335 = vsel %vm4324, %v4312, %v4313
  %v4336 = vsel %vm4324, %v4311, %v4312
  %v4337 = vsel %vm4324, %v4310, %v4311
  %v4338 = vsel %vm4324, %v4309, %v4310
  %v4339 = vsel %vm4324, %v4308, %v4309
  %v4340 = vsel %vm4324, %v4307, %v4308
  %v4341 = vsel %vm4324, %v4306, %v4307
  %v4342 = vsel %vm4324, %v4305, %v4306
  %v4343 = vsel %vm4324, %v4304, %v4305
  %v4344 = vsel %vm4324, %v4303, %v4304
  %v4345 = vsel %vm4324, %v4302, %v4303
  %v4346 = vsel %vm4324, %v4301, %v4302
  %v4347 = vsel %vm4324, %v4300, %v4301
  %v4348 = vsel %vm4324, %v4299, %v4300
  %v4349 = vsel %vm4324, %v4298, %v4299
  %v4350 = vsel %vm4324, %v4323, %v4298
  %s4351 = scalar_lea.vmem %s4, 1024
  %v4352 = vld [vmem:[%s4351] sm:$0xff]
  %v4353 = vld [vmem:[%s4351 + $0x8] sm:$0xff]
  %v4354 = vld [vmem:[%s4351 + $0x10] sm:$0xff]
  %v4355 = vld [vmem:[%s4351 + $0x18] sm:$0xff]
  %v4356 = vld [vmem:[%s4351 + $0x20] sm:$0xff]
  %v4357 = vld [vmem:[%s4351 + $0x28] sm:$0xff]
  %v4358 = vld [vmem:[%s4351 + $0x30] sm:$0xff]
  %v4359 = vld [vmem:[%s4351 + $0x38] sm:$0xff]
  %v4360 = vld [vmem:[%s4351 + $0x40] sm:$0xff]
  %v4361 = vld [vmem:[%s4351 + $0x48] sm:$0xff]
  %v4362 = vld [vmem:[%s4351 + $0x50] sm:$0xff]
  %v4363 = vld [vmem:[%s4351 + $0x58] sm:$0xff]
  %v4364 = vld [vmem:[%s4351 + $0x60] sm:$0xff]
  %v4365 = vld [vmem:[%s4351 + $0x68] sm:$0xff]
  %v4366 = vld [vmem:[%s4351 + $0x70] sm:$0xff]
  %v4367 = vld [vmem:[%s4351 + $0x78] sm:$0xff]
  %4368 = vmatpush.msra.mxu0 %v4367
  %4369 = vmatpush.msra.mxu0 %v4366
  %4370 = vmatpush.msra.mxu0 %v4365
  %4371 = vmatpush.msra.mxu0 %v4364
  %4372 = vmatpush.msra.mxu0 %v4363
  %4373 = vmatpush.msra.mxu0 %v4362
  %4374 = vmatpush.msra.mxu0 %v4361
  %4375 = vmatpush.msra.mxu0 %v4360
  %4376 = vmatpush.msra.mxu0 %v4359
  %4377 = vmatpush.msra.mxu0 %v4358
  %4378 = vmatpush.msra.mxu0 %v4357
  %4379 = vmatpush.msra.mxu0 %v4356
  %4380 = vmatpush.msra.mxu0 %v4355
  %4381 = vmatpush.msra.mxu0 %v4354
  %4382 = vmatpush.msra.mxu0 %v4353
  %4383 = vmatpush.msra.mxu0 %v4352
  %4384 = vmatmul.f32.gmra.mxu0 %v4348
  %v4385 = vpop.f32.mrf.mxu0
  %v4386 = vadd.f32 0.0, %v4385
  %4387 = vmatmul.f32.gmra.mxu0 %v4347
  %v4388 = vpop.f32.mrf.mxu0
  %v4389 = vadd.f32 0.0, %v4388
  %4390 = vmatmul.f32.gmra.mxu0 %v4346
  %v4391 = vpop.f32.mrf.mxu0
  %v4392 = vadd.f32 0.0, %v4391
  %4393 = vmatmul.f32.gmra.mxu0 %v4345
  %v4394 = vpop.f32.mrf.mxu0
  %v4395 = vadd.f32 0.0, %v4394
  %4396 = vmatmul.f32.gmra.mxu0 %v4344
  %v4397 = vpop.f32.mrf.mxu0
  %v4398 = vadd.f32 0.0, %v4397
  %4399 = vmatmul.f32.gmra.mxu0 %v4343
  %v4400 = vpop.f32.mrf.mxu0
  %v4401 = vadd.f32 0.0, %v4400
  %4402 = vmatmul.f32.gmra.mxu0 %v4342
  %v4403 = vpop.f32.mrf.mxu0
  %v4404 = vadd.f32 0.0, %v4403
  %4405 = vmatmul.f32.gmra.mxu0 %v4341
  %v4406 = vpop.f32.mrf.mxu0
  %v4407 = vadd.f32 0.0, %v4406
  %4408 = vmatmul.f32.gmra.mxu0 %v4340
  %v4409 = vpop.f32.mrf.mxu0
  %v4410 = vadd.f32 0.0, %v4409
  %4411 = vmatmul.f32.gmra.mxu0 %v4339
  %v4412 = vpop.f32.mrf.mxu0
  %v4413 = vadd.f32 0.0, %v4412
  %4414 = vmatmul.f32.gmra.mxu0 %v4338
  %v4415 = vpop.f32.mrf.mxu0
  %v4416 = vadd.f32 0.0, %v4415
  %4417 = vmatmul.f32.gmra.mxu0 %v4337
  %v4418 = vpop.f32.mrf.mxu0
  %v4419 = vadd.f32 0.0, %v4418
  %4420 = vmatmul.f32.gmra.mxu0 %v4336
  %v4421 = vpop.f32.mrf.mxu0
  %v4422 = vadd.f32 0.0, %v4421
  %4423 = vmatmul.f32.gmra.mxu0 %v4335
  %v4424 = vpop.f32.mrf.mxu0
  %v4425 = vadd.f32 0.0, %v4424
  %4426 = vmatmul.f32.gmra.mxu0 %v4334
  %v4427 = vpop.f32.mrf.mxu0
  %v4428 = vadd.f32 0.0, %v4427
  %4429 = vmatmul.f32.gmra.mxu0 %v4333
  %v4430 = vpop.f32.mrf.mxu0
  %v4431 = vadd.f32 0.0, %v4430
  %4432 = vmatmul.f32.gmra.mxu0 %v4332
  %v4433 = vpop.f32.mrf.mxu0
  %v4434 = vadd.f32 0.0, %v4433
  %4435 = vmatmul.f32.gmra.mxu0 %v4331
  %v4436 = vpop.f32.mrf.mxu0
  %v4437 = vadd.f32 0.0, %v4436
  %4438 = vmatmul.f32.gmra.mxu0 %v4330
  %v4439 = vpop.f32.mrf.mxu0
  %v4440 = vadd.f32 0.0, %v4439
  %4441 = vmatmul.f32.gmra.mxu0 %v4329
  %v4442 = vpop.f32.mrf.mxu0
  %v4443 = vadd.f32 0.0, %v4442
  %4444 = vmatmul.f32.gmra.mxu0 %v4328
  %v4445 = vpop.f32.mrf.mxu0
  %v4446 = vadd.f32 0.0, %v4445
  %4447 = vmatmul.f32.gmra.mxu0 %v4327
  %v4448 = vpop.f32.mrf.mxu0
  %v4449 = vadd.f32 0.0, %v4448
  %4450 = vmatmul.f32.gmra.mxu0 %v4326
  %v4451 = vpop.f32.mrf.mxu0
  %v4452 = vadd.f32 0.0, %v4451
  %4453 = vmatmul.f32.gmra.mxu0 %v4325
  %v4454 = vpop.f32.mrf.mxu0
  %v4455 = vadd.f32 0.0, %v4454
  %4456 = vmatmul.f32.gmra.mxu0 %v4350
  %v4457 = vpop.f32.mrf.mxu0
  %v4458 = vadd.f32 0.0, %v4457
  %4459 = vmatmul.f32.gmra.mxu0 %v4349
  %v4460 = vpop.f32.mrf.mxu0
  %v4461 = vadd.f32 0.0, %v4460
  %4462 = vdwg.mxu0
  %v4463 = vld [vmem:[#allocation2] sm:$0xff]
  %v4464 = vld [vmem:[#allocation2 + $0x8] sm:$0xff]
  %v4465 = vld [vmem:[#allocation2 + $0x10] sm:$0xff]
  %v4466 = vld [vmem:[#allocation2 + $0x18] sm:$0xff]
  %v4467 = vld [vmem:[#allocation2 + $0x20] sm:$0xff]
  %v4468 = vld [vmem:[#allocation2 + $0x28] sm:$0xff]
  %v4469 = vld [vmem:[#allocation2 + $0x30] sm:$0xff]
  %v4470 = vld [vmem:[#allocation2 + $0x38] sm:$0xff]
  %v4471 = vld [vmem:[#allocation2 + $0x40] sm:$0xff]
  %v4472 = vld [vmem:[#allocation2 + $0x48] sm:$0xff]
  %v4473 = vld [vmem:[#allocation2 + $0x50] sm:$0xff]
  %v4474 = vld [vmem:[#allocation2 + $0x58] sm:$0xff]
  %v4475 = vld [vmem:[#allocation2 + $0x60] sm:$0xff]
  %v4476 = vld [vmem:[#allocation2 + $0x68] sm:$0xff]
  %v4477 = vld [vmem:[#allocation2 + $0x70] sm:$0xff]
  %v4478 = vld [vmem:[#allocation2 + $0x78] sm:$0xff]
  %v4479 = vld [vmem:[#allocation2 + $0x80] sm:$0xff]
  %v4480 = vld [vmem:[#allocation2 + $0x88] sm:$0xff]
  %v4481 = vld [vmem:[#allocation2 + $0x90] sm:$0xff]
  %v4482 = vld [vmem:[#allocation2 + $0x98] sm:$0xff]
  %v4483 = vld [vmem:[#allocation2 + $0xa0] sm:$0xff]
  %v4484 = vld [vmem:[#allocation2 + $0xa8] sm:$0xff]
  %v4485 = vld [vmem:[#allocation2 + $0xb0] sm:$0xff]
  %v4486 = vld [vmem:[#allocation2 + $0xb8] sm:$0xff]
  %v4487 = vld [vmem:[#allocation2 + $0xc0] sm:$0xff]
  %v4488 = vld [vmem:[#allocation2 + $0xc8] sm:$0xff]
  %v4489 = vadd.f32 %v4463, %v4386
  %v4490 = vadd.f32 %v4464, %v4389
  %v4491 = vadd.f32 %v4465, %v4392
  %v4492 = vadd.f32 %v4466, %v4395
  %v4493 = vadd.f32 %v4467, %v4398
  %v4494 = vadd.f32 %v4468, %v4401
  %v4495 = vadd.f32 %v4469, %v4404
  %v4496 = vadd.f32 %v4470, %v4407
  %v4497 = vadd.f32 %v4471, %v4410
  %v4498 = vadd.f32 %v4472, %v4413
  %v4499 = vadd.f32 %v4473, %v4416
  %v4500 = vadd.f32 %v4474, %v4419
  %v4501 = vadd.f32 %v4475, %v4422
  %v4502 = vadd.f32 %v4476, %v4425
  %v4503 = vadd.f32 %v4477, %v4428
  %v4504 = vadd.f32 %v4478, %v4431
  %v4505 = vadd.f32 %v4479, %v4434
  %v4506 = vadd.f32 %v4480, %v4437
  %v4507 = vadd.f32 %v4481, %v4440
  %v4508 = vadd.f32 %v4482, %v4443
  %v4509 = vadd.f32 %v4483, %v4446
  %v4510 = vadd.f32 %v4484, %v4449
  %v4511 = vadd.f32 %v4485, %v4452
  %v4512 = vadd.f32 %v4486, %v4455
  %v4513 = vadd.f32 %v4487, %v4458
  %v4514 = vadd.f32 %v4488, %v4461
  %4515 = vst [vmem:[#allocation2] sm:$0xff] %v4489
  %4516 = vst [vmem:[#allocation2 + $0x8] sm:$0xff] %v4490
  %4517 = vst [vmem:[#allocation2 + $0x10] sm:$0xff] %v4491
  %4518 = vst [vmem:[#allocation2 + $0x18] sm:$0xff] %v4492
  %4519 = vst [vmem:[#allocation2 + $0x20] sm:$0xff] %v4493
  %4520 = vst [vmem:[#allocation2 + $0x28] sm:$0xff] %v4494
  %4521 = vst [vmem:[#allocation2 + $0x30] sm:$0xff] %v4495
  %4522 = vst [vmem:[#allocation2 + $0x38] sm:$0xff] %v4496
  %4523 = vst [vmem:[#allocation2 + $0x40] sm:$0xff] %v4497
  %4524 = vst [vmem:[#allocation2 + $0x48] sm:$0xff] %v4498
  %4525 = vst [vmem:[#allocation2 + $0x50] sm:$0xff] %v4499
  %4526 = vst [vmem:[#allocation2 + $0x58] sm:$0xff] %v4500
  %4527 = vst [vmem:[#allocation2 + $0x60] sm:$0xff] %v4501
  %4528 = vst [vmem:[#allocation2 + $0x68] sm:$0xff] %v4502
  %4529 = vst [vmem:[#allocation2 + $0x70] sm:$0xff] %v4503
  %4530 = vst [vmem:[#allocation2 + $0x78] sm:$0xff] %v4504
  %4531 = vst [vmem:[#allocation2 + $0x80] sm:$0xff] %v4505
  %4532 = vst [vmem:[#allocation2 + $0x88] sm:$0xff] %v4506
  %4533 = vst [vmem:[#allocation2 + $0x90] sm:$0xff] %v4507
  %4534 = vst [vmem:[#allocation2 + $0x98] sm:$0xff] %v4508
  %4535 = vst [vmem:[#allocation2 + $0xa0] sm:$0xff] %v4509
  %4536 = vst [vmem:[#allocation2 + $0xa8] sm:$0xff] %v4510
  %4537 = vst [vmem:[#allocation2 + $0xb0] sm:$0xff] %v4511
  %4538 = vst [vmem:[#allocation2 + $0xb8] sm:$0xff] %v4512
  %4539 = vst [vmem:[#allocation2 + $0xc0] sm:$0xff] %v4513
  %4540 = vst [vmem:[#allocation2 + $0xc8] sm:$0xff] %v4514
  %v4541 = vld [vmem:[#allocation2] sm:$0xff]
  %v4542 = vld [vmem:[#allocation2 + $0x8] sm:$0xff]
  %v4543 = vld [vmem:[#allocation2 + $0x10] sm:$0xff]
  %v4544 = vld [vmem:[#allocation2 + $0x18] sm:$0xff]
  %v4545 = vld [vmem:[#allocation2 + $0x20] sm:$0xff]
  %v4546 = vld [vmem:[#allocation2 + $0x28] sm:$0xff]
  %v4547 = vld [vmem:[#allocation2 + $0x30] sm:$0xff]
  %v4548 = vld [vmem:[#allocation2 + $0x38] sm:$0xff]
  %v4549 = vld [vmem:[#allocation2 + $0x40] sm:$0xff]
  %v4550 = vld [vmem:[#allocation2 + $0x48] sm:$0xff]
  %v4551 = vld [vmem:[#allocation2 + $0x50] sm:$0xff]
  %v4552 = vld [vmem:[#allocation2 + $0x58] sm:$0xff]
  %v4553 = vld [vmem:[#allocation2 + $0x60] sm:$0xff]
  %v4554 = vld [vmem:[#allocation2 + $0x68] sm:$0xff]
  %v4555 = vld [vmem:[#allocation2 + $0x70] sm:$0xff]
  %v4556 = vld [vmem:[#allocation2 + $0x78] sm:$0xff]
  %v4557 = vld [vmem:[#allocation2 + $0x80] sm:$0xff]
  %v4558 = vld [vmem:[#allocation2 + $0x88] sm:$0xff]
  %v4559 = vld [vmem:[#allocation2 + $0x90] sm:$0xff]
  %v4560 = vld [vmem:[#allocation2 + $0x98] sm:$0xff]
  %v4561 = vld [vmem:[#allocation2 + $0xa0] sm:$0xff]
  %v4562 = vld [vmem:[#allocation2 + $0xa8] sm:$0xff]
  %v4563 = vld [vmem:[#allocation2 + $0xb0] sm:$0xff]
  %v4564 = vld [vmem:[#allocation2 + $0xb8] sm:$0xff]
  %v4565 = vld [vmem:[#allocation2 + $0xc0] sm:$0xff]
  %v4566 = vld [vmem:[#allocation2 + $0xc8] sm:$0xff]
  %v4567 = vld [vmem:[%s5] sm:$0x1]
  %v4569 = vperm.slane %v4567, 0
  %v4571 = vmul.f32 %v4541, %v4569
  %v4572 = vmul.f32 %v4542, %v4569
  %v4573 = vmul.f32 %v4543, %v4569
  %v4574 = vmul.f32 %v4544, %v4569
  %v4575 = vmul.f32 %v4545, %v4569
  %v4576 = vmul.f32 %v4546, %v4569
  %v4577 = vmul.f32 %v4547, %v4569
  %v4578 = vmul.f32 %v4548, %v4569
  %v4579 = vmul.f32 %v4549, %v4569
  %v4580 = vmul.f32 %v4550, %v4569
  %v4581 = vmul.f32 %v4551, %v4569
  %v4582 = vmul.f32 %v4552, %v4569
  %v4583 = vmul.f32 %v4553, %v4569
  %v4584 = vmul.f32 %v4554, %v4569
  %v4585 = vmul.f32 %v4555, %v4569
  %v4586 = vmul.f32 %v4556, %v4569
  %v4587 = vmul.f32 %v4557, %v4569
  %v4588 = vmul.f32 %v4558, %v4569
  %v4589 = vmul.f32 %v4559, %v4569
  %v4590 = vmul.f32 %v4560, %v4569
  %v4591 = vmul.f32 %v4561, %v4569
  %v4592 = vmul.f32 %v4562, %v4569
  %v4593 = vmul.f32 %v4563, %v4569
  %v4594 = vmul.f32 %v4564, %v4569
  %v4595 = vmul.f32 %v4565, %v4569
  %v4596 = vmul.f32 %v4566, %v4569
  %v4597 = vld [vmem:[%s6] sm:$0x1]
  %v4599 = vperm.slane %v4597, 0
  %v4601 = vadd.f32 %v4571, %v4599
  %v4602 = vadd.f32 %v4572, %v4599
  %v4603 = vadd.f32 %v4573, %v4599
  %v4604 = vadd.f32 %v4574, %v4599
  %v4605 = vadd.f32 %v4575, %v4599
  %v4606 = vadd.f32 %v4576, %v4599
  %v4607 = vadd.f32 %v4577, %v4599
  %v4608 = vadd.f32 %v4578, %v4599
  %v4609 = vadd.f32 %v4579, %v4599
  %v4610 = vadd.f32 %v4580, %v4599
  %v4611 = vadd.f32 %v4581, %v4599
  %v4612 = vadd.f32 %v4582, %v4599
  %v4613 = vadd.f32 %v4583, %v4599
  %v4614 = vadd.f32 %v4584, %v4599
  %v4615 = vadd.f32 %v4585, %v4599
  %v4616 = vadd.f32 %v4586, %v4599
  %v4617 = vadd.f32 %v4587, %v4599
  %v4618 = vadd.f32 %v4588, %v4599
  %v4619 = vadd.f32 %v4589, %v4599
  %v4620 = vadd.f32 %v4590, %v4599
  %v4621 = vadd.f32 %v4591, %v4599
  %v4622 = vadd.f32 %v4592, %v4599
  %v4623 = vadd.f32 %v4593, %v4599
  %v4624 = vadd.f32 %v4594, %v4599
  %v4625 = vadd.f32 %v4595, %v4599
  %v4626 = vadd.f32 %v4596, %v4599
  %v4627 = vld [vmem:[%s8] sm:$0xff]
  %v4628 = vld [vmem:[%s8 + $0x8] sm:$0xff]
  %v4629 = vld [vmem:[%s8 + $0x10] sm:$0xff]
  %v4630 = vld [vmem:[%s8 + $0x18] sm:$0xff]
  %v4631 = vld [vmem:[%s8 + $0x20] sm:$0xff]
  %v4632 = vld [vmem:[%s8 + $0x28] sm:$0xff]
  %v4633 = vld [vmem:[%s8 + $0x30] sm:$0xff]
  %v4634 = vld [vmem:[%s8 + $0x38] sm:$0xff]
  %v4635 = vld [vmem:[%s8 + $0x40] sm:$0xff]
  %v4636 = vld [vmem:[%s8 + $0x48] sm:$0xff]
  %v4637 = vld [vmem:[%s8 + $0x50] sm:$0xff]
  %v4638 = vld [vmem:[%s8 + $0x58] sm:$0xff]
  %v4639 = vld [vmem:[%s8 + $0x60] sm:$0xff]
  %v4640 = vld [vmem:[%s8 + $0x68] sm:$0xff]
  %v4641 = vld [vmem:[%s8 + $0x70] sm:$0xff]
  %v4642 = vld [vmem:[%s8 + $0x78] sm:$0xff]
  %4643 = vmatpush.msra.mxu0 %v4642
  %4644 = vmatpush.msra.mxu0 %v4641
  %4645 = vmatpush.msra.mxu0 %v4640
  %4646 = vmatpush.msra.mxu0 %v4639
  %4647 = vmatpush.msra.mxu0 %v4638
  %4648 = vmatpush.msra.mxu0 %v4637
  %4649 = vmatpush.msra.mxu0 %v4636
  %4650 = vmatpush.msra.mxu0 %v4635
  %4651 = vmatpush.msra.mxu0 %v4634
  %4652 = vmatpush.msra.mxu0 %v4633
  %4653 = vmatpush.msra.mxu0 %v4632
  %4654 = vmatpush.msra.mxu0 %v4631
  %4655 = vmatpush.msra.mxu0 %v4630
  %4656 = vmatpush.msra.mxu0 %v4629
  %4657 = vmatpush.msra.mxu0 %v4628
  %4658 = vmatpush.msra.mxu0 %v4627
  %4659 = vmatmul.f32.gmra.mxu0 %v1090
  %v4660 = vpop.f32.mrf.mxu0
  %v4661 = vadd.f32 0.0, %v4660
  %4662 = vmatmul.f32.gmra.mxu0 %v1115
  %v4663 = vpop.f32.mrf.mxu0
  %v4664 = vadd.f32 0.0, %v4663
  %4665 = vmatmul.f32.gmra.mxu0 %v1114
  %v4666 = vpop.f32.mrf.mxu0
  %v4667 = vadd.f32 0.0, %v4666
  %4668 = vmatmul.f32.gmra.mxu0 %v1113
  %v4669 = vpop.f32.mrf.mxu0
  %v4670 = vadd.f32 0.0, %v4669
  %4671 = vmatmul.f32.gmra.mxu0 %v1112
  %v4672 = vpop.f32.mrf.mxu0
  %v4673 = vadd.f32 0.0, %v4672
  %4674 = vmatmul.f32.gmra.mxu0 %v1111
  %v4675 = vpop.f32.mrf.mxu0
  %v4676 = vadd.f32 0.0, %v4675
  %4677 = vmatmul.f32.gmra.mxu0 %v1110
  %v4678 = vpop.f32.mrf.mxu0
  %v4679 = vadd.f32 0.0, %v4678
  %4680 = vmatmul.f32.gmra.mxu0 %v1109
  %v4681 = vpop.f32.mrf.mxu0
  %v4682 = vadd.f32 0.0, %v4681
  %4683 = vmatmul.f32.gmra.mxu0 %v1108
  %v4684 = vpop.f32.mrf.mxu0
  %v4685 = vadd.f32 0.0, %v4684
  %4686 = vmatmul.f32.gmra.mxu0 %v1107
  %v4687 = vpop.f32.mrf.mxu0
  %v4688 = vadd.f32 0.0, %v4687
  %4689 = vmatmul.f32.gmra.mxu0 %v1106
  %v4690 = vpop.f32.mrf.mxu0
  %v4691 = vadd.f32 0.0, %v4690
  %4692 = vmatmul.f32.gmra.mxu0 %v1105
  %v4693 = vpop.f32.mrf.mxu0
  %v4694 = vadd.f32 0.0, %v4693
  %4695 = vmatmul.f32.gmra.mxu0 %v1104
  %v4696 = vpop.f32.mrf.mxu0
  %v4697 = vadd.f32 0.0, %v4696
  %4698 = vmatmul.f32.gmra.mxu0 %v1103
  %v4699 = vpop.f32.mrf.mxu0
  %v4700 = vadd.f32 0.0, %v4699
  %4701 = vmatmul.f32.gmra.mxu0 %v1102
  %v4702 = vpop.f32.mrf.mxu0
  %v4703 = vadd.f32 0.0, %v4702
  %4704 = vmatmul.f32.gmra.mxu0 %v1101
  %v4705 = vpop.f32.mrf.mxu0
  %v4706 = vadd.f32 0.0, %v4705
  %4707 = vmatmul.f32.gmra.mxu0 %v1100
  %v4708 = vpop.f32.mrf.mxu0
  %v4709 = vadd.f32 0.0, %v4708
  %4710 = vmatmul.f32.gmra.mxu0 %v1099
  %v4711 = vpop.f32.mrf.mxu0
  %v4712 = vadd.f32 0.0, %v4711
  %4713 = vmatmul.f32.gmra.mxu0 %v1098
  %v4714 = vpop.f32.mrf.mxu0
  %v4715 = vadd.f32 0.0, %v4714
  %4716 = vmatmul.f32.gmra.mxu0 %v1097
  %v4717 = vpop.f32.mrf.mxu0
  %v4718 = vadd.f32 0.0, %v4717
  %4719 = vmatmul.f32.gmra.mxu0 %v1096
  %v4720 = vpop.f32.mrf.mxu0
  %v4721 = vadd.f32 0.0, %v4720
  %4722 = vmatmul.f32.gmra.mxu0 %v1095
  %v4723 = vpop.f32.mrf.mxu0
  %v4724 = vadd.f32 0.0, %v4723
  %4725 = vmatmul.f32.gmra.mxu0 %v1094
  %v4726 = vpop.f32.mrf.mxu0
  %v4727 = vadd.f32 0.0, %v4726
  %4728 = vmatmul.f32.gmra.mxu0 %v1093
  %v4729 = vpop.f32.mrf.mxu0
  %v4730 = vadd.f32 0.0, %v4729
  %4731 = vmatmul.f32.gmra.mxu0 %v1092
  %v4732 = vpop.f32.mrf.mxu0
  %v4733 = vadd.f32 0.0, %v4732
  %4734 = vmatmul.f32.gmra.mxu0 %v1091
  %v4735 = vpop.f32.mrf.mxu0
  %v4736 = vadd.f32 0.0, %v4735
  %4737 = vdwg.mxu0
  %v4738 = vld [vmem:[%s9] sm:$0x1]
  %v4740 = vperm.slane %v4738, 0
  %v4742 = vmul.f32 %v4661, %v4740
  %v4743 = vmul.f32 %v4664, %v4740
  %v4744 = vmul.f32 %v4667, %v4740
  %v4745 = vmul.f32 %v4670, %v4740
  %v4746 = vmul.f32 %v4673, %v4740
  %v4747 = vmul.f32 %v4676, %v4740
  %v4748 = vmul.f32 %v4679, %v4740
  %v4749 = vmul.f32 %v4682, %v4740
  %v4750 = vmul.f32 %v4685, %v4740
  %v4751 = vmul.f32 %v4688, %v4740
  %v4752 = vmul.f32 %v4691, %v4740
  %v4753 = vmul.f32 %v4694, %v4740
  %v4754 = vmul.f32 %v4697, %v4740
  %v4755 = vmul.f32 %v4700, %v4740
  %v4756 = vmul.f32 %v4703, %v4740
  %v4757 = vmul.f32 %v4706, %v4740
  %v4758 = vmul.f32 %v4709, %v4740
  %v4759 = vmul.f32 %v4712, %v4740
  %v4760 = vmul.f32 %v4715, %v4740
  %v4761 = vmul.f32 %v4718, %v4740
  %v4762 = vmul.f32 %v4721, %v4740
  %v4763 = vmul.f32 %v4724, %v4740
  %v4764 = vmul.f32 %v4727, %v4740
  %v4765 = vmul.f32 %v4730, %v4740
  %v4766 = vmul.f32 %v4733, %v4740
  %v4767 = vmul.f32 %v4736, %v4740
  %v4768 = vld [vmem:[%s10] sm:$0x1]
  %v4770 = vperm.slane %v4768, 0
  %v4772 = vadd.f32 %v4742, %v4770
  %v4773 = vadd.f32 %v4743, %v4770
  %v4774 = vadd.f32 %v4744, %v4770
  %v4775 = vadd.f32 %v4745, %v4770
  %v4776 = vadd.f32 %v4746, %v4770
  %v4777 = vadd.f32 %v4747, %v4770
  %v4778 = vadd.f32 %v4748, %v4770
  %v4779 = vadd.f32 %v4749, %v4770
  %v4780 = vadd.f32 %v4750, %v4770
  %v4781 = vadd.f32 %v4751, %v4770
  %v4782 = vadd.f32 %v4752, %v4770
  %v4783 = vadd.f32 %v4753, %v4770
  %v4784 = vadd.f32 %v4754, %v4770
  %v4785 = vadd.f32 %v4755, %v4770
  %v4786 = vadd.f32 %v4756, %v4770
  %v4787 = vadd.f32 %v4757, %v4770
  %v4788 = vadd.f32 %v4758, %v4770
  %v4789 = vadd.f32 %v4759, %v4770
  %v4790 = vadd.f32 %v4760, %v4770
  %v4791 = vadd.f32 %v4761, %v4770
  %v4792 = vadd.f32 %v4762, %v4770
  %v4793 = vadd.f32 %v4763, %v4770
  %v4794 = vadd.f32 %v4764, %v4770
  %v4795 = vadd.f32 %v4765, %v4770
  %v4796 = vadd.f32 %v4766, %v4770
  %v4797 = vadd.f32 %v4767, %v4770
  %v4798 = vadd.f32 %v4601, %v4772
  %v4799 = vadd.f32 %v4602, %v4773
  %v4800 = vadd.f32 %v4603, %v4774
  %v4801 = vadd.f32 %v4604, %v4775
  %v4802 = vadd.f32 %v4605, %v4776
  %v4803 = vadd.f32 %v4606, %v4777
  %v4804 = vadd.f32 %v4607, %v4778
  %v4805 = vadd.f32 %v4608, %v4779
  %v4806 = vadd.f32 %v4609, %v4780
  %v4807 = vadd.f32 %v4610, %v4781
  %v4808 = vadd.f32 %v4611, %v4782
  %v4809 = vadd.f32 %v4612, %v4783
  %v4810 = vadd.f32 %v4613, %v4784
  %v4811 = vadd.f32 %v4614, %v4785
  %v4812 = vadd.f32 %v4615, %v4786
  %v4813 = vadd.f32 %v4616, %v4787
  %v4814 = vadd.f32 %v4617, %v4788
  %v4815 = vadd.f32 %v4618, %v4789
  %v4816 = vadd.f32 %v4619, %v4790
  %v4817 = vadd.f32 %v4620, %v4791
  %v4818 = vadd.f32 %v4621, %v4792
  %v4819 = vadd.f32 %v4622, %v4793
  %v4820 = vadd.f32 %v4623, %v4794
  %v4821 = vadd.f32 %v4624, %v4795
  %v4822 = vadd.f32 %v4625, %v4796
  %v4823 = vadd.f32 %v4626, %v4797
  %v4824 = vmax.f32 %v4798, 0.0
  %v4825 = vmax.f32 %v4799, 0.0
  %v4826 = vmax.f32 %v4800, 0.0
  %v4827 = vmax.f32 %v4801, 0.0
  %v4828 = vmax.f32 %v4802, 0.0
  %v4829 = vmax.f32 %v4803, 0.0
  %v4830 = vmax.f32 %v4804, 0.0
  %v4831 = vmax.f32 %v4805, 0.0
  %v4832 = vmax.f32 %v4806, 0.0
  %v4833 = vmax.f32 %v4807, 0.0
  %v4834 = vmax.f32 %v4808, 0.0
  %v4835 = vmax.f32 %v4809, 0.0
  %v4836 = vmax.f32 %v4810, 0.0
  %v4837 = vmax.f32 %v4811, 0.0
  %v4838 = vmax.f32 %v4812, 0.0
  %v4839 = vmax.f32 %v4813, 0.0
  %v4840 = vmax.f32 %v4814, 0.0
  %v4841 = vmax.f32 %v4815, 0.0
  %v4842 = vmax.f32 %v4816, 0.0
  %v4843 = vmax.f32 %v4817, 0.0
  %v4844 = vmax.f32 %v4818, 0.0
  %v4845 = vmax.f32 %v4819, 0.0
  %v4846 = vmax.f32 %v4820, 0.0
  %v4847 = vmax.f32 %v4821, 0.0
  %v4848 = vmax.f32 %v4822, 0.0
  %v4849 = vmax.f32 %v4823, 0.0
  %4850 = vst [vmem:[%s11] sm:$0xff] %v4824
  %4851 = vst [vmem:[%s11 + $0x8] sm:$0xff] %v4825
  %4852 = vst [vmem:[%s11 + $0x10] sm:$0xff] %v4826
  %4853 = vst [vmem:[%s11 + $0x18] sm:$0xff] %v4827
  %4854 = vst [vmem:[%s11 + $0x20] sm:$0xff] %v4828
  %4855 = vst [vmem:[%s11 + $0x28] sm:$0xff] %v4829
  %4856 = vst [vmem:[%s11 + $0x30] sm:$0xff] %v4830
  %4857 = vst [vmem:[%s11 + $0x38] sm:$0xff] %v4831
  %4858 = vst [vmem:[%s11 + $0x40] sm:$0xff] %v4832
  %4859 = vst [vmem:[%s11 + $0x48] sm:$0xff] %v4833
  %4860 = vst [vmem:[%s11 + $0x50] sm:$0xff] %v4834
  %4861 = vst [vmem:[%s11 + $0x58] sm:$0xff] %v4835
  %4862 = vst [vmem:[%s11 + $0x60] sm:$0xff] %v4836
  %4863 = vst [vmem:[%s11 + $0x68] sm:$0xff] %v4837
  %4864 = vst [vmem:[%s11 + $0x70] sm:$0xff] %v4838
  %4865 = vst [vmem:[%s11 + $0x78] sm:$0xff] %v4839
  %4866 = vst [vmem:[%s11 + $0x80] sm:$0xff] %v4840
  %4867 = vst [vmem:[%s11 + $0x88] sm:$0xff] %v4841
  %4868 = vst [vmem:[%s11 + $0x90] sm:$0xff] %v4842
  %4869 = vst [vmem:[%s11 + $0x98] sm:$0xff] %v4843
  %4870 = vst [vmem:[%s11 + $0xa0] sm:$0xff] %v4844
  %4871 = vst [vmem:[%s11 + $0xa8] sm:$0xff] %v4845
  %4872 = vst [vmem:[%s11 + $0xb0] sm:$0xff] %v4846
  %4873 = vst [vmem:[%s11 + $0xb8] sm:$0xff] %v4847
  %4874 = vst [vmem:[%s11 + $0xc0] sm:$0xff] %v4848
  %4875 = vst [vmem:[%s11 + $0xc8] sm:$0xff] %v4849
  // Predicated region
  $region46: #{basic_block_forward.1} parent=0 // pred_check
    _
  $region47: #{basic_block_forward.1} parent=0 // pred_check_branch
    %4877 = sbr.rel (0) target = $region49
  $region48: #{basic_block_forward.1} parent=0 // pred_region
    _
  $region49: #{basic_block_forward.1} parent=0 // pred_fallthru
    _
  // Predicated region
  $region50: #{basic_block_forward.1} parent=0 // pred_check
    _
  $region51: #{basic_block_forward.1} parent=0 // pred_check_branch
    %4879 = sbr.rel (0) target = $region53
  $region52: #{basic_block_forward.1} parent=0 // pred_region
    _
  $region53: #{basic_block_forward.1} parent=0 // pred_fallthru
    _

</llo_original>
